<compile_context>
chip_gen: v5e
topology: v5e:2x2
jax: 0.10.0
libtpu: 0.0.40
codegen_flags: <defaults>
</compile_context>

<pallas_src>
import math
import functools

import jax
import jax.numpy as jnp
from jax import lax
from jax.experimental import pallas as pl
from jax.experimental.pallas import tpu as pltpu

# ---------------- config (mirrors `opt`) ----------------
ROBERTA_DIM = 32
HIDDEN_DIM = 32
CSK_DIM = 16
MLP_LAYERS = 2          # nn layers in smax_fc before the final classifier
N_CLASSES = 7
SEQ_LEN = 8
BATCH = 2
LN_EPS = 1e-5


# ---------------- the fused kernel (one grid point per batch element) --------
def fused_cauain_kernel(
        # conversation features / masks (sequence-major, as the module receives them)
        r1_ref, r2_ref, r3_ref, r4_ref,
        x4_ref, x5_ref, x6_ref, o1_ref, o2_ref, o3_ref,
        umask_ref, intra_ref, inter_ref,
        # parameters
        ln_g_ref, ln_b_ref, w_in_ref, b_in_ref,
        wih_f_ref, whh_f_ref, bias_f_ref, wih_b_ref, whh_b_ref, bias_b_ref,
        w_intra_ref, b_intra_ref, w_inter_ref, b_inter_ref,
        w_qkv_ref, b_qkv_ref, ww_ref, bw_ref,
        w1_ref, b1_ref, w2_ref, b2_ref, w3_ref, b3_ref,
        # output
        out_ref,
        *, hidden, d_h, n_batch, seq_len):
    H = hidden
    T = seq_len
    b_idx = pl.program_id(0)

    # --- per-batch selection via static slices + select (B is a tiny static) ---
    def pick_tbf(ref):                       # (T, B, F) ref -> (T, F) for batch b_idx
        a = ref[...]
        sel = a[:, 0, :]
        for bb in range(1, n_batch):
            sel = jnp.where(b_idx == bb, a[:, bb, :], sel)
        return sel

    def pick_row(ref):                       # (B, T, T) ref -> (T, T) for batch b_idx
        a = ref[...]
        sel = a[0]
        for bb in range(1, n_batch):
            sel = jnp.where(b_idx == bb, a[bb], sel)
        return sel

    def linear(x, w_ref, b_ref):
        return jnp.dot(x, w_ref[...], preferred_element_type=jnp.float32) + b_ref[...]

    # ---- stage 1: r = mean(r1..r4) -> LayerNorm -> linear_in -----------------
    r = (pick_tbf(r1_ref) + pick_tbf(r2_ref)
         + pick_tbf(r3_ref) + pick_tbf(r4_ref)) * 0.25            # (T, Dr)
    mu = jnp.mean(r, axis=-1, keepdims=True)
    var = jnp.mean(jnp.square(r - mu), axis=-1, keepdims=True)
    rn = (r - mu) * lax.rsqrt(var + LN_EPS)
    rn = rn * ln_g_ref[...] + ln_b_ref[...]
    rlin = linear(rn, w_in_ref, b_in_ref)                         # (T, H)

    # ---- stage 2: masked bidirectional LSTM (packed-sequence semantics) ------
    um = umask_ref[...]                                           # (B, T)
    m_row = um[0:1, :]
    for bb in range(1, n_batch):
        m_row = jnp.where(b_idx == bb, um[bb:bb + 1, :], m_row)
    m_row = (m_row != 0.0).astype(jnp.float32)                    # (1, T)

    wih_f = wih_f_ref[...]; whh_f = whh_f_ref[...]; bias_f = bias_f_ref[...]
    wih_b = wih_b_ref[...]; whh_b = whh_b_ref[...]; bias_b = bias_b_ref[...]

    def cell(x, h, c, wih, whh, bias):
        gates = (jnp.dot(x, wih, preferred_element_type=jnp.float32)
                 + jnp.dot(h, whh, preferred_element_type=jnp.float32) + bias)
        i_g = jax.nn.sigmoid(gates[:, 0 * H:1 * H])
        f_g = jax.nn.sigmoid(gates[:, 1 * H:2 * H])
        g_g = jnp.tanh(gates[:, 2 * H:3 * H])
        o_g = jax.nn.sigmoid(gates[:, 3 * H:4 * H])
        c_new = f_g * c + i_g * g_g
        h_new = o_g * jnp.tanh(c_new)
        return h_new, c_new

    zeros = jnp.zeros((1, H), jnp.float32)
    hf, cf, hb, cb = zeros, zeros, zeros, zeros
    outs_f = [None] * T
    outs_b = [None] * T
    # Statically unrolled time loop; padded positions (mask==0) keep the
    # carried state and emit zero output == pack/pad_packed_sequence semantics.
    for t in range(T):
        # forward direction at time t
        mt = m_row[:, t:t + 1]
        hn, cn = cell(rlin[t:t + 1, :], hf, cf, wih_f, whh_f, bias_f)
        outs_f[t] = mt * hn
        hf = mt * hn + (1.0 - mt) * hf
        cf = mt * cn + (1.0 - mt) * cf
        # backward direction at time T-1-t
        tb = T - 1 - t
        mtb = m_row[:, tb:tb + 1]
        hnb, cnb = cell(rlin[tb:tb + 1, :], hb, cb, wih_b, whh_b, bias_b)
        outs_b[tb] = mtb * hnb
        hb = mtb * hnb + (1.0 - mtb) * hb
        cb = mtb * cnb + (1.0 - mtb) * cb

    feats = jnp.concatenate(
        [jnp.concatenate(outs_f, axis=0), jnp.concatenate(outs_b, axis=0)],
        axis=-1)                                                  # (T, 2H)

    # ---- stage 3: commonsense fusion linears ---------------------------------
    xs = jnp.concatenate([pick_tbf(x4_ref), pick_tbf(x5_ref), pick_tbf(x6_ref)],
                         axis=-1)                                 # (T, 3*CSK)
    os_ = jnp.concatenate([pick_tbf(o1_ref), pick_tbf(o2_ref), pick_tbf(o3_ref)],
                          axis=-1)
    eff_self = linear(xs, w_intra_ref, b_intra_ref)               # (T, 2H)
    eff_other = linear(os_, w_inter_ref, b_inter_ref)             # (T, 2H)

    # ---- stage 4: cause-effect reasoning attention ----------------------------
    intra = pick_row(intra_ref)                                   # (T, T)
    inter = pick_row(inter_ref)                                   # (T, T)

    qkv = linear(feats, w_qkv_ref, b_qkv_ref)                     # (T, 6H)
    q = qkv[:, 0:2 * H]
    k_base = qkv[:, 2 * H:4 * H]
    v_base = qkv[:, 4 * H:6 * H]

    # weight(effects_from_self) and weight(effects_from_others) in one matmul
    w_both = linear(jnp.concatenate([eff_self, eff_other], axis=0), ww_ref, bw_ref)
    w_es = w_both[0:T, :]
    w_eo = w_both[T:2 * T, :]

    k_intra = k_base + w_es
    v_intra = v_base + w_es
    k_inter = k_base + w_eo
    v_inter = v_base + w_eo

    scale = 1.0 / math.sqrt(d_h)
    s_intra = jnp.dot(q, k_intra.T, preferred_element_type=jnp.float32) * scale * intra
    s_inter = jnp.dot(q, k_inter.T, preferred_element_type=jnp.float32) * scale * inter
    # NOTE: intra / inter masks are mutually exclusive per (t, t') pair
    # (same-speaker vs other-speaker) by construction; the sum below relies on it.
    mask = intra + inter
    scores = jnp.where(mask == 0.0, -1e9, s_intra + s_inter)
    scores = scores - jnp.max(scores, axis=-1, keepdims=True)
    e = jnp.exp(scores)
    probs = e * pl.reciprocal(jnp.sum(e, axis=-1, keepdims=True), approx=True)
    # TODO(synk): attention dropout is a no-op here (eval mode).

    p_intra = probs * intra
    p_inter = probs * inter
    # effect = p_intra@v_intra + p_inter@v_inter  (merged into one matmul, exact)
    effect = jnp.dot(jnp.concatenate([p_intra, p_inter], axis=-1),
                     jnp.concatenate([v_intra, v_inter], axis=0),
                     preferred_element_type=jnp.float32)          # (T, 2H)
    # cause = p_intra@q + p_inter@q == (p_intra + p_inter)@q  (exact)
    cause = jnp.dot(p_intra + p_inter, q, preferred_element_type=jnp.float32)
    final = jnp.concatenate([effect, cause], axis=-1)             # (T, 4H)

    # TODO(synk): original CauAIN calls self.dropout which is never defined in
    # its __init__; treated as identity (eval-mode dropout).

    # ---- stage 5: classifier MLP + log_softmax --------------------------------
    h1 = jnp.maximum(linear(final, w1_ref, b1_ref), 0.0)
    h2 = jnp.maximum(linear(h1, w2_ref, b2_ref), 0.0)
    logits = linear(h2, w3_ref, b3_ref)
    z = logits - jnp.max(logits, axis=-1, keepdims=True)
    lse = jnp.log(jnp.sum(jnp.exp(z), axis=-1, keepdims=True))
    out_ref[0] = z - lse                                          # (T, n_classes)


# ---------------- wrapper ----------------
def cauain_forward(p, r1, r2, r3, r4, x4, x5, x6, o1, o2, o3,
                   umask, intra_c_e_mask, inter_c_e_mask):
    T, B, _ = r1.shape
    H = HIDDEN_DIM

    def full_spec(shape):
        zeros = (0,) * len(shape)
        return pl.BlockSpec(shape, lambda b, _z=zeros: _z)

    data = (r1, r2, r3, r4, x4, x5, x6, o1, o2, o3,
            umask, intra_c_e_mask, inter_c_e_mask)
    weights = (p['ln_gamma'], p['ln_beta'], p['w_in'], p['b_in'],
               p['wih_f'], p['whh_f'], p['b_f'],
               p['wih_b'], p['whh_b'], p['b_b'],
               p['w_intra'], p['b_intra'], p['w_inter'], p['b_inter'],
               p['w_qkv'], p['b_qkv'], p['ww'], p['bw'],
               p['w1'], p['b1'], p['w2'], p['b2'], p['w3'], p['b3'])
    operands = data + weights
    in_specs = [full_spec(a.shape) for a in operands]

    kernel = functools.partial(fused_cauain_kernel, hidden=H, d_h=H,
                               n_batch=B, seq_len=T)
    out_bt = pl.pallas_call(
        kernel,
        out_shape=jax.ShapeDtypeStruct((B, T, N_CLASSES), jnp.float32),
        grid=(B,),
        in_specs=in_specs,
        out_specs=pl.BlockSpec((1, T, N_CLASSES), lambda b: (b, 0, 0)),
        compiler_params=pltpu.CompilerParams(
            dimension_semantics=("parallel",)),   # batch -> both TCs on v7x
    )(*operands)
    # restore the module's (seq_len, batch, n_classes) output layout
    return jnp.transpose(out_bt, (1, 0, 2))


# ---------------- deterministic parameter init ----------------
def init_params(key):
    keys = iter(jax.random.split(key, 64))

    def lin(din, dout):
        w = jax.random.normal(next(keys), (din, dout), jnp.float32) / math.sqrt(din)
        b = jax.random.normal(next(keys), (1, dout), jnp.float32) * 0.01
        return w, b

    H = HIDDEN_DIM
    p = {}
    p['ln_gamma'] = jnp.ones((1, ROBERTA_DIM), jnp.float32)
    p['ln_beta'] = jnp.zeros((1, ROBERTA_DIM), jnp.float32)
    p['w_in'], p['b_in'] = lin(ROBERTA_DIM, H)
    for d in ('f', 'b'):
        p[f'wih_{d}'], _ = lin(H, 4 * H)
        p[f'whh_{d}'], _ = lin(H, 4 * H)
        p[f'b_{d}'] = jax.random.normal(next(keys), (1, 4 * H), jnp.float32) * 0.01
    p['w_intra'], p['b_intra'] = lin(3 * CSK_DIM, 2 * H)
    p['w_inter'], p['b_inter'] = lin(3 * CSK_DIM, 2 * H)
    wq, bq = lin(2 * H, 2 * H)
    wk, bk = lin(2 * H, 2 * H)
    wv, bv = lin(2 * H, 2 * H)
    # query/key/value projections pre-concatenated into one (2H, 6H) weight so
    # the kernel does a single MXU pass (done once at init, free at forward time).
    p['w_qkv'] = jnp.concatenate([wq, wk, wv], axis=1)
    p['b_qkv'] = jnp.concatenate([bq, bk, bv], axis=1)
    p['ww'], p['bw'] = lin(2 * H, 2 * H)
    p['w1'], p['b1'] = lin(4 * H, H)          # MLP layer 1
    p['w2'], p['b2'] = lin(H, H)              # MLP layer 2 (mlp_layers=2)
    p['w3'], p['b3'] = lin(H, N_CLASSES)      # classifier
    return p


if __name__ == "__main__":
    key = jax.random.PRNGKey(0)
    pkey, dkey = jax.random.split(key)
    params = init_params(pkey)

    T, B = SEQ_LEN, BATCH
    ks = iter(jax.random.split(dkey, 16))
    mk = lambda shape: jax.random.normal(next(ks), shape, jnp.float32)

    r1, r2, r3, r4 = [mk((T, B, ROBERTA_DIM)) for _ in range(4)]
    x4, x5, x6 = [mk((T, B, CSK_DIM)) for _ in range(3)]
    o1, o2, o3 = [mk((T, B, CSK_DIM)) for _ in range(3)]

    lengths = jnp.array([T, T - 2], jnp.int32)
    umask = (jnp.arange(T)[None, :] < lengths[:, None]).astype(jnp.float32)  # (B, T)

    speaker = jax.random.randint(next(ks), (B, T), 0, 2)
    valid = umask[:, :, None] * umask[:, None, :]
    causal = (jnp.arange(T)[None, :, None]
              >= jnp.arange(T)[None, None, :]).astype(jnp.float32)
    same = (speaker[:, :, None] == speaker[:, None, :]).astype(jnp.float32)
    intra_c_e_mask = valid * causal * same          # (B, T, T)
    inter_c_e_mask = valid * causal * (1.0 - same)  # (B, T, T)

    fwd = jax.jit(functools.partial(cauain_forward, params))
    out = fwd(r1, r2, r3, r4, x4, x5, x6, o1, o2, o3,
              umask, intra_c_e_mask, inter_c_e_mask)
    jax.block_until_ready(out)
    assert out.shape == (T, B, N_CLASSES), out.shape
    assert bool(jnp.all(jnp.isfinite(out)))
    print("KERNEL_OK")
</pallas_src>

<mosaic_0001>
module attributes {stable_mosaic.version = 11 : i64} {
  func.func @fused_cauain_kernel(%arg0: i32, %arg1: memref<8x2x32xf32, #tpu.memory_space<vmem>>, %arg2: memref<8x2x32xf32, #tpu.memory_space<vmem>>, %arg3: memref<8x2x32xf32, #tpu.memory_space<vmem>>, %arg4: memref<8x2x32xf32, #tpu.memory_space<vmem>>, %arg5: memref<8x2x16xf32, #tpu.memory_space<vmem>>, %arg6: memref<8x2x16xf32, #tpu.memory_space<vmem>>, %arg7: memref<8x2x16xf32, #tpu.memory_space<vmem>>, %arg8: memref<8x2x16xf32, #tpu.memory_space<vmem>>, %arg9: memref<8x2x16xf32, #tpu.memory_space<vmem>>, %arg10: memref<8x2x16xf32, #tpu.memory_space<vmem>>, %arg11: memref<2x8xf32, #tpu.memory_space<vmem>>, %arg12: memref<2x8x8xf32, #tpu.memory_space<vmem>>, %arg13: memref<2x8x8xf32, #tpu.memory_space<vmem>>, %arg14: memref<1x32xf32, #tpu.memory_space<vmem>>, %arg15: memref<1x32xf32, #tpu.memory_space<vmem>>, %arg16: memref<32x32xf32, #tpu.memory_space<vmem>>, %arg17: memref<1x32xf32, #tpu.memory_space<vmem>>, %arg18: memref<32x128xf32, #tpu.memory_space<vmem>>, %arg19: memref<32x128xf32, #tpu.memory_space<vmem>>, %arg20: memref<1x128xf32, #tpu.memory_space<vmem>>, %arg21: memref<32x128xf32, #tpu.memory_space<vmem>>, %arg22: memref<32x128xf32, #tpu.memory_space<vmem>>, %arg23: memref<1x128xf32, #tpu.memory_space<vmem>>, %arg24: memref<48x64xf32, #tpu.memory_space<vmem>>, %arg25: memref<1x64xf32, #tpu.memory_space<vmem>>, %arg26: memref<48x64xf32, #tpu.memory_space<vmem>>, %arg27: memref<1x64xf32, #tpu.memory_space<vmem>>, %arg28: memref<64x192xf32, #tpu.memory_space<vmem>>, %arg29: memref<1x192xf32, #tpu.memory_space<vmem>>, %arg30: memref<64x64xf32, #tpu.memory_space<vmem>>, %arg31: memref<1x64xf32, #tpu.memory_space<vmem>>, %arg32: memref<128x32xf32, #tpu.memory_space<vmem>>, %arg33: memref<1x32xf32, #tpu.memory_space<vmem>>, %arg34: memref<32x32xf32, #tpu.memory_space<vmem>>, %arg35: memref<1x32xf32, #tpu.memory_space<vmem>>, %arg36: memref<32x7xf32, #tpu.memory_space<vmem>>, %arg37: memref<1x7xf32, #tpu.memory_space<vmem>>, %arg38: memref<1x8x7xf32, #tpu.memory_space<vmem>>) attributes {dimension_semantics = [#tpu.dimension_semantics<parallel>], iteration_bounds = array<i64: 2>, scalar_prefetch = 0 : i64, scratch_operands = 0 : i64, tpu.core_type = #tpu.core_type<tc>, window_params = [{pipeline_mode = #tpu.pipeline_mode<synchronous>, transform_indices = @transform_0, window_bounds = array<i64: 8, 2, 32>}, {pipeline_mode = #tpu.pipeline_mode<synchronous>, transform_indices = @transform_1, window_bounds = array<i64: 8, 2, 32>}, {pipeline_mode = #tpu.pipeline_mode<synchronous>, transform_indices = @transform_2, window_bounds = array<i64: 8, 2, 32>}, {pipeline_mode = #tpu.pipeline_mode<synchronous>, transform_indices = @transform_3, window_bounds = array<i64: 8, 2, 32>}, {pipeline_mode = #tpu.pipeline_mode<synchronous>, transform_indices = @transform_4, window_bounds = array<i64: 8, 2, 16>}, {pipeline_mode = #tpu.pipeline_mode<synchronous>, transform_indices = @transform_5, window_bounds = array<i64: 8, 2, 16>}, {pipeline_mode = #tpu.pipeline_mode<synchronous>, transform_indices = @transform_6, window_bounds = array<i64: 8, 2, 16>}, {pipeline_mode = #tpu.pipeline_mode<synchronous>, transform_indices = @transform_7, window_bounds = array<i64: 8, 2, 16>}, {pipeline_mode = #tpu.pipeline_mode<synchronous>, transform_indices = @transform_8, window_bounds = array<i64: 8, 2, 16>}, {pipeline_mode = #tpu.pipeline_mode<synchronous>, transform_indices = @transform_9, window_bounds = array<i64: 8, 2, 16>}, {pipeline_mode = #tpu.pipeline_mode<synchronous>, transform_indices = @transform_10, window_bounds = array<i64: 2, 8>}, {pipeline_mode = #tpu.pipeline_mode<synchronous>, transform_indices = @transform_11, window_bounds = array<i64: 2, 8, 8>}, {pipeline_mode = #tpu.pipeline_mode<synchronous>, transform_indices = @transform_12, window_bounds = array<i64: 2, 8, 8>}, {pipeline_mode = #tpu.pipeline_mode<synchronous>, transform_indices = @transform_13, window_bounds = array<i64: 1, 32>}, {pipeline_mode = #tpu.pipeline_mode<synchronous>, transform_indices = @transform_14, window_bounds = array<i64: 1, 32>}, {pipeline_mode = #tpu.pipeline_mode<synchronous>, transform_indices = @transform_15, window_bounds = array<i64: 32, 32>}, {pipeline_mode = #tpu.pipeline_mode<synchronous>, transform_indices = @transform_16, window_bounds = array<i64: 1, 32>}, {pipeline_mode = #tpu.pipeline_mode<synchronous>, transform_indices = @transform_17, window_bounds = array<i64: 32, 128>}, {pipeline_mode = #tpu.pipeline_mode<synchronous>, transform_indices = @transform_18, window_bounds = array<i64: 32, 128>}, {pipeline_mode = #tpu.pipeline_mode<synchronous>, transform_indices = @transform_19, window_bounds = array<i64: 1, 128>}, {pipeline_mode = #tpu.pipeline_mode<synchronous>, transform_indices = @transform_20, window_bounds = array<i64: 32, 128>}, {pipeline_mode = #tpu.pipeline_mode<synchronous>, transform_indices = @transform_21, window_bounds = array<i64: 32, 128>}, {pipeline_mode = #tpu.pipeline_mode<synchronous>, transform_indices = @transform_22, window_bounds = array<i64: 1, 128>}, {pipeline_mode = #tpu.pipeline_mode<synchronous>, transform_indices = @transform_23, window_bounds = array<i64: 48, 64>}, {pipeline_mode = #tpu.pipeline_mode<synchronous>, transform_indices = @transform_24, window_bounds = array<i64: 1, 64>}, {pipeline_mode = #tpu.pipeline_mode<synchronous>, transform_indices = @transform_25, window_bounds = array<i64: 48, 64>}, {pipeline_mode = #tpu.pipeline_mode<synchronous>, transform_indices = @transform_26, window_bounds = array<i64: 1, 64>}, {pipeline_mode = #tpu.pipeline_mode<synchronous>, transform_indices = @transform_27, window_bounds = array<i64: 64, 192>}, {pipeline_mode = #tpu.pipeline_mode<synchronous>, transform_indices = @transform_28, window_bounds = array<i64: 1, 192>}, {pipeline_mode = #tpu.pipeline_mode<synchronous>, transform_indices = @transform_29, window_bounds = array<i64: 64, 64>}, {pipeline_mode = #tpu.pipeline_mode<synchronous>, transform_indices = @transform_30, window_bounds = array<i64: 1, 64>}, {pipeline_mode = #tpu.pipeline_mode<synchronous>, transform_indices = @transform_31, window_bounds = array<i64: 128, 32>}, {pipeline_mode = #tpu.pipeline_mode<synchronous>, transform_indices = @transform_32, window_bounds = array<i64: 1, 32>}, {pipeline_mode = #tpu.pipeline_mode<synchronous>, transform_indices = @transform_33, window_bounds = array<i64: 32, 32>}, {pipeline_mode = #tpu.pipeline_mode<synchronous>, transform_indices = @transform_34, window_bounds = array<i64: 1, 32>}, {pipeline_mode = #tpu.pipeline_mode<synchronous>, transform_indices = @transform_35, window_bounds = array<i64: 32, 7>}, {pipeline_mode = #tpu.pipeline_mode<synchronous>, transform_indices = @transform_36, window_bounds = array<i64: 1, 7>}, {transform_indices = @transform_37, window_bounds = array<i64: 1, 8, 7>}]} {
    %c0 = arith.constant 0 : index
    %c0_0 = arith.constant 0 : index
    %c0_1 = arith.constant 0 : index
    %0 = vector.load %arg1[%c0, %c0_0, %c0_1] : memref<8x2x32xf32, #tpu.memory_space<vmem>>, vector<8x2x32xf32>
    %1 = vector.extract_strided_slice %0 {offsets = [0, 0, 0], sizes = [8, 1, 32], strides = [1, 1, 1]} : vector<8x2x32xf32> to vector<8x1x32xf32>
    %2 = vector.shape_cast %1 : vector<8x1x32xf32> to vector<8x32xf32>
    %c1_i32 = arith.constant 1 : i32
    %3 = arith.cmpi eq, %arg0, %c1_i32 : i32
    %4 = vector.extract_strided_slice %0 {offsets = [0, 1, 0], sizes = [8, 1, 32], strides = [1, 1, 1]} : vector<8x2x32xf32> to vector<8x1x32xf32>
    %5 = vector.shape_cast %4 : vector<8x1x32xf32> to vector<8x32xf32>
    %6 = arith.select %3, %5, %2 : vector<8x32xf32>
    %c0_2 = arith.constant 0 : index
    %c0_3 = arith.constant 0 : index
    %c0_4 = arith.constant 0 : index
    %7 = vector.load %arg2[%c0_2, %c0_3, %c0_4] : memref<8x2x32xf32, #tpu.memory_space<vmem>>, vector<8x2x32xf32>
    %8 = vector.extract_strided_slice %7 {offsets = [0, 0, 0], sizes = [8, 1, 32], strides = [1, 1, 1]} : vector<8x2x32xf32> to vector<8x1x32xf32>
    %9 = vector.shape_cast %8 : vector<8x1x32xf32> to vector<8x32xf32>
    %c1_i32_5 = arith.constant 1 : i32
    %10 = arith.cmpi eq, %arg0, %c1_i32_5 : i32
    %11 = vector.extract_strided_slice %7 {offsets = [0, 1, 0], sizes = [8, 1, 32], strides = [1, 1, 1]} : vector<8x2x32xf32> to vector<8x1x32xf32>
    %12 = vector.shape_cast %11 : vector<8x1x32xf32> to vector<8x32xf32>
    %13 = arith.select %10, %12, %9 : vector<8x32xf32>
    %14 = arith.addf %6, %13 : vector<8x32xf32>
    %c0_6 = arith.constant 0 : index
    %c0_7 = arith.constant 0 : index
    %c0_8 = arith.constant 0 : index
    %15 = vector.load %arg3[%c0_6, %c0_7, %c0_8] : memref<8x2x32xf32, #tpu.memory_space<vmem>>, vector<8x2x32xf32>
    %16 = vector.extract_strided_slice %15 {offsets = [0, 0, 0], sizes = [8, 1, 32], strides = [1, 1, 1]} : vector<8x2x32xf32> to vector<8x1x32xf32>
    %17 = vector.shape_cast %16 : vector<8x1x32xf32> to vector<8x32xf32>
    %c1_i32_9 = arith.constant 1 : i32
    %18 = arith.cmpi eq, %arg0, %c1_i32_9 : i32
    %19 = vector.extract_strided_slice %15 {offsets = [0, 1, 0], sizes = [8, 1, 32], strides = [1, 1, 1]} : vector<8x2x32xf32> to vector<8x1x32xf32>
    %20 = vector.shape_cast %19 : vector<8x1x32xf32> to vector<8x32xf32>
    %21 = arith.select %18, %20, %17 : vector<8x32xf32>
    %22 = arith.addf %14, %21 : vector<8x32xf32>
    %c0_10 = arith.constant 0 : index
    %c0_11 = arith.constant 0 : index
    %c0_12 = arith.constant 0 : index
    %23 = vector.load %arg4[%c0_10, %c0_11, %c0_12] : memref<8x2x32xf32, #tpu.memory_space<vmem>>, vector<8x2x32xf32>
    %24 = vector.extract_strided_slice %23 {offsets = [0, 0, 0], sizes = [8, 1, 32], strides = [1, 1, 1]} : vector<8x2x32xf32> to vector<8x1x32xf32>
    %25 = vector.shape_cast %24 : vector<8x1x32xf32> to vector<8x32xf32>
    %c1_i32_13 = arith.constant 1 : i32
    %26 = arith.cmpi eq, %arg0, %c1_i32_13 : i32
    %27 = vector.extract_strided_slice %23 {offsets = [0, 1, 0], sizes = [8, 1, 32], strides = [1, 1, 1]} : vector<8x2x32xf32> to vector<8x1x32xf32>
    %28 = vector.shape_cast %27 : vector<8x1x32xf32> to vector<8x32xf32>
    %29 = arith.select %26, %28, %25 : vector<8x32xf32>
    %30 = arith.addf %22, %29 : vector<8x32xf32>
    %cst = arith.constant 2.500000e-01 : f32
    %31 = vector.broadcast %cst : f32 to vector<8x32xf32>
    %32 = arith.mulf %30, %31 : vector<8x32xf32>
    %cst_14 = arith.constant dense<0.000000e+00> : vector<8xf32>
    %33 = vector.multi_reduction <add>, %32, %cst_14 [1] : vector<8x32xf32> to vector<8xf32>
    %34 = vector.shape_cast %33 : vector<8xf32> to vector<8x1xf32>
    %cst_15 = arith.constant 3.200000e+01 : f32
    %35 = vector.broadcast %cst_15 : f32 to vector<8x1xf32>
    %36 = arith.divf %34, %35 : vector<8x1xf32>
    %37 = vector.broadcast %36 : vector<8x1xf32> to vector<8x32xf32>
    %38 = arith.subf %32, %37 : vector<8x32xf32>
    %39 = arith.mulf %38, %38 : vector<8x32xf32>
    %cst_16 = arith.constant dense<0.000000e+00> : vector<8xf32>
    %40 = vector.multi_reduction <add>, %39, %cst_16 [1] : vector<8x32xf32> to vector<8xf32>
    %41 = vector.shape_cast %40 : vector<8xf32> to vector<8x1xf32>
    %cst_17 = arith.constant 3.200000e+01 : f32
    %42 = vector.broadcast %cst_17 : f32 to vector<8x1xf32>
    %43 = arith.divf %41, %42 : vector<8x1xf32>
    %44 = vector.broadcast %36 : vector<8x1xf32> to vector<8x32xf32>
    %45 = arith.subf %32, %44 : vector<8x32xf32>
    %cst_18 = arith.constant 9.99999974E-6 : f32
    %46 = vector.broadcast %cst_18 : f32 to vector<8x1xf32>
    %47 = arith.addf %43, %46 : vector<8x1xf32>
    %48 = math.rsqrt %47 : vector<8x1xf32>
    %49 = vector.broadcast %48 : vector<8x1xf32> to vector<8x32xf32>
    %50 = arith.mulf %45, %49 : vector<8x32xf32>
    %c0_19 = arith.constant 0 : index
    %c0_20 = arith.constant 0 : index
    %51 = vector.load %arg14[%c0_19, %c0_20] : memref<1x32xf32, #tpu.memory_space<vmem>>, vector<1x32xf32>
    %52 = vector.broadcast %51 : vector<1x32xf32> to vector<8x32xf32>
    %53 = arith.mulf %50, %52 : vector<8x32xf32>
    %c0_21 = arith.constant 0 : index
    %c0_22 = arith.constant 0 : index
    %54 = vector.load %arg15[%c0_21, %c0_22] : memref<1x32xf32, #tpu.memory_space<vmem>>, vector<1x32xf32>
    %55 = vector.broadcast %54 : vector<1x32xf32> to vector<8x32xf32>
    %56 = arith.addf %53, %55 : vector<8x32xf32>
    %c0_23 = arith.constant 0 : index
    %c0_24 = arith.constant 0 : index
    %57 = vector.load %arg16[%c0_23, %c0_24] : memref<32x32xf32, #tpu.memory_space<vmem>>, vector<32x32xf32>
    %cst_25 = arith.constant dense<0.000000e+00> : vector<8x32xf32>
    %58 = tpu.matmul %56, %57, %cst_25 {dimension_numbers = #tpu.dot_dimension_numbers<[1], [0], [0], [1], [0, 0, 1, 1], [], []>} : vector<8x32xf32>, vector<32x32xf32>, vector<8x32xf32> -> vector<8x32xf32>
    %c0_26 = arith.constant 0 : index
    %c0_27 = arith.constant 0 : index
    %59 = vector.load %arg17[%c0_26, %c0_27] : memref<1x32xf32, #tpu.memory_space<vmem>>, vector<1x32xf32>
    %60 = vector.broadcast %59 : vector<1x32xf32> to vector<8x32xf32>
    %61 = arith.addf %58, %60 : vector<8x32xf32>
    %c0_28 = arith.constant 0 : index
    %c0_29 = arith.constant 0 : index
    %62 = vector.load %arg11[%c0_28, %c0_29] : memref<2x8xf32, #tpu.memory_space<vmem>>, vector<2x8xf32>
    %63 = vector.extract_strided_slice %62 {offsets = [0, 0], sizes = [1, 8], strides = [1, 1]} : vector<2x8xf32> to vector<1x8xf32>
    %c1_i32_30 = arith.constant 1 : i32
    %64 = arith.cmpi eq, %arg0, %c1_i32_30 : i32
    %65 = vector.extract_strided_slice %62 {offsets = [1, 0], sizes = [1, 8], strides = [1, 1]} : vector<2x8xf32> to vector<1x8xf32>
    %66 = arith.select %64, %65, %63 : vector<1x8xf32>
    %cst_31 = arith.constant 0.000000e+00 : f32
    %67 = vector.broadcast %cst_31 : f32 to vector<1x8xf32>
    %68 = arith.cmpf one, %66, %67 : vector<1x8xf32>
    %69 = arith.extui %68 : vector<1x8xi1> to vector<1x8xi32>
    %70 = arith.sitofp %69 : vector<1x8xi32> to vector<1x8xf32>
    %c0_32 = arith.constant 0 : index
    %c0_33 = arith.constant 0 : index
    %71 = vector.load %arg18[%c0_32, %c0_33] : memref<32x128xf32, #tpu.memory_space<vmem>>, vector<32x128xf32>
    %c0_34 = arith.constant 0 : index
    %c0_35 = arith.constant 0 : index
    %72 = vector.load %arg19[%c0_34, %c0_35] : memref<32x128xf32, #tpu.memory_space<vmem>>, vector<32x128xf32>
    %c0_36 = arith.constant 0 : index
    %c0_37 = arith.constant 0 : index
    %73 = vector.load %arg20[%c0_36, %c0_37] : memref<1x128xf32, #tpu.memory_space<vmem>>, vector<1x128xf32>
    %c0_38 = arith.constant 0 : index
    %c0_39 = arith.constant 0 : index
    %74 = vector.load %arg21[%c0_38, %c0_39] : memref<32x128xf32, #tpu.memory_space<vmem>>, vector<32x128xf32>
    %c0_40 = arith.constant 0 : index
    %c0_41 = arith.constant 0 : index
    %75 = vector.load %arg22[%c0_40, %c0_41] : memref<32x128xf32, #tpu.memory_space<vmem>>, vector<32x128xf32>
    %c0_42 = arith.constant 0 : index
    %c0_43 = arith.constant 0 : index
    %76 = vector.load %arg23[%c0_42, %c0_43] : memref<1x128xf32, #tpu.memory_space<vmem>>, vector<1x128xf32>
    %cst_44 = arith.constant 0.000000e+00 : f32
    %77 = vector.broadcast %cst_44 : f32 to vector<1x32xf32>
    %78 = vector.extract_strided_slice %70 {offsets = [0, 0], sizes = [1, 1], strides = [1, 1]} : vector<1x8xf32> to vector<1x1xf32>
    %79 = vector.extract_strided_slice %61 {offsets = [0, 0], sizes = [1, 32], strides = [1, 1]} : vector<8x32xf32> to vector<1x32xf32>
    %cst_45 = arith.constant dense<0.000000e+00> : vector<1x128xf32>
    %80 = tpu.matmul %79, %71, %cst_45 {dimension_numbers = #tpu.dot_dimension_numbers<[1], [0], [0], [1], [0, 0, 1, 1], [], []>} : vector<1x32xf32>, vector<32x128xf32>, vector<1x128xf32> -> vector<1x128xf32>
    %cst_46 = arith.constant dense<0.000000e+00> : vector<1x128xf32>
    %81 = tpu.matmul %77, %72, %cst_46 {dimension_numbers = #tpu.dot_dimension_numbers<[1], [0], [0], [1], [0, 0, 1, 1], [], []>} : vector<1x32xf32>, vector<32x128xf32>, vector<1x128xf32> -> vector<1x128xf32>
    %82 = arith.addf %80, %81 : vector<1x128xf32>
    %83 = arith.addf %82, %73 : vector<1x128xf32>
    %84 = vector.extract_strided_slice %83 {offsets = [0, 0], sizes = [1, 32], strides = [1, 1]} : vector<1x128xf32> to vector<1x32xf32>
    %85 = arith.negf %84 : vector<1x32xf32>
    %86 = math.exp %85 : vector<1x32xf32>
    %cst_47 = arith.constant 1.000000e+00 : f32
    %87 = vector.broadcast %cst_47 : f32 to vector<1x32xf32>
    %88 = arith.addf %87, %86 : vector<1x32xf32>
    %89 = arith.divf %87, %88 : vector<1x32xf32>
    %90 = vector.extract_strided_slice %83 {offsets = [0, 32], sizes = [1, 32], strides = [1, 1]} : vector<1x128xf32> to vector<1x32xf32>
    %91 = arith.negf %90 : vector<1x32xf32>
    %92 = math.exp %91 : vector<1x32xf32>
    %cst_48 = arith.constant 1.000000e+00 : f32
    %93 = vector.broadcast %cst_48 : f32 to vector<1x32xf32>
    %94 = arith.addf %93, %92 : vector<1x32xf32>
    %95 = arith.divf %93, %94 : vector<1x32xf32>
    %96 = vector.extract_strided_slice %83 {offsets = [0, 64], sizes = [1, 32], strides = [1, 1]} : vector<1x128xf32> to vector<1x32xf32>
    %97 = math.tanh %96 : vector<1x32xf32>
    %98 = vector.extract_strided_slice %83 {offsets = [0, 96], sizes = [1, 32], strides = [1, 1]} : vector<1x128xf32> to vector<1x32xf32>
    %99 = arith.negf %98 : vector<1x32xf32>
    %100 = math.exp %99 : vector<1x32xf32>
    %cst_49 = arith.constant 1.000000e+00 : f32
    %101 = vector.broadcast %cst_49 : f32 to vector<1x32xf32>
    %102 = arith.addf %101, %100 : vector<1x32xf32>
    %103 = arith.divf %101, %102 : vector<1x32xf32>
    %104 = arith.mulf %95, %77 : vector<1x32xf32>
    %105 = arith.mulf %89, %97 : vector<1x32xf32>
    %106 = arith.addf %104, %105 : vector<1x32xf32>
    %107 = math.tanh %106 : vector<1x32xf32>
    %108 = arith.mulf %103, %107 : vector<1x32xf32>
    %109 = vector.broadcast %78 : vector<1x1xf32> to vector<1x32xf32>
    %110 = arith.mulf %109, %108 : vector<1x32xf32>
    %111 = vector.broadcast %78 : vector<1x1xf32> to vector<1x32xf32>
    %112 = arith.mulf %111, %108 : vector<1x32xf32>
    %cst_50 = arith.constant 1.000000e+00 : f32
    %113 = vector.broadcast %cst_50 : f32 to vector<1x1xf32>
    %114 = arith.subf %113, %78 : vector<1x1xf32>
    %115 = vector.broadcast %114 : vector<1x1xf32> to vector<1x32xf32>
    %116 = arith.mulf %115, %77 : vector<1x32xf32>
    %117 = arith.addf %112, %116 : vector<1x32xf32>
    %118 = vector.broadcast %78 : vector<1x1xf32> to vector<1x32xf32>
    %119 = arith.mulf %118, %106 : vector<1x32xf32>
    %cst_51 = arith.constant 1.000000e+00 : f32
    %120 = vector.broadcast %cst_51 : f32 to vector<1x1xf32>
    %121 = arith.subf %120, %78 : vector<1x1xf32>
    %122 = vector.broadcast %121 : vector<1x1xf32> to vector<1x32xf32>
    %123 = arith.mulf %122, %77 : vector<1x32xf32>
    %124 = arith.addf %119, %123 : vector<1x32xf32>
    %125 = vector.extract_strided_slice %70 {offsets = [0, 7], sizes = [1, 1], strides = [1, 1]} : vector<1x8xf32> to vector<1x1xf32>
    %126 = vector.extract_strided_slice %61 {offsets = [7, 0], sizes = [1, 32], strides = [1, 1]} : vector<8x32xf32> to vector<1x32xf32>
    %cst_52 = arith.constant dense<0.000000e+00> : vector<1x128xf32>
    %127 = tpu.matmul %126, %74, %cst_52 {dimension_numbers = #tpu.dot_dimension_numbers<[1], [0], [0], [1], [0, 0, 1, 1], [], []>} : vector<1x32xf32>, vector<32x128xf32>, vector<1x128xf32> -> vector<1x128xf32>
    %cst_53 = arith.constant dense<0.000000e+00> : vector<1x128xf32>
    %128 = tpu.matmul %77, %75, %cst_53 {dimension_numbers = #tpu.dot_dimension_numbers<[1], [0], [0], [1], [0, 0, 1, 1], [], []>} : vector<1x32xf32>, vector<32x128xf32>, vector<1x128xf32> -> vector<1x128xf32>
    %129 = arith.addf %127, %128 : vector<1x128xf32>
    %130 = arith.addf %129, %76 : vector<1x128xf32>
    %131 = vector.extract_strided_slice %130 {offsets = [0, 0], sizes = [1, 32], strides = [1, 1]} : vector<1x128xf32> to vector<1x32xf32>
    %132 = arith.negf %131 : vector<1x32xf32>
    %133 = math.exp %132 : vector<1x32xf32>
    %cst_54 = arith.constant 1.000000e+00 : f32
    %134 = vector.broadcast %cst_54 : f32 to vector<1x32xf32>
    %135 = arith.addf %134, %133 : vector<1x32xf32>
    %136 = arith.divf %134, %135 : vector<1x32xf32>
    %137 = vector.extract_strided_slice %130 {offsets = [0, 32], sizes = [1, 32], strides = [1, 1]} : vector<1x128xf32> to vector<1x32xf32>
    %138 = arith.negf %137 : vector<1x32xf32>
    %139 = math.exp %138 : vector<1x32xf32>
    %cst_55 = arith.constant 1.000000e+00 : f32
    %140 = vector.broadcast %cst_55 : f32 to vector<1x32xf32>
    %141 = arith.addf %140, %139 : vector<1x32xf32>
    %142 = arith.divf %140, %141 : vector<1x32xf32>
    %143 = vector.extract_strided_slice %130 {offsets = [0, 64], sizes = [1, 32], strides = [1, 1]} : vector<1x128xf32> to vector<1x32xf32>
    %144 = math.tanh %143 : vector<1x32xf32>
    %145 = vector.extract_strided_slice %130 {offsets = [0, 96], sizes = [1, 32], strides = [1, 1]} : vector<1x128xf32> to vector<1x32xf32>
    %146 = arith.negf %145 : vector<1x32xf32>
    %147 = math.exp %146 : vector<1x32xf32>
    %cst_56 = arith.constant 1.000000e+00 : f32
    %148 = vector.broadcast %cst_56 : f32 to vector<1x32xf32>
    %149 = arith.addf %148, %147 : vector<1x32xf32>
    %150 = arith.divf %148, %149 : vector<1x32xf32>
    %151 = arith.mulf %142, %77 : vector<1x32xf32>
    %152 = arith.mulf %136, %144 : vector<1x32xf32>
    %153 = arith.addf %151, %152 : vector<1x32xf32>
    %154 = math.tanh %153 : vector<1x32xf32>
    %155 = arith.mulf %150, %154 : vector<1x32xf32>
    %156 = vector.broadcast %125 : vector<1x1xf32> to vector<1x32xf32>
    %157 = arith.mulf %156, %155 : vector<1x32xf32>
    %158 = vector.broadcast %125 : vector<1x1xf32> to vector<1x32xf32>
    %159 = arith.mulf %158, %155 : vector<1x32xf32>
    %cst_57 = arith.constant 1.000000e+00 : f32
    %160 = vector.broadcast %cst_57 : f32 to vector<1x1xf32>
    %161 = arith.subf %160, %125 : vector<1x1xf32>
    %162 = vector.broadcast %161 : vector<1x1xf32> to vector<1x32xf32>
    %163 = arith.mulf %162, %77 : vector<1x32xf32>
    %164 = arith.addf %159, %163 : vector<1x32xf32>
    %165 = vector.broadcast %125 : vector<1x1xf32> to vector<1x32xf32>
    %166 = arith.mulf %165, %153 : vector<1x32xf32>
    %cst_58 = arith.constant 1.000000e+00 : f32
    %167 = vector.broadcast %cst_58 : f32 to vector<1x1xf32>
    %168 = arith.subf %167, %125 : vector<1x1xf32>
    %169 = vector.broadcast %168 : vector<1x1xf32> to vector<1x32xf32>
    %170 = arith.mulf %169, %77 : vector<1x32xf32>
    %171 = arith.addf %166, %170 : vector<1x32xf32>
    %172 = vector.extract_strided_slice %70 {offsets = [0, 1], sizes = [1, 1], strides = [1, 1]} : vector<1x8xf32> to vector<1x1xf32>
    %173 = vector.extract_strided_slice %61 {offsets = [1, 0], sizes = [1, 32], strides = [1, 1]} : vector<8x32xf32> to vector<1x32xf32>
    %cst_59 = arith.constant dense<0.000000e+00> : vector<1x128xf32>
    %174 = tpu.matmul %173, %71, %cst_59 {dimension_numbers = #tpu.dot_dimension_numbers<[1], [0], [0], [1], [0, 0, 1, 1], [], []>} : vector<1x32xf32>, vector<32x128xf32>, vector<1x128xf32> -> vector<1x128xf32>
    %cst_60 = arith.constant dense<0.000000e+00> : vector<1x128xf32>
    %175 = tpu.matmul %117, %72, %cst_60 {dimension_numbers = #tpu.dot_dimension_numbers<[1], [0], [0], [1], [0, 0, 1, 1], [], []>} : vector<1x32xf32>, vector<32x128xf32>, vector<1x128xf32> -> vector<1x128xf32>
    %176 = arith.addf %174, %175 : vector<1x128xf32>
    %177 = arith.addf %176, %73 : vector<1x128xf32>
    %178 = vector.extract_strided_slice %177 {offsets = [0, 0], sizes = [1, 32], strides = [1, 1]} : vector<1x128xf32> to vector<1x32xf32>
    %179 = arith.negf %178 : vector<1x32xf32>
    %180 = math.exp %179 : vector<1x32xf32>
    %cst_61 = arith.constant 1.000000e+00 : f32
    %181 = vector.broadcast %cst_61 : f32 to vector<1x32xf32>
    %182 = arith.addf %181, %180 : vector<1x32xf32>
    %183 = arith.divf %181, %182 : vector<1x32xf32>
    %184 = vector.extract_strided_slice %177 {offsets = [0, 32], sizes = [1, 32], strides = [1, 1]} : vector<1x128xf32> to vector<1x32xf32>
    %185 = arith.negf %184 : vector<1x32xf32>
    %186 = math.exp %185 : vector<1x32xf32>
    %cst_62 = arith.constant 1.000000e+00 : f32
    %187 = vector.broadcast %cst_62 : f32 to vector<1x32xf32>
    %188 = arith.addf %187, %186 : vector<1x32xf32>
    %189 = arith.divf %187, %188 : vector<1x32xf32>
    %190 = vector.extract_strided_slice %177 {offsets = [0, 64], sizes = [1, 32], strides = [1, 1]} : vector<1x128xf32> to vector<1x32xf32>
    %191 = math.tanh %190 : vector<1x32xf32>
    %192 = vector.extract_strided_slice %177 {offsets = [0, 96], sizes = [1, 32], strides = [1, 1]} : vector<1x128xf32> to vector<1x32xf32>
    %193 = arith.negf %192 : vector<1x32xf32>
    %194 = math.exp %193 : vector<1x32xf32>
    %cst_63 = arith.constant 1.000000e+00 : f32
    %195 = vector.broadcast %cst_63 : f32 to vector<1x32xf32>
    %196 = arith.addf %195, %194 : vector<1x32xf32>
    %197 = arith.divf %195, %196 : vector<1x32xf32>
    %198 = arith.mulf %189, %124 : vector<1x32xf32>
    %199 = arith.mulf %183, %191 : vector<1x32xf32>
    %200 = arith.addf %198, %199 : vector<1x32xf32>
    %201 = math.tanh %200 : vector<1x32xf32>
    %202 = arith.mulf %197, %201 : vector<1x32xf32>
    %203 = vector.broadcast %172 : vector<1x1xf32> to vector<1x32xf32>
    %204 = arith.mulf %203, %202 : vector<1x32xf32>
    %205 = vector.broadcast %172 : vector<1x1xf32> to vector<1x32xf32>
    %206 = arith.mulf %205, %202 : vector<1x32xf32>
    %cst_64 = arith.constant 1.000000e+00 : f32
    %207 = vector.broadcast %cst_64 : f32 to vector<1x1xf32>
    %208 = arith.subf %207, %172 : vector<1x1xf32>
    %209 = vector.broadcast %208 : vector<1x1xf32> to vector<1x32xf32>
    %210 = arith.mulf %209, %117 : vector<1x32xf32>
    %211 = arith.addf %206, %210 : vector<1x32xf32>
    %212 = vector.broadcast %172 : vector<1x1xf32> to vector<1x32xf32>
    %213 = arith.mulf %212, %200 : vector<1x32xf32>
    %cst_65 = arith.constant 1.000000e+00 : f32
    %214 = vector.broadcast %cst_65 : f32 to vector<1x1xf32>
    %215 = arith.subf %214, %172 : vector<1x1xf32>
    %216 = vector.broadcast %215 : vector<1x1xf32> to vector<1x32xf32>
    %217 = arith.mulf %216, %124 : vector<1x32xf32>
    %218 = arith.addf %213, %217 : vector<1x32xf32>
    %219 = vector.extract_strided_slice %70 {offsets = [0, 6], sizes = [1, 1], strides = [1, 1]} : vector<1x8xf32> to vector<1x1xf32>
    %220 = vector.extract_strided_slice %61 {offsets = [6, 0], sizes = [1, 32], strides = [1, 1]} : vector<8x32xf32> to vector<1x32xf32>
    %cst_66 = arith.constant dense<0.000000e+00> : vector<1x128xf32>
    %221 = tpu.matmul %220, %74, %cst_66 {dimension_numbers = #tpu.dot_dimension_numbers<[1], [0], [0], [1], [0, 0, 1, 1], [], []>} : vector<1x32xf32>, vector<32x128xf32>, vector<1x128xf32> -> vector<1x128xf32>
    %cst_67 = arith.constant dense<0.000000e+00> : vector<1x128xf32>
    %222 = tpu.matmul %164, %75, %cst_67 {dimension_numbers = #tpu.dot_dimension_numbers<[1], [0], [0], [1], [0, 0, 1, 1], [], []>} : vector<1x32xf32>, vector<32x128xf32>, vector<1x128xf32> -> vector<1x128xf32>
    %223 = arith.addf %221, %222 : vector<1x128xf32>
    %224 = arith.addf %223, %76 : vector<1x128xf32>
    %225 = vector.extract_strided_slice %224 {offsets = [0, 0], sizes = [1, 32], strides = [1, 1]} : vector<1x128xf32> to vector<1x32xf32>
    %226 = arith.negf %225 : vector<1x32xf32>
    %227 = math.exp %226 : vector<1x32xf32>
    %cst_68 = arith.constant 1.000000e+00 : f32
    %228 = vector.broadcast %cst_68 : f32 to vector<1x32xf32>
    %229 = arith.addf %228, %227 : vector<1x32xf32>
    %230 = arith.divf %228, %229 : vector<1x32xf32>
    %231 = vector.extract_strided_slice %224 {offsets = [0, 32], sizes = [1, 32], strides = [1, 1]} : vector<1x128xf32> to vector<1x32xf32>
    %232 = arith.negf %231 : vector<1x32xf32>
    %233 = math.exp %232 : vector<1x32xf32>
    %cst_69 = arith.constant 1.000000e+00 : f32
    %234 = vector.broadcast %cst_69 : f32 to vector<1x32xf32>
    %235 = arith.addf %234, %233 : vector<1x32xf32>
    %236 = arith.divf %234, %235 : vector<1x32xf32>
    %237 = vector.extract_strided_slice %224 {offsets = [0, 64], sizes = [1, 32], strides = [1, 1]} : vector<1x128xf32> to vector<1x32xf32>
    %238 = math.tanh %237 : vector<1x32xf32>
    %239 = vector.extract_strided_slice %224 {offsets = [0, 96], sizes = [1, 32], strides = [1, 1]} : vector<1x128xf32> to vector<1x32xf32>
    %240 = arith.negf %239 : vector<1x32xf32>
    %241 = math.exp %240 : vector<1x32xf32>
    %cst_70 = arith.constant 1.000000e+00 : f32
    %242 = vector.broadcast %cst_70 : f32 to vector<1x32xf32>
    %243 = arith.addf %242, %241 : vector<1x32xf32>
    %244 = arith.divf %242, %243 : vector<1x32xf32>
    %245 = arith.mulf %236, %171 : vector<1x32xf32>
    %246 = arith.mulf %230, %238 : vector<1x32xf32>
    %247 = arith.addf %245, %246 : vector<1x32xf32>
    %248 = math.tanh %247 : vector<1x32xf32>
    %249 = arith.mulf %244, %248 : vector<1x32xf32>
    %250 = vector.broadcast %219 : vector<1x1xf32> to vector<1x32xf32>
    %251 = arith.mulf %250, %249 : vector<1x32xf32>
    %252 = vector.broadcast %219 : vector<1x1xf32> to vector<1x32xf32>
    %253 = arith.mulf %252, %249 : vector<1x32xf32>
    %cst_71 = arith.constant 1.000000e+00 : f32
    %254 = vector.broadcast %cst_71 : f32 to vector<1x1xf32>
    %255 = arith.subf %254, %219 : vector<1x1xf32>
    %256 = vector.broadcast %255 : vector<1x1xf32> to vector<1x32xf32>
    %257 = arith.mulf %256, %164 : vector<1x32xf32>
    %258 = arith.addf %253, %257 : vector<1x32xf32>
    %259 = vector.broadcast %219 : vector<1x1xf32> to vector<1x32xf32>
    %260 = arith.mulf %259, %247 : vector<1x32xf32>
    %cst_72 = arith.constant 1.000000e+00 : f32
    %261 = vector.broadcast %cst_72 : f32 to vector<1x1xf32>
    %262 = arith.subf %261, %219 : vector<1x1xf32>
    %263 = vector.broadcast %262 : vector<1x1xf32> to vector<1x32xf32>
    %264 = arith.mulf %263, %171 : vector<1x32xf32>
    %265 = arith.addf %260, %264 : vector<1x32xf32>
    %266 = vector.extract_strided_slice %70 {offsets = [0, 2], sizes = [1, 1], strides = [1, 1]} : vector<1x8xf32> to vector<1x1xf32>
    %267 = vector.extract_strided_slice %61 {offsets = [2, 0], sizes = [1, 32], strides = [1, 1]} : vector<8x32xf32> to vector<1x32xf32>
    %cst_73 = arith.constant dense<0.000000e+00> : vector<1x128xf32>
    %268 = tpu.matmul %267, %71, %cst_73 {dimension_numbers = #tpu.dot_dimension_numbers<[1], [0], [0], [1], [0, 0, 1, 1], [], []>} : vector<1x32xf32>, vector<32x128xf32>, vector<1x128xf32> -> vector<1x128xf32>
    %cst_74 = arith.constant dense<0.000000e+00> : vector<1x128xf32>
    %269 = tpu.matmul %211, %72, %cst_74 {dimension_numbers = #tpu.dot_dimension_numbers<[1], [0], [0], [1], [0, 0, 1, 1], [], []>} : vector<1x32xf32>, vector<32x128xf32>, vector<1x128xf32> -> vector<1x128xf32>
    %270 = arith.addf %268, %269 : vector<1x128xf32>
    %271 = arith.addf %270, %73 : vector<1x128xf32>
    %272 = vector.extract_strided_slice %271 {offsets = [0, 0], sizes = [1, 32], strides = [1, 1]} : vector<1x128xf32> to vector<1x32xf32>
    %273 = arith.negf %272 : vector<1x32xf32>
    %274 = math.exp %273 : vector<1x32xf32>
    %cst_75 = arith.constant 1.000000e+00 : f32
    %275 = vector.broadcast %cst_75 : f32 to vector<1x32xf32>
    %276 = arith.addf %275, %274 : vector<1x32xf32>
    %277 = arith.divf %275, %276 : vector<1x32xf32>
    %278 = vector.extract_strided_slice %271 {offsets = [0, 32], sizes = [1, 32], strides = [1, 1]} : vector<1x128xf32> to vector<1x32xf32>
    %279 = arith.negf %278 : vector<1x32xf32>
    %280 = math.exp %279 : vector<1x32xf32>
    %cst_76 = arith.constant 1.000000e+00 : f32
    %281 = vector.broadcast %cst_76 : f32 to vector<1x32xf32>
    %282 = arith.addf %281, %280 : vector<1x32xf32>
    %283 = arith.divf %281, %282 : vector<1x32xf32>
    %284 = vector.extract_strided_slice %271 {offsets = [0, 64], sizes = [1, 32], strides = [1, 1]} : vector<1x128xf32> to vector<1x32xf32>
    %285 = math.tanh %284 : vector<1x32xf32>
    %286 = vector.extract_strided_slice %271 {offsets = [0, 96], sizes = [1, 32], strides = [1, 1]} : vector<1x128xf32> to vector<1x32xf32>
    %287 = arith.negf %286 : vector<1x32xf32>
    %288 = math.exp %287 : vector<1x32xf32>
    %cst_77 = arith.constant 1.000000e+00 : f32
    %289 = vector.broadcast %cst_77 : f32 to vector<1x32xf32>
    %290 = arith.addf %289, %288 : vector<1x32xf32>
    %291 = arith.divf %289, %290 : vector<1x32xf32>
    %292 = arith.mulf %283, %218 : vector<1x32xf32>
    %293 = arith.mulf %277, %285 : vector<1x32xf32>
    %294 = arith.addf %292, %293 : vector<1x32xf32>
    %295 = math.tanh %294 : vector<1x32xf32>
    %296 = arith.mulf %291, %295 : vector<1x32xf32>
    %297 = vector.broadcast %266 : vector<1x1xf32> to vector<1x32xf32>
    %298 = arith.mulf %297, %296 : vector<1x32xf32>
    %299 = vector.broadcast %266 : vector<1x1xf32> to vector<1x32xf32>
    %300 = arith.mulf %299, %296 : vector<1x32xf32>
    %cst_78 = arith.constant 1.000000e+00 : f32
    %301 = vector.broadcast %cst_78 : f32 to vector<1x1xf32>
    %302 = arith.subf %301, %266 : vector<1x1xf32>
    %303 = vector.broadcast %302 : vector<1x1xf32> to vector<1x32xf32>
    %304 = arith.mulf %303, %211 : vector<1x32xf32>
    %305 = arith.addf %300, %304 : vector<1x32xf32>
    %306 = vector.broadcast %266 : vector<1x1xf32> to vector<1x32xf32>
    %307 = arith.mulf %306, %294 : vector<1x32xf32>
    %cst_79 = arith.constant 1.000000e+00 : f32
    %308 = vector.broadcast %cst_79 : f32 to vector<1x1xf32>
    %309 = arith.subf %308, %266 : vector<1x1xf32>
    %310 = vector.broadcast %309 : vector<1x1xf32> to vector<1x32xf32>
    %311 = arith.mulf %310, %218 : vector<1x32xf32>
    %312 = arith.addf %307, %311 : vector<1x32xf32>
    %313 = vector.extract_strided_slice %70 {offsets = [0, 5], sizes = [1, 1], strides = [1, 1]} : vector<1x8xf32> to vector<1x1xf32>
    %314 = vector.extract_strided_slice %61 {offsets = [5, 0], sizes = [1, 32], strides = [1, 1]} : vector<8x32xf32> to vector<1x32xf32>
    %cst_80 = arith.constant dense<0.000000e+00> : vector<1x128xf32>
    %315 = tpu.matmul %314, %74, %cst_80 {dimension_numbers = #tpu.dot_dimension_numbers<[1], [0], [0], [1], [0, 0, 1, 1], [], []>} : vector<1x32xf32>, vector<32x128xf32>, vector<1x128xf32> -> vector<1x128xf32>
    %cst_81 = arith.constant dense<0.000000e+00> : vector<1x128xf32>
    %316 = tpu.matmul %258, %75, %cst_81 {dimension_numbers = #tpu.dot_dimension_numbers<[1], [0], [0], [1], [0, 0, 1, 1], [], []>} : vector<1x32xf32>, vector<32x128xf32>, vector<1x128xf32> -> vector<1x128xf32>
    %317 = arith.addf %315, %316 : vector<1x128xf32>
    %318 = arith.addf %317, %76 : vector<1x128xf32>
    %319 = vector.extract_strided_slice %318 {offsets = [0, 0], sizes = [1, 32], strides = [1, 1]} : vector<1x128xf32> to vector<1x32xf32>
    %320 = arith.negf %319 : vector<1x32xf32>
    %321 = math.exp %320 : vector<1x32xf32>
    %cst_82 = arith.constant 1.000000e+00 : f32
    %322 = vector.broadcast %cst_82 : f32 to vector<1x32xf32>
    %323 = arith.addf %322, %321 : vector<1x32xf32>
    %324 = arith.divf %322, %323 : vector<1x32xf32>
    %325 = vector.extract_strided_slice %318 {offsets = [0, 32], sizes = [1, 32], strides = [1, 1]} : vector<1x128xf32> to vector<1x32xf32>
    %326 = arith.negf %325 : vector<1x32xf32>
    %327 = math.exp %326 : vector<1x32xf32>
    %cst_83 = arith.constant 1.000000e+00 : f32
    %328 = vector.broadcast %cst_83 : f32 to vector<1x32xf32>
    %329 = arith.addf %328, %327 : vector<1x32xf32>
    %330 = arith.divf %328, %329 : vector<1x32xf32>
    %331 = vector.extract_strided_slice %318 {offsets = [0, 64], sizes = [1, 32], strides = [1, 1]} : vector<1x128xf32> to vector<1x32xf32>
    %332 = math.tanh %331 : vector<1x32xf32>
    %333 = vector.extract_strided_slice %318 {offsets = [0, 96], sizes = [1, 32], strides = [1, 1]} : vector<1x128xf32> to vector<1x32xf32>
    %334 = arith.negf %333 : vector<1x32xf32>
    %335 = math.exp %334 : vector<1x32xf32>
    %cst_84 = arith.constant 1.000000e+00 : f32
    %336 = vector.broadcast %cst_84 : f32 to vector<1x32xf32>
    %337 = arith.addf %336, %335 : vector<1x32xf32>
    %338 = arith.divf %336, %337 : vector<1x32xf32>
    %339 = arith.mulf %330, %265 : vector<1x32xf32>
    %340 = arith.mulf %324, %332 : vector<1x32xf32>
    %341 = arith.addf %339, %340 : vector<1x32xf32>
    %342 = math.tanh %341 : vector<1x32xf32>
    %343 = arith.mulf %338, %342 : vector<1x32xf32>
    %344 = vector.broadcast %313 : vector<1x1xf32> to vector<1x32xf32>
    %345 = arith.mulf %344, %343 : vector<1x32xf32>
    %346 = vector.broadcast %313 : vector<1x1xf32> to vector<1x32xf32>
    %347 = arith.mulf %346, %343 : vector<1x32xf32>
    %cst_85 = arith.constant 1.000000e+00 : f32
    %348 = vector.broadcast %cst_85 : f32 to vector<1x1xf32>
    %349 = arith.subf %348, %313 : vector<1x1xf32>
    %350 = vector.broadcast %349 : vector<1x1xf32> to vector<1x32xf32>
    %351 = arith.mulf %350, %258 : vector<1x32xf32>
    %352 = arith.addf %347, %351 : vector<1x32xf32>
    %353 = vector.broadcast %313 : vector<1x1xf32> to vector<1x32xf32>
    %354 = arith.mulf %353, %341 : vector<1x32xf32>
    %cst_86 = arith.constant 1.000000e+00 : f32
    %355 = vector.broadcast %cst_86 : f32 to vector<1x1xf32>
    %356 = arith.subf %355, %313 : vector<1x1xf32>
    %357 = vector.broadcast %356 : vector<1x1xf32> to vector<1x32xf32>
    %358 = arith.mulf %357, %265 : vector<1x32xf32>
    %359 = arith.addf %354, %358 : vector<1x32xf32>
    %360 = vector.extract_strided_slice %70 {offsets = [0, 3], sizes = [1, 1], strides = [1, 1]} : vector<1x8xf32> to vector<1x1xf32>
    %361 = vector.extract_strided_slice %61 {offsets = [3, 0], sizes = [1, 32], strides = [1, 1]} : vector<8x32xf32> to vector<1x32xf32>
    %cst_87 = arith.constant dense<0.000000e+00> : vector<1x128xf32>
    %362 = tpu.matmul %361, %71, %cst_87 {dimension_numbers = #tpu.dot_dimension_numbers<[1], [0], [0], [1], [0, 0, 1, 1], [], []>} : vector<1x32xf32>, vector<32x128xf32>, vector<1x128xf32> -> vector<1x128xf32>
    %cst_88 = arith.constant dense<0.000000e+00> : vector<1x128xf32>
    %363 = tpu.matmul %305, %72, %cst_88 {dimension_numbers = #tpu.dot_dimension_numbers<[1], [0], [0], [1], [0, 0, 1, 1], [], []>} : vector<1x32xf32>, vector<32x128xf32>, vector<1x128xf32> -> vector<1x128xf32>
    %364 = arith.addf %362, %363 : vector<1x128xf32>
    %365 = arith.addf %364, %73 : vector<1x128xf32>
    %366 = vector.extract_strided_slice %365 {offsets = [0, 0], sizes = [1, 32], strides = [1, 1]} : vector<1x128xf32> to vector<1x32xf32>
    %367 = arith.negf %366 : vector<1x32xf32>
    %368 = math.exp %367 : vector<1x32xf32>
    %cst_89 = arith.constant 1.000000e+00 : f32
    %369 = vector.broadcast %cst_89 : f32 to vector<1x32xf32>
    %370 = arith.addf %369, %368 : vector<1x32xf32>
    %371 = arith.divf %369, %370 : vector<1x32xf32>
    %372 = vector.extract_strided_slice %365 {offsets = [0, 32], sizes = [1, 32], strides = [1, 1]} : vector<1x128xf32> to vector<1x32xf32>
    %373 = arith.negf %372 : vector<1x32xf32>
    %374 = math.exp %373 : vector<1x32xf32>
    %cst_90 = arith.constant 1.000000e+00 : f32
    %375 = vector.broadcast %cst_90 : f32 to vector<1x32xf32>
    %376 = arith.addf %375, %374 : vector<1x32xf32>
    %377 = arith.divf %375, %376 : vector<1x32xf32>
    %378 = vector.extract_strided_slice %365 {offsets = [0, 64], sizes = [1, 32], strides = [1, 1]} : vector<1x128xf32> to vector<1x32xf32>
    %379 = math.tanh %378 : vector<1x32xf32>
    %380 = vector.extract_strided_slice %365 {offsets = [0, 96], sizes = [1, 32], strides = [1, 1]} : vector<1x128xf32> to vector<1x32xf32>
    %381 = arith.negf %380 : vector<1x32xf32>
    %382 = math.exp %381 : vector<1x32xf32>
    %cst_91 = arith.constant 1.000000e+00 : f32
    %383 = vector.broadcast %cst_91 : f32 to vector<1x32xf32>
    %384 = arith.addf %383, %382 : vector<1x32xf32>
    %385 = arith.divf %383, %384 : vector<1x32xf32>
    %386 = arith.mulf %377, %312 : vector<1x32xf32>
    %387 = arith.mulf %371, %379 : vector<1x32xf32>
    %388 = arith.addf %386, %387 : vector<1x32xf32>
    %389 = math.tanh %388 : vector<1x32xf32>
    %390 = arith.mulf %385, %389 : vector<1x32xf32>
    %391 = vector.broadcast %360 : vector<1x1xf32> to vector<1x32xf32>
    %392 = arith.mulf %391, %390 : vector<1x32xf32>
    %393 = vector.broadcast %360 : vector<1x1xf32> to vector<1x32xf32>
    %394 = arith.mulf %393, %390 : vector<1x32xf32>
    %cst_92 = arith.constant 1.000000e+00 : f32
    %395 = vector.broadcast %cst_92 : f32 to vector<1x1xf32>
    %396 = arith.subf %395, %360 : vector<1x1xf32>
    %397 = vector.broadcast %396 : vector<1x1xf32> to vector<1x32xf32>
    %398 = arith.mulf %397, %305 : vector<1x32xf32>
    %399 = arith.addf %394, %398 : vector<1x32xf32>
    %400 = vector.broadcast %360 : vector<1x1xf32> to vector<1x32xf32>
    %401 = arith.mulf %400, %388 : vector<1x32xf32>
    %cst_93 = arith.constant 1.000000e+00 : f32
    %402 = vector.broadcast %cst_93 : f32 to vector<1x1xf32>
    %403 = arith.subf %402, %360 : vector<1x1xf32>
    %404 = vector.broadcast %403 : vector<1x1xf32> to vector<1x32xf32>
    %405 = arith.mulf %404, %312 : vector<1x32xf32>
    %406 = arith.addf %401, %405 : vector<1x32xf32>
    %407 = vector.extract_strided_slice %70 {offsets = [0, 4], sizes = [1, 1], strides = [1, 1]} : vector<1x8xf32> to vector<1x1xf32>
    %408 = vector.extract_strided_slice %61 {offsets = [4, 0], sizes = [1, 32], strides = [1, 1]} : vector<8x32xf32> to vector<1x32xf32>
    %cst_94 = arith.constant dense<0.000000e+00> : vector<1x128xf32>
    %409 = tpu.matmul %408, %74, %cst_94 {dimension_numbers = #tpu.dot_dimension_numbers<[1], [0], [0], [1], [0, 0, 1, 1], [], []>} : vector<1x32xf32>, vector<32x128xf32>, vector<1x128xf32> -> vector<1x128xf32>
    %cst_95 = arith.constant dense<0.000000e+00> : vector<1x128xf32>
    %410 = tpu.matmul %352, %75, %cst_95 {dimension_numbers = #tpu.dot_dimension_numbers<[1], [0], [0], [1], [0, 0, 1, 1], [], []>} : vector<1x32xf32>, vector<32x128xf32>, vector<1x128xf32> -> vector<1x128xf32>
    %411 = arith.addf %409, %410 : vector<1x128xf32>
    %412 = arith.addf %411, %76 : vector<1x128xf32>
    %413 = vector.extract_strided_slice %412 {offsets = [0, 0], sizes = [1, 32], strides = [1, 1]} : vector<1x128xf32> to vector<1x32xf32>
    %414 = arith.negf %413 : vector<1x32xf32>
    %415 = math.exp %414 : vector<1x32xf32>
    %cst_96 = arith.constant 1.000000e+00 : f32
    %416 = vector.broadcast %cst_96 : f32 to vector<1x32xf32>
    %417 = arith.addf %416, %415 : vector<1x32xf32>
    %418 = arith.divf %416, %417 : vector<1x32xf32>
    %419 = vector.extract_strided_slice %412 {offsets = [0, 32], sizes = [1, 32], strides = [1, 1]} : vector<1x128xf32> to vector<1x32xf32>
    %420 = arith.negf %419 : vector<1x32xf32>
    %421 = math.exp %420 : vector<1x32xf32>
    %cst_97 = arith.constant 1.000000e+00 : f32
    %422 = vector.broadcast %cst_97 : f32 to vector<1x32xf32>
    %423 = arith.addf %422, %421 : vector<1x32xf32>
    %424 = arith.divf %422, %423 : vector<1x32xf32>
    %425 = vector.extract_strided_slice %412 {offsets = [0, 64], sizes = [1, 32], strides = [1, 1]} : vector<1x128xf32> to vector<1x32xf32>
    %426 = math.tanh %425 : vector<1x32xf32>
    %427 = vector.extract_strided_slice %412 {offsets = [0, 96], sizes = [1, 32], strides = [1, 1]} : vector<1x128xf32> to vector<1x32xf32>
    %428 = arith.negf %427 : vector<1x32xf32>
    %429 = math.exp %428 : vector<1x32xf32>
    %cst_98 = arith.constant 1.000000e+00 : f32
    %430 = vector.broadcast %cst_98 : f32 to vector<1x32xf32>
    %431 = arith.addf %430, %429 : vector<1x32xf32>
    %432 = arith.divf %430, %431 : vector<1x32xf32>
    %433 = arith.mulf %424, %359 : vector<1x32xf32>
    %434 = arith.mulf %418, %426 : vector<1x32xf32>
    %435 = arith.addf %433, %434 : vector<1x32xf32>
    %436 = math.tanh %435 : vector<1x32xf32>
    %437 = arith.mulf %432, %436 : vector<1x32xf32>
    %438 = vector.broadcast %407 : vector<1x1xf32> to vector<1x32xf32>
    %439 = arith.mulf %438, %437 : vector<1x32xf32>
    %440 = vector.broadcast %407 : vector<1x1xf32> to vector<1x32xf32>
    %441 = arith.mulf %440, %437 : vector<1x32xf32>
    %cst_99 = arith.constant 1.000000e+00 : f32
    %442 = vector.broadcast %cst_99 : f32 to vector<1x1xf32>
    %443 = arith.subf %442, %407 : vector<1x1xf32>
    %444 = vector.broadcast %443 : vector<1x1xf32> to vector<1x32xf32>
    %445 = arith.mulf %444, %352 : vector<1x32xf32>
    %446 = arith.addf %441, %445 : vector<1x32xf32>
    %447 = vector.broadcast %407 : vector<1x1xf32> to vector<1x32xf32>
    %448 = arith.mulf %447, %435 : vector<1x32xf32>
    %cst_100 = arith.constant 1.000000e+00 : f32
    %449 = vector.broadcast %cst_100 : f32 to vector<1x1xf32>
    %450 = arith.subf %449, %407 : vector<1x1xf32>
    %451 = vector.broadcast %450 : vector<1x1xf32> to vector<1x32xf32>
    %452 = arith.mulf %451, %359 : vector<1x32xf32>
    %453 = arith.addf %448, %452 : vector<1x32xf32>
    %454 = vector.extract_strided_slice %70 {offsets = [0, 4], sizes = [1, 1], strides = [1, 1]} : vector<1x8xf32> to vector<1x1xf32>
    %455 = vector.extract_strided_slice %61 {offsets = [4, 0], sizes = [1, 32], strides = [1, 1]} : vector<8x32xf32> to vector<1x32xf32>
    %cst_101 = arith.constant dense<0.000000e+00> : vector<1x128xf32>
    %456 = tpu.matmul %455, %71, %cst_101 {dimension_numbers = #tpu.dot_dimension_numbers<[1], [0], [0], [1], [0, 0, 1, 1], [], []>} : vector<1x32xf32>, vector<32x128xf32>, vector<1x128xf32> -> vector<1x128xf32>
    %cst_102 = arith.constant dense<0.000000e+00> : vector<1x128xf32>
    %457 = tpu.matmul %399, %72, %cst_102 {dimension_numbers = #tpu.dot_dimension_numbers<[1], [0], [0], [1], [0, 0, 1, 1], [], []>} : vector<1x32xf32>, vector<32x128xf32>, vector<1x128xf32> -> vector<1x128xf32>
    %458 = arith.addf %456, %457 : vector<1x128xf32>
    %459 = arith.addf %458, %73 : vector<1x128xf32>
    %460 = vector.extract_strided_slice %459 {offsets = [0, 0], sizes = [1, 32], strides = [1, 1]} : vector<1x128xf32> to vector<1x32xf32>
    %461 = arith.negf %460 : vector<1x32xf32>
    %462 = math.exp %461 : vector<1x32xf32>
    %cst_103 = arith.constant 1.000000e+00 : f32
    %463 = vector.broadcast %cst_103 : f32 to vector<1x32xf32>
    %464 = arith.addf %463, %462 : vector<1x32xf32>
    %465 = arith.divf %463, %464 : vector<1x32xf32>
    %466 = vector.extract_strided_slice %459 {offsets = [0, 32], sizes = [1, 32], strides = [1, 1]} : vector<1x128xf32> to vector<1x32xf32>
    %467 = arith.negf %466 : vector<1x32xf32>
    %468 = math.exp %467 : vector<1x32xf32>
    %cst_104 = arith.constant 1.000000e+00 : f32
    %469 = vector.broadcast %cst_104 : f32 to vector<1x32xf32>
    %470 = arith.addf %469, %468 : vector<1x32xf32>
    %471 = arith.divf %469, %470 : vector<1x32xf32>
    %472 = vector.extract_strided_slice %459 {offsets = [0, 64], sizes = [1, 32], strides = [1, 1]} : vector<1x128xf32> to vector<1x32xf32>
    %473 = math.tanh %472 : vector<1x32xf32>
    %474 = vector.extract_strided_slice %459 {offsets = [0, 96], sizes = [1, 32], strides = [1, 1]} : vector<1x128xf32> to vector<1x32xf32>
    %475 = arith.negf %474 : vector<1x32xf32>
    %476 = math.exp %475 : vector<1x32xf32>
    %cst_105 = arith.constant 1.000000e+00 : f32
    %477 = vector.broadcast %cst_105 : f32 to vector<1x32xf32>
    %478 = arith.addf %477, %476 : vector<1x32xf32>
    %479 = arith.divf %477, %478 : vector<1x32xf32>
    %480 = arith.mulf %471, %406 : vector<1x32xf32>
    %481 = arith.mulf %465, %473 : vector<1x32xf32>
    %482 = arith.addf %480, %481 : vector<1x32xf32>
    %483 = math.tanh %482 : vector<1x32xf32>
    %484 = arith.mulf %479, %483 : vector<1x32xf32>
    %485 = vector.broadcast %454 : vector<1x1xf32> to vector<1x32xf32>
    %486 = arith.mulf %485, %484 : vector<1x32xf32>
    %487 = vector.broadcast %454 : vector<1x1xf32> to vector<1x32xf32>
    %488 = arith.mulf %487, %484 : vector<1x32xf32>
    %cst_106 = arith.constant 1.000000e+00 : f32
    %489 = vector.broadcast %cst_106 : f32 to vector<1x1xf32>
    %490 = arith.subf %489, %454 : vector<1x1xf32>
    %491 = vector.broadcast %490 : vector<1x1xf32> to vector<1x32xf32>
    %492 = arith.mulf %491, %399 : vector<1x32xf32>
    %493 = arith.addf %488, %492 : vector<1x32xf32>
    %494 = vector.broadcast %454 : vector<1x1xf32> to vector<1x32xf32>
    %495 = arith.mulf %494, %482 : vector<1x32xf32>
    %cst_107 = arith.constant 1.000000e+00 : f32
    %496 = vector.broadcast %cst_107 : f32 to vector<1x1xf32>
    %497 = arith.subf %496, %454 : vector<1x1xf32>
    %498 = vector.broadcast %497 : vector<1x1xf32> to vector<1x32xf32>
    %499 = arith.mulf %498, %406 : vector<1x32xf32>
    %500 = arith.addf %495, %499 : vector<1x32xf32>
    %501 = vector.extract_strided_slice %70 {offsets = [0, 3], sizes = [1, 1], strides = [1, 1]} : vector<1x8xf32> to vector<1x1xf32>
    %502 = vector.extract_strided_slice %61 {offsets = [3, 0], sizes = [1, 32], strides = [1, 1]} : vector<8x32xf32> to vector<1x32xf32>
    %cst_108 = arith.constant dense<0.000000e+00> : vector<1x128xf32>
    %503 = tpu.matmul %502, %74, %cst_108 {dimension_numbers = #tpu.dot_dimension_numbers<[1], [0], [0], [1], [0, 0, 1, 1], [], []>} : vector<1x32xf32>, vector<32x128xf32>, vector<1x128xf32> -> vector<1x128xf32>
    %cst_109 = arith.constant dense<0.000000e+00> : vector<1x128xf32>
    %504 = tpu.matmul %446, %75, %cst_109 {dimension_numbers = #tpu.dot_dimension_numbers<[1], [0], [0], [1], [0, 0, 1, 1], [], []>} : vector<1x32xf32>, vector<32x128xf32>, vector<1x128xf32> -> vector<1x128xf32>
    %505 = arith.addf %503, %504 : vector<1x128xf32>
    %506 = arith.addf %505, %76 : vector<1x128xf32>
    %507 = vector.extract_strided_slice %506 {offsets = [0, 0], sizes = [1, 32], strides = [1, 1]} : vector<1x128xf32> to vector<1x32xf32>
    %508 = arith.negf %507 : vector<1x32xf32>
    %509 = math.exp %508 : vector<1x32xf32>
    %cst_110 = arith.constant 1.000000e+00 : f32
    %510 = vector.broadcast %cst_110 : f32 to vector<1x32xf32>
    %511 = arith.addf %510, %509 : vector<1x32xf32>
    %512 = arith.divf %510, %511 : vector<1x32xf32>
    %513 = vector.extract_strided_slice %506 {offsets = [0, 32], sizes = [1, 32], strides = [1, 1]} : vector<1x128xf32> to vector<1x32xf32>
    %514 = arith.negf %513 : vector<1x32xf32>
    %515 = math.exp %514 : vector<1x32xf32>
    %cst_111 = arith.constant 1.000000e+00 : f32
    %516 = vector.broadcast %cst_111 : f32 to vector<1x32xf32>
    %517 = arith.addf %516, %515 : vector<1x32xf32>
    %518 = arith.divf %516, %517 : vector<1x32xf32>
    %519 = vector.extract_strided_slice %506 {offsets = [0, 64], sizes = [1, 32], strides = [1, 1]} : vector<1x128xf32> to vector<1x32xf32>
    %520 = math.tanh %519 : vector<1x32xf32>
    %521 = vector.extract_strided_slice %506 {offsets = [0, 96], sizes = [1, 32], strides = [1, 1]} : vector<1x128xf32> to vector<1x32xf32>
    %522 = arith.negf %521 : vector<1x32xf32>
    %523 = math.exp %522 : vector<1x32xf32>
    %cst_112 = arith.constant 1.000000e+00 : f32
    %524 = vector.broadcast %cst_112 : f32 to vector<1x32xf32>
    %525 = arith.addf %524, %523 : vector<1x32xf32>
    %526 = arith.divf %524, %525 : vector<1x32xf32>
    %527 = arith.mulf %518, %453 : vector<1x32xf32>
    %528 = arith.mulf %512, %520 : vector<1x32xf32>
    %529 = arith.addf %527, %528 : vector<1x32xf32>
    %530 = math.tanh %529 : vector<1x32xf32>
    %531 = arith.mulf %526, %530 : vector<1x32xf32>
    %532 = vector.broadcast %501 : vector<1x1xf32> to vector<1x32xf32>
    %533 = arith.mulf %532, %531 : vector<1x32xf32>
    %534 = vector.broadcast %501 : vector<1x1xf32> to vector<1x32xf32>
    %535 = arith.mulf %534, %531 : vector<1x32xf32>
    %cst_113 = arith.constant 1.000000e+00 : f32
    %536 = vector.broadcast %cst_113 : f32 to vector<1x1xf32>
    %537 = arith.subf %536, %501 : vector<1x1xf32>
    %538 = vector.broadcast %537 : vector<1x1xf32> to vector<1x32xf32>
    %539 = arith.mulf %538, %446 : vector<1x32xf32>
    %540 = arith.addf %535, %539 : vector<1x32xf32>
    %541 = vector.broadcast %501 : vector<1x1xf32> to vector<1x32xf32>
    %542 = arith.mulf %541, %529 : vector<1x32xf32>
    %cst_114 = arith.constant 1.000000e+00 : f32
    %543 = vector.broadcast %cst_114 : f32 to vector<1x1xf32>
    %544 = arith.subf %543, %501 : vector<1x1xf32>
    %545 = vector.broadcast %544 : vector<1x1xf32> to vector<1x32xf32>
    %546 = arith.mulf %545, %453 : vector<1x32xf32>
    %547 = arith.addf %542, %546 : vector<1x32xf32>
    %548 = vector.extract_strided_slice %70 {offsets = [0, 5], sizes = [1, 1], strides = [1, 1]} : vector<1x8xf32> to vector<1x1xf32>
    %549 = vector.extract_strided_slice %61 {offsets = [5, 0], sizes = [1, 32], strides = [1, 1]} : vector<8x32xf32> to vector<1x32xf32>
    %cst_115 = arith.constant dense<0.000000e+00> : vector<1x128xf32>
    %550 = tpu.matmul %549, %71, %cst_115 {dimension_numbers = #tpu.dot_dimension_numbers<[1], [0], [0], [1], [0, 0, 1, 1], [], []>} : vector<1x32xf32>, vector<32x128xf32>, vector<1x128xf32> -> vector<1x128xf32>
    %cst_116 = arith.constant dense<0.000000e+00> : vector<1x128xf32>
    %551 = tpu.matmul %493, %72, %cst_116 {dimension_numbers = #tpu.dot_dimension_numbers<[1], [0], [0], [1], [0, 0, 1, 1], [], []>} : vector<1x32xf32>, vector<32x128xf32>, vector<1x128xf32> -> vector<1x128xf32>
    %552 = arith.addf %550, %551 : vector<1x128xf32>
    %553 = arith.addf %552, %73 : vector<1x128xf32>
    %554 = vector.extract_strided_slice %553 {offsets = [0, 0], sizes = [1, 32], strides = [1, 1]} : vector<1x128xf32> to vector<1x32xf32>
    %555 = arith.negf %554 : vector<1x32xf32>
    %556 = math.exp %555 : vector<1x32xf32>
    %cst_117 = arith.constant 1.000000e+00 : f32
    %557 = vector.broadcast %cst_117 : f32 to vector<1x32xf32>
    %558 = arith.addf %557, %556 : vector<1x32xf32>
    %559 = arith.divf %557, %558 : vector<1x32xf32>
    %560 = vector.extract_strided_slice %553 {offsets = [0, 32], sizes = [1, 32], strides = [1, 1]} : vector<1x128xf32> to vector<1x32xf32>
    %561 = arith.negf %560 : vector<1x32xf32>
    %562 = math.exp %561 : vector<1x32xf32>
    %cst_118 = arith.constant 1.000000e+00 : f32
    %563 = vector.broadcast %cst_118 : f32 to vector<1x32xf32>
    %564 = arith.addf %563, %562 : vector<1x32xf32>
    %565 = arith.divf %563, %564 : vector<1x32xf32>
    %566 = vector.extract_strided_slice %553 {offsets = [0, 64], sizes = [1, 32], strides = [1, 1]} : vector<1x128xf32> to vector<1x32xf32>
    %567 = math.tanh %566 : vector<1x32xf32>
    %568 = vector.extract_strided_slice %553 {offsets = [0, 96], sizes = [1, 32], strides = [1, 1]} : vector<1x128xf32> to vector<1x32xf32>
    %569 = arith.negf %568 : vector<1x32xf32>
    %570 = math.exp %569 : vector<1x32xf32>
    %cst_119 = arith.constant 1.000000e+00 : f32
    %571 = vector.broadcast %cst_119 : f32 to vector<1x32xf32>
    %572 = arith.addf %571, %570 : vector<1x32xf32>
    %573 = arith.divf %571, %572 : vector<1x32xf32>
    %574 = arith.mulf %565, %500 : vector<1x32xf32>
    %575 = arith.mulf %559, %567 : vector<1x32xf32>
    %576 = arith.addf %574, %575 : vector<1x32xf32>
    %577 = math.tanh %576 : vector<1x32xf32>
    %578 = arith.mulf %573, %577 : vector<1x32xf32>
    %579 = vector.broadcast %548 : vector<1x1xf32> to vector<1x32xf32>
    %580 = arith.mulf %579, %578 : vector<1x32xf32>
    %581 = vector.broadcast %548 : vector<1x1xf32> to vector<1x32xf32>
    %582 = arith.mulf %581, %578 : vector<1x32xf32>
    %cst_120 = arith.constant 1.000000e+00 : f32
    %583 = vector.broadcast %cst_120 : f32 to vector<1x1xf32>
    %584 = arith.subf %583, %548 : vector<1x1xf32>
    %585 = vector.broadcast %584 : vector<1x1xf32> to vector<1x32xf32>
    %586 = arith.mulf %585, %493 : vector<1x32xf32>
    %587 = arith.addf %582, %586 : vector<1x32xf32>
    %588 = vector.broadcast %548 : vector<1x1xf32> to vector<1x32xf32>
    %589 = arith.mulf %588, %576 : vector<1x32xf32>
    %cst_121 = arith.constant 1.000000e+00 : f32
    %590 = vector.broadcast %cst_121 : f32 to vector<1x1xf32>
    %591 = arith.subf %590, %548 : vector<1x1xf32>
    %592 = vector.broadcast %591 : vector<1x1xf32> to vector<1x32xf32>
    %593 = arith.mulf %592, %500 : vector<1x32xf32>
    %594 = arith.addf %589, %593 : vector<1x32xf32>
    %595 = vector.extract_strided_slice %70 {offsets = [0, 2], sizes = [1, 1], strides = [1, 1]} : vector<1x8xf32> to vector<1x1xf32>
    %596 = vector.extract_strided_slice %61 {offsets = [2, 0], sizes = [1, 32], strides = [1, 1]} : vector<8x32xf32> to vector<1x32xf32>
    %cst_122 = arith.constant dense<0.000000e+00> : vector<1x128xf32>
    %597 = tpu.matmul %596, %74, %cst_122 {dimension_numbers = #tpu.dot_dimension_numbers<[1], [0], [0], [1], [0, 0, 1, 1], [], []>} : vector<1x32xf32>, vector<32x128xf32>, vector<1x128xf32> -> vector<1x128xf32>
    %cst_123 = arith.constant dense<0.000000e+00> : vector<1x128xf32>
    %598 = tpu.matmul %540, %75, %cst_123 {dimension_numbers = #tpu.dot_dimension_numbers<[1], [0], [0], [1], [0, 0, 1, 1], [], []>} : vector<1x32xf32>, vector<32x128xf32>, vector<1x128xf32> -> vector<1x128xf32>
    %599 = arith.addf %597, %598 : vector<1x128xf32>
    %600 = arith.addf %599, %76 : vector<1x128xf32>
    %601 = vector.extract_strided_slice %600 {offsets = [0, 0], sizes = [1, 32], strides = [1, 1]} : vector<1x128xf32> to vector<1x32xf32>
    %602 = arith.negf %601 : vector<1x32xf32>
    %603 = math.exp %602 : vector<1x32xf32>
    %cst_124 = arith.constant 1.000000e+00 : f32
    %604 = vector.broadcast %cst_124 : f32 to vector<1x32xf32>
    %605 = arith.addf %604, %603 : vector<1x32xf32>
    %606 = arith.divf %604, %605 : vector<1x32xf32>
    %607 = vector.extract_strided_slice %600 {offsets = [0, 32], sizes = [1, 32], strides = [1, 1]} : vector<1x128xf32> to vector<1x32xf32>
    %608 = arith.negf %607 : vector<1x32xf32>
    %609 = math.exp %608 : vector<1x32xf32>
    %cst_125 = arith.constant 1.000000e+00 : f32
    %610 = vector.broadcast %cst_125 : f32 to vector<1x32xf32>
    %611 = arith.addf %610, %609 : vector<1x32xf32>
    %612 = arith.divf %610, %611 : vector<1x32xf32>
    %613 = vector.extract_strided_slice %600 {offsets = [0, 64], sizes = [1, 32], strides = [1, 1]} : vector<1x128xf32> to vector<1x32xf32>
    %614 = math.tanh %613 : vector<1x32xf32>
    %615 = vector.extract_strided_slice %600 {offsets = [0, 96], sizes = [1, 32], strides = [1, 1]} : vector<1x128xf32> to vector<1x32xf32>
    %616 = arith.negf %615 : vector<1x32xf32>
    %617 = math.exp %616 : vector<1x32xf32>
    %cst_126 = arith.constant 1.000000e+00 : f32
    %618 = vector.broadcast %cst_126 : f32 to vector<1x32xf32>
    %619 = arith.addf %618, %617 : vector<1x32xf32>
    %620 = arith.divf %618, %619 : vector<1x32xf32>
    %621 = arith.mulf %612, %547 : vector<1x32xf32>
    %622 = arith.mulf %606, %614 : vector<1x32xf32>
    %623 = arith.addf %621, %622 : vector<1x32xf32>
    %624 = math.tanh %623 : vector<1x32xf32>
    %625 = arith.mulf %620, %624 : vector<1x32xf32>
    %626 = vector.broadcast %595 : vector<1x1xf32> to vector<1x32xf32>
    %627 = arith.mulf %626, %625 : vector<1x32xf32>
    %628 = vector.broadcast %595 : vector<1x1xf32> to vector<1x32xf32>
    %629 = arith.mulf %628, %625 : vector<1x32xf32>
    %cst_127 = arith.constant 1.000000e+00 : f32
    %630 = vector.broadcast %cst_127 : f32 to vector<1x1xf32>
    %631 = arith.subf %630, %595 : vector<1x1xf32>
    %632 = vector.broadcast %631 : vector<1x1xf32> to vector<1x32xf32>
    %633 = arith.mulf %632, %540 : vector<1x32xf32>
    %634 = arith.addf %629, %633 : vector<1x32xf32>
    %635 = vector.broadcast %595 : vector<1x1xf32> to vector<1x32xf32>
    %636 = arith.mulf %635, %623 : vector<1x32xf32>
    %cst_128 = arith.constant 1.000000e+00 : f32
    %637 = vector.broadcast %cst_128 : f32 to vector<1x1xf32>
    %638 = arith.subf %637, %595 : vector<1x1xf32>
    %639 = vector.broadcast %638 : vector<1x1xf32> to vector<1x32xf32>
    %640 = arith.mulf %639, %547 : vector<1x32xf32>
    %641 = arith.addf %636, %640 : vector<1x32xf32>
    %642 = vector.extract_strided_slice %70 {offsets = [0, 6], sizes = [1, 1], strides = [1, 1]} : vector<1x8xf32> to vector<1x1xf32>
    %643 = vector.extract_strided_slice %61 {offsets = [6, 0], sizes = [1, 32], strides = [1, 1]} : vector<8x32xf32> to vector<1x32xf32>
    %cst_129 = arith.constant dense<0.000000e+00> : vector<1x128xf32>
    %644 = tpu.matmul %643, %71, %cst_129 {dimension_numbers = #tpu.dot_dimension_numbers<[1], [0], [0], [1], [0, 0, 1, 1], [], []>} : vector<1x32xf32>, vector<32x128xf32>, vector<1x128xf32> -> vector<1x128xf32>
    %cst_130 = arith.constant dense<0.000000e+00> : vector<1x128xf32>
    %645 = tpu.matmul %587, %72, %cst_130 {dimension_numbers = #tpu.dot_dimension_numbers<[1], [0], [0], [1], [0, 0, 1, 1], [], []>} : vector<1x32xf32>, vector<32x128xf32>, vector<1x128xf32> -> vector<1x128xf32>
    %646 = arith.addf %644, %645 : vector<1x128xf32>
    %647 = arith.addf %646, %73 : vector<1x128xf32>
    %648 = vector.extract_strided_slice %647 {offsets = [0, 0], sizes = [1, 32], strides = [1, 1]} : vector<1x128xf32> to vector<1x32xf32>
    %649 = arith.negf %648 : vector<1x32xf32>
    %650 = math.exp %649 : vector<1x32xf32>
    %cst_131 = arith.constant 1.000000e+00 : f32
    %651 = vector.broadcast %cst_131 : f32 to vector<1x32xf32>
    %652 = arith.addf %651, %650 : vector<1x32xf32>
    %653 = arith.divf %651, %652 : vector<1x32xf32>
    %654 = vector.extract_strided_slice %647 {offsets = [0, 32], sizes = [1, 32], strides = [1, 1]} : vector<1x128xf32> to vector<1x32xf32>
    %655 = arith.negf %654 : vector<1x32xf32>
    %656 = math.exp %655 : vector<1x32xf32>
    %cst_132 = arith.constant 1.000000e+00 : f32
    %657 = vector.broadcast %cst_132 : f32 to vector<1x32xf32>
    %658 = arith.addf %657, %656 : vector<1x32xf32>
    %659 = arith.divf %657, %658 : vector<1x32xf32>
    %660 = vector.extract_strided_slice %647 {offsets = [0, 64], sizes = [1, 32], strides = [1, 1]} : vector<1x128xf32> to vector<1x32xf32>
    %661 = math.tanh %660 : vector<1x32xf32>
    %662 = vector.extract_strided_slice %647 {offsets = [0, 96], sizes = [1, 32], strides = [1, 1]} : vector<1x128xf32> to vector<1x32xf32>
    %663 = arith.negf %662 : vector<1x32xf32>
    %664 = math.exp %663 : vector<1x32xf32>
    %cst_133 = arith.constant 1.000000e+00 : f32
    %665 = vector.broadcast %cst_133 : f32 to vector<1x32xf32>
    %666 = arith.addf %665, %664 : vector<1x32xf32>
    %667 = arith.divf %665, %666 : vector<1x32xf32>
    %668 = arith.mulf %659, %594 : vector<1x32xf32>
    %669 = arith.mulf %653, %661 : vector<1x32xf32>
    %670 = arith.addf %668, %669 : vector<1x32xf32>
    %671 = math.tanh %670 : vector<1x32xf32>
    %672 = arith.mulf %667, %671 : vector<1x32xf32>
    %673 = vector.broadcast %642 : vector<1x1xf32> to vector<1x32xf32>
    %674 = arith.mulf %673, %672 : vector<1x32xf32>
    %675 = vector.broadcast %642 : vector<1x1xf32> to vector<1x32xf32>
    %676 = arith.mulf %675, %672 : vector<1x32xf32>
    %cst_134 = arith.constant 1.000000e+00 : f32
    %677 = vector.broadcast %cst_134 : f32 to vector<1x1xf32>
    %678 = arith.subf %677, %642 : vector<1x1xf32>
    %679 = vector.broadcast %678 : vector<1x1xf32> to vector<1x32xf32>
    %680 = arith.mulf %679, %587 : vector<1x32xf32>
    %681 = arith.addf %676, %680 : vector<1x32xf32>
    %682 = vector.broadcast %642 : vector<1x1xf32> to vector<1x32xf32>
    %683 = arith.mulf %682, %670 : vector<1x32xf32>
    %cst_135 = arith.constant 1.000000e+00 : f32
    %684 = vector.broadcast %cst_135 : f32 to vector<1x1xf32>
    %685 = arith.subf %684, %642 : vector<1x1xf32>
    %686 = vector.broadcast %685 : vector<1x1xf32> to vector<1x32xf32>
    %687 = arith.mulf %686, %594 : vector<1x32xf32>
    %688 = arith.addf %683, %687 : vector<1x32xf32>
    %689 = vector.extract_strided_slice %70 {offsets = [0, 1], sizes = [1, 1], strides = [1, 1]} : vector<1x8xf32> to vector<1x1xf32>
    %690 = vector.extract_strided_slice %61 {offsets = [1, 0], sizes = [1, 32], strides = [1, 1]} : vector<8x32xf32> to vector<1x32xf32>
    %cst_136 = arith.constant dense<0.000000e+00> : vector<1x128xf32>
    %691 = tpu.matmul %690, %74, %cst_136 {dimension_numbers = #tpu.dot_dimension_numbers<[1], [0], [0], [1], [0, 0, 1, 1], [], []>} : vector<1x32xf32>, vector<32x128xf32>, vector<1x128xf32> -> vector<1x128xf32>
    %cst_137 = arith.constant dense<0.000000e+00> : vector<1x128xf32>
    %692 = tpu.matmul %634, %75, %cst_137 {dimension_numbers = #tpu.dot_dimension_numbers<[1], [0], [0], [1], [0, 0, 1, 1], [], []>} : vector<1x32xf32>, vector<32x128xf32>, vector<1x128xf32> -> vector<1x128xf32>
    %693 = arith.addf %691, %692 : vector<1x128xf32>
    %694 = arith.addf %693, %76 : vector<1x128xf32>
    %695 = vector.extract_strided_slice %694 {offsets = [0, 0], sizes = [1, 32], strides = [1, 1]} : vector<1x128xf32> to vector<1x32xf32>
    %696 = arith.negf %695 : vector<1x32xf32>
    %697 = math.exp %696 : vector<1x32xf32>
    %cst_138 = arith.constant 1.000000e+00 : f32
    %698 = vector.broadcast %cst_138 : f32 to vector<1x32xf32>
    %699 = arith.addf %698, %697 : vector<1x32xf32>
    %700 = arith.divf %698, %699 : vector<1x32xf32>
    %701 = vector.extract_strided_slice %694 {offsets = [0, 32], sizes = [1, 32], strides = [1, 1]} : vector<1x128xf32> to vector<1x32xf32>
    %702 = arith.negf %701 : vector<1x32xf32>
    %703 = math.exp %702 : vector<1x32xf32>
    %cst_139 = arith.constant 1.000000e+00 : f32
    %704 = vector.broadcast %cst_139 : f32 to vector<1x32xf32>
    %705 = arith.addf %704, %703 : vector<1x32xf32>
    %706 = arith.divf %704, %705 : vector<1x32xf32>
    %707 = vector.extract_strided_slice %694 {offsets = [0, 64], sizes = [1, 32], strides = [1, 1]} : vector<1x128xf32> to vector<1x32xf32>
    %708 = math.tanh %707 : vector<1x32xf32>
    %709 = vector.extract_strided_slice %694 {offsets = [0, 96], sizes = [1, 32], strides = [1, 1]} : vector<1x128xf32> to vector<1x32xf32>
    %710 = arith.negf %709 : vector<1x32xf32>
    %711 = math.exp %710 : vector<1x32xf32>
    %cst_140 = arith.constant 1.000000e+00 : f32
    %712 = vector.broadcast %cst_140 : f32 to vector<1x32xf32>
    %713 = arith.addf %712, %711 : vector<1x32xf32>
    %714 = arith.divf %712, %713 : vector<1x32xf32>
    %715 = arith.mulf %706, %641 : vector<1x32xf32>
    %716 = arith.mulf %700, %708 : vector<1x32xf32>
    %717 = arith.addf %715, %716 : vector<1x32xf32>
    %718 = math.tanh %717 : vector<1x32xf32>
    %719 = arith.mulf %714, %718 : vector<1x32xf32>
    %720 = vector.broadcast %689 : vector<1x1xf32> to vector<1x32xf32>
    %721 = arith.mulf %720, %719 : vector<1x32xf32>
    %722 = vector.broadcast %689 : vector<1x1xf32> to vector<1x32xf32>
    %723 = arith.mulf %722, %719 : vector<1x32xf32>
    %cst_141 = arith.constant 1.000000e+00 : f32
    %724 = vector.broadcast %cst_141 : f32 to vector<1x1xf32>
    %725 = arith.subf %724, %689 : vector<1x1xf32>
    %726 = vector.broadcast %725 : vector<1x1xf32> to vector<1x32xf32>
    %727 = arith.mulf %726, %634 : vector<1x32xf32>
    %728 = arith.addf %723, %727 : vector<1x32xf32>
    %729 = vector.broadcast %689 : vector<1x1xf32> to vector<1x32xf32>
    %730 = arith.mulf %729, %717 : vector<1x32xf32>
    %cst_142 = arith.constant 1.000000e+00 : f32
    %731 = vector.broadcast %cst_142 : f32 to vector<1x1xf32>
    %732 = arith.subf %731, %689 : vector<1x1xf32>
    %733 = vector.broadcast %732 : vector<1x1xf32> to vector<1x32xf32>
    %734 = arith.mulf %733, %641 : vector<1x32xf32>
    %735 = arith.addf %730, %734 : vector<1x32xf32>
    %736 = vector.extract_strided_slice %70 {offsets = [0, 7], sizes = [1, 1], strides = [1, 1]} : vector<1x8xf32> to vector<1x1xf32>
    %737 = vector.extract_strided_slice %61 {offsets = [7, 0], sizes = [1, 32], strides = [1, 1]} : vector<8x32xf32> to vector<1x32xf32>
    %cst_143 = arith.constant dense<0.000000e+00> : vector<1x128xf32>
    %738 = tpu.matmul %737, %71, %cst_143 {dimension_numbers = #tpu.dot_dimension_numbers<[1], [0], [0], [1], [0, 0, 1, 1], [], []>} : vector<1x32xf32>, vector<32x128xf32>, vector<1x128xf32> -> vector<1x128xf32>
    %cst_144 = arith.constant dense<0.000000e+00> : vector<1x128xf32>
    %739 = tpu.matmul %681, %72, %cst_144 {dimension_numbers = #tpu.dot_dimension_numbers<[1], [0], [0], [1], [0, 0, 1, 1], [], []>} : vector<1x32xf32>, vector<32x128xf32>, vector<1x128xf32> -> vector<1x128xf32>
    %740 = arith.addf %738, %739 : vector<1x128xf32>
    %741 = arith.addf %740, %73 : vector<1x128xf32>
    %742 = vector.extract_strided_slice %741 {offsets = [0, 0], sizes = [1, 32], strides = [1, 1]} : vector<1x128xf32> to vector<1x32xf32>
    %743 = arith.negf %742 : vector<1x32xf32>
    %744 = math.exp %743 : vector<1x32xf32>
    %cst_145 = arith.constant 1.000000e+00 : f32
    %745 = vector.broadcast %cst_145 : f32 to vector<1x32xf32>
    %746 = arith.addf %745, %744 : vector<1x32xf32>
    %747 = arith.divf %745, %746 : vector<1x32xf32>
    %748 = vector.extract_strided_slice %741 {offsets = [0, 32], sizes = [1, 32], strides = [1, 1]} : vector<1x128xf32> to vector<1x32xf32>
    %749 = arith.negf %748 : vector<1x32xf32>
    %750 = math.exp %749 : vector<1x32xf32>
    %cst_146 = arith.constant 1.000000e+00 : f32
    %751 = vector.broadcast %cst_146 : f32 to vector<1x32xf32>
    %752 = arith.addf %751, %750 : vector<1x32xf32>
    %753 = arith.divf %751, %752 : vector<1x32xf32>
    %754 = vector.extract_strided_slice %741 {offsets = [0, 64], sizes = [1, 32], strides = [1, 1]} : vector<1x128xf32> to vector<1x32xf32>
    %755 = math.tanh %754 : vector<1x32xf32>
    %756 = vector.extract_strided_slice %741 {offsets = [0, 96], sizes = [1, 32], strides = [1, 1]} : vector<1x128xf32> to vector<1x32xf32>
    %757 = arith.negf %756 : vector<1x32xf32>
    %758 = math.exp %757 : vector<1x32xf32>
    %cst_147 = arith.constant 1.000000e+00 : f32
    %759 = vector.broadcast %cst_147 : f32 to vector<1x32xf32>
    %760 = arith.addf %759, %758 : vector<1x32xf32>
    %761 = arith.divf %759, %760 : vector<1x32xf32>
    %762 = arith.mulf %753, %688 : vector<1x32xf32>
    %763 = arith.mulf %747, %755 : vector<1x32xf32>
    %764 = arith.addf %762, %763 : vector<1x32xf32>
    %765 = math.tanh %764 : vector<1x32xf32>
    %766 = arith.mulf %761, %765 : vector<1x32xf32>
    %767 = vector.broadcast %736 : vector<1x1xf32> to vector<1x32xf32>
    %768 = arith.mulf %767, %766 : vector<1x32xf32>
    %769 = vector.extract_strided_slice %70 {offsets = [0, 0], sizes = [1, 1], strides = [1, 1]} : vector<1x8xf32> to vector<1x1xf32>
    %770 = vector.extract_strided_slice %61 {offsets = [0, 0], sizes = [1, 32], strides = [1, 1]} : vector<8x32xf32> to vector<1x32xf32>
    %cst_148 = arith.constant dense<0.000000e+00> : vector<1x128xf32>
    %771 = tpu.matmul %770, %74, %cst_148 {dimension_numbers = #tpu.dot_dimension_numbers<[1], [0], [0], [1], [0, 0, 1, 1], [], []>} : vector<1x32xf32>, vector<32x128xf32>, vector<1x128xf32> -> vector<1x128xf32>
    %cst_149 = arith.constant dense<0.000000e+00> : vector<1x128xf32>
    %772 = tpu.matmul %728, %75, %cst_149 {dimension_numbers = #tpu.dot_dimension_numbers<[1], [0], [0], [1], [0, 0, 1, 1], [], []>} : vector<1x32xf32>, vector<32x128xf32>, vector<1x128xf32> -> vector<1x128xf32>
    %773 = arith.addf %771, %772 : vector<1x128xf32>
    %774 = arith.addf %773, %76 : vector<1x128xf32>
    %775 = vector.extract_strided_slice %774 {offsets = [0, 0], sizes = [1, 32], strides = [1, 1]} : vector<1x128xf32> to vector<1x32xf32>
    %776 = arith.negf %775 : vector<1x32xf32>
    %777 = math.exp %776 : vector<1x32xf32>
    %cst_150 = arith.constant 1.000000e+00 : f32
    %778 = vector.broadcast %cst_150 : f32 to vector<1x32xf32>
    %779 = arith.addf %778, %777 : vector<1x32xf32>
    %780 = arith.divf %778, %779 : vector<1x32xf32>
    %781 = vector.extract_strided_slice %774 {offsets = [0, 32], sizes = [1, 32], strides = [1, 1]} : vector<1x128xf32> to vector<1x32xf32>
    %782 = arith.negf %781 : vector<1x32xf32>
    %783 = math.exp %782 : vector<1x32xf32>
    %cst_151 = arith.constant 1.000000e+00 : f32
    %784 = vector.broadcast %cst_151 : f32 to vector<1x32xf32>
    %785 = arith.addf %784, %783 : vector<1x32xf32>
    %786 = arith.divf %784, %785 : vector<1x32xf32>
    %787 = vector.extract_strided_slice %774 {offsets = [0, 64], sizes = [1, 32], strides = [1, 1]} : vector<1x128xf32> to vector<1x32xf32>
    %788 = math.tanh %787 : vector<1x32xf32>
    %789 = vector.extract_strided_slice %774 {offsets = [0, 96], sizes = [1, 32], strides = [1, 1]} : vector<1x128xf32> to vector<1x32xf32>
    %790 = arith.negf %789 : vector<1x32xf32>
    %791 = math.exp %790 : vector<1x32xf32>
    %cst_152 = arith.constant 1.000000e+00 : f32
    %792 = vector.broadcast %cst_152 : f32 to vector<1x32xf32>
    %793 = arith.addf %792, %791 : vector<1x32xf32>
    %794 = arith.divf %792, %793 : vector<1x32xf32>
    %795 = arith.mulf %786, %735 : vector<1x32xf32>
    %796 = arith.mulf %780, %788 : vector<1x32xf32>
    %797 = arith.addf %795, %796 : vector<1x32xf32>
    %798 = math.tanh %797 : vector<1x32xf32>
    %799 = arith.mulf %794, %798 : vector<1x32xf32>
    %800 = vector.broadcast %769 : vector<1x1xf32> to vector<1x32xf32>
    %801 = arith.mulf %800, %799 : vector<1x32xf32>
    %802 = tpu.concatenate %110, %204, %298, %392, %486, %580, %674, %768 in 0 : vector<1x32xf32>, vector<1x32xf32>, vector<1x32xf32>, vector<1x32xf32>, vector<1x32xf32>, vector<1x32xf32>, vector<1x32xf32>, vector<1x32xf32> -> vector<8x32xf32>
    %803 = tpu.concatenate %801, %721, %627, %533, %439, %345, %251, %157 in 0 : vector<1x32xf32>, vector<1x32xf32>, vector<1x32xf32>, vector<1x32xf32>, vector<1x32xf32>, vector<1x32xf32>, vector<1x32xf32>, vector<1x32xf32> -> vector<8x32xf32>
    %804 = tpu.concatenate %802, %803 in 1 : vector<8x32xf32>, vector<8x32xf32> -> vector<8x64xf32>
    %c0_153 = arith.constant 0 : index
    %c0_154 = arith.constant 0 : index
    %c0_155 = arith.constant 0 : index
    %805 = vector.load %arg5[%c0_153, %c0_154, %c0_155] : memref<8x2x16xf32, #tpu.memory_space<vmem>>, vector<8x2x16xf32>
    %806 = vector.extract_strided_slice %805 {offsets = [0, 0, 0], sizes = [8, 1, 16], strides = [1, 1, 1]} : vector<8x2x16xf32> to vector<8x1x16xf32>
    %807 = vector.shape_cast %806 : vector<8x1x16xf32> to vector<8x16xf32>
    %c1_i32_156 = arith.constant 1 : i32
    %808 = arith.cmpi eq, %arg0, %c1_i32_156 : i32
    %809 = vector.extract_strided_slice %805 {offsets = [0, 1, 0], sizes = [8, 1, 16], strides = [1, 1, 1]} : vector<8x2x16xf32> to vector<8x1x16xf32>
    %810 = vector.shape_cast %809 : vector<8x1x16xf32> to vector<8x16xf32>
    %811 = arith.select %808, %810, %807 : vector<8x16xf32>
    %c0_157 = arith.constant 0 : index
    %c0_158 = arith.constant 0 : index
    %c0_159 = arith.constant 0 : index
    %812 = vector.load %arg6[%c0_157, %c0_158, %c0_159] : memref<8x2x16xf32, #tpu.memory_space<vmem>>, vector<8x2x16xf32>
    %813 = vector.extract_strided_slice %812 {offsets = [0, 0, 0], sizes = [8, 1, 16], strides = [1, 1, 1]} : vector<8x2x16xf32> to vector<8x1x16xf32>
    %814 = vector.shape_cast %813 : vector<8x1x16xf32> to vector<8x16xf32>
    %c1_i32_160 = arith.constant 1 : i32
    %815 = arith.cmpi eq, %arg0, %c1_i32_160 : i32
    %816 = vector.extract_strided_slice %812 {offsets = [0, 1, 0], sizes = [8, 1, 16], strides = [1, 1, 1]} : vector<8x2x16xf32> to vector<8x1x16xf32>
    %817 = vector.shape_cast %816 : vector<8x1x16xf32> to vector<8x16xf32>
    %818 = arith.select %815, %817, %814 : vector<8x16xf32>
    %c0_161 = arith.constant 0 : index
    %c0_162 = arith.constant 0 : index
    %c0_163 = arith.constant 0 : index
    %819 = vector.load %arg7[%c0_161, %c0_162, %c0_163] : memref<8x2x16xf32, #tpu.memory_space<vmem>>, vector<8x2x16xf32>
    %820 = vector.extract_strided_slice %819 {offsets = [0, 0, 0], sizes = [8, 1, 16], strides = [1, 1, 1]} : vector<8x2x16xf32> to vector<8x1x16xf32>
    %821 = vector.shape_cast %820 : vector<8x1x16xf32> to vector<8x16xf32>
    %c1_i32_164 = arith.constant 1 : i32
    %822 = arith.cmpi eq, %arg0, %c1_i32_164 : i32
    %823 = vector.extract_strided_slice %819 {offsets = [0, 1, 0], sizes = [8, 1, 16], strides = [1, 1, 1]} : vector<8x2x16xf32> to vector<8x1x16xf32>
    %824 = vector.shape_cast %823 : vector<8x1x16xf32> to vector<8x16xf32>
    %825 = arith.select %822, %824, %821 : vector<8x16xf32>
    %826 = tpu.concatenate %811, %818, %825 in 1 : vector<8x16xf32>, vector<8x16xf32>, vector<8x16xf32> -> vector<8x48xf32>
    %c0_165 = arith.constant 0 : index
    %c0_166 = arith.constant 0 : index
    %c0_167 = arith.constant 0 : index
    %827 = vector.load %arg8[%c0_165, %c0_166, %c0_167] : memref<8x2x16xf32, #tpu.memory_space<vmem>>, vector<8x2x16xf32>
    %828 = vector.extract_strided_slice %827 {offsets = [0, 0, 0], sizes = [8, 1, 16], strides = [1, 1, 1]} : vector<8x2x16xf32> to vector<8x1x16xf32>
    %829 = vector.shape_cast %828 : vector<8x1x16xf32> to vector<8x16xf32>
    %c1_i32_168 = arith.constant 1 : i32
    %830 = arith.cmpi eq, %arg0, %c1_i32_168 : i32
    %831 = vector.extract_strided_slice %827 {offsets = [0, 1, 0], sizes = [8, 1, 16], strides = [1, 1, 1]} : vector<8x2x16xf32> to vector<8x1x16xf32>
    %832 = vector.shape_cast %831 : vector<8x1x16xf32> to vector<8x16xf32>
    %833 = arith.select %830, %832, %829 : vector<8x16xf32>
    %c0_169 = arith.constant 0 : index
    %c0_170 = arith.constant 0 : index
    %c0_171 = arith.constant 0 : index
    %834 = vector.load %arg9[%c0_169, %c0_170, %c0_171] : memref<8x2x16xf32, #tpu.memory_space<vmem>>, vector<8x2x16xf32>
    %835 = vector.extract_strided_slice %834 {offsets = [0, 0, 0], sizes = [8, 1, 16], strides = [1, 1, 1]} : vector<8x2x16xf32> to vector<8x1x16xf32>
    %836 = vector.shape_cast %835 : vector<8x1x16xf32> to vector<8x16xf32>
    %c1_i32_172 = arith.constant 1 : i32
    %837 = arith.cmpi eq, %arg0, %c1_i32_172 : i32
    %838 = vector.extract_strided_slice %834 {offsets = [0, 1, 0], sizes = [8, 1, 16], strides = [1, 1, 1]} : vector<8x2x16xf32> to vector<8x1x16xf32>
    %839 = vector.shape_cast %838 : vector<8x1x16xf32> to vector<8x16xf32>
    %840 = arith.select %837, %839, %836 : vector<8x16xf32>
    %c0_173 = arith.constant 0 : index
    %c0_174 = arith.constant 0 : index
    %c0_175 = arith.constant 0 : index
    %841 = vector.load %arg10[%c0_173, %c0_174, %c0_175] : memref<8x2x16xf32, #tpu.memory_space<vmem>>, vector<8x2x16xf32>
    %842 = vector.extract_strided_slice %841 {offsets = [0, 0, 0], sizes = [8, 1, 16], strides = [1, 1, 1]} : vector<8x2x16xf32> to vector<8x1x16xf32>
    %843 = vector.shape_cast %842 : vector<8x1x16xf32> to vector<8x16xf32>
    %c1_i32_176 = arith.constant 1 : i32
    %844 = arith.cmpi eq, %arg0, %c1_i32_176 : i32
    %845 = vector.extract_strided_slice %841 {offsets = [0, 1, 0], sizes = [8, 1, 16], strides = [1, 1, 1]} : vector<8x2x16xf32> to vector<8x1x16xf32>
    %846 = vector.shape_cast %845 : vector<8x1x16xf32> to vector<8x16xf32>
    %847 = arith.select %844, %846, %843 : vector<8x16xf32>
    %848 = tpu.concatenate %833, %840, %847 in 1 : vector<8x16xf32>, vector<8x16xf32>, vector<8x16xf32> -> vector<8x48xf32>
    %c0_177 = arith.constant 0 : index
    %c0_178 = arith.constant 0 : index
    %849 = vector.load %arg24[%c0_177, %c0_178] : memref<48x64xf32, #tpu.memory_space<vmem>>, vector<48x64xf32>
    %cst_179 = arith.constant dense<0.000000e+00> : vector<8x64xf32>
    %850 = tpu.matmul %826, %849, %cst_179 {dimension_numbers = #tpu.dot_dimension_numbers<[1], [0], [0], [1], [0, 0, 1, 1], [], []>} : vector<8x48xf32>, vector<48x64xf32>, vector<8x64xf32> -> vector<8x64xf32>
    %c0_180 = arith.constant 0 : index
    %c0_181 = arith.constant 0 : index
    %851 = vector.load %arg25[%c0_180, %c0_181] : memref<1x64xf32, #tpu.memory_space<vmem>>, vector<1x64xf32>
    %852 = vector.broadcast %851 : vector<1x64xf32> to vector<8x64xf32>
    %853 = arith.addf %850, %852 : vector<8x64xf32>
    %c0_182 = arith.constant 0 : index
    %c0_183 = arith.constant 0 : index
    %854 = vector.load %arg26[%c0_182, %c0_183] : memref<48x64xf32, #tpu.memory_space<vmem>>, vector<48x64xf32>
    %cst_184 = arith.constant dense<0.000000e+00> : vector<8x64xf32>
    %855 = tpu.matmul %848, %854, %cst_184 {dimension_numbers = #tpu.dot_dimension_numbers<[1], [0], [0], [1], [0, 0, 1, 1], [], []>} : vector<8x48xf32>, vector<48x64xf32>, vector<8x64xf32> -> vector<8x64xf32>
    %c0_185 = arith.constant 0 : index
    %c0_186 = arith.constant 0 : index
    %856 = vector.load %arg27[%c0_185, %c0_186] : memref<1x64xf32, #tpu.memory_space<vmem>>, vector<1x64xf32>
    %857 = vector.broadcast %856 : vector<1x64xf32> to vector<8x64xf32>
    %858 = arith.addf %855, %857 : vector<8x64xf32>
    %c0_187 = arith.constant 0 : index
    %c0_188 = arith.constant 0 : index
    %c0_189 = arith.constant 0 : index
    %859 = vector.load %arg12[%c0_187, %c0_188, %c0_189] : memref<2x8x8xf32, #tpu.memory_space<vmem>>, vector<2x8x8xf32>
    %860 = vector.extract_strided_slice %859 {offsets = [0, 0, 0], sizes = [1, 8, 8], strides = [1, 1, 1]} : vector<2x8x8xf32> to vector<1x8x8xf32>
    %861 = vector.shape_cast %860 : vector<1x8x8xf32> to vector<8x8xf32>
    %c1_i32_190 = arith.constant 1 : i32
    %862 = arith.cmpi eq, %arg0, %c1_i32_190 : i32
    %863 = vector.extract_strided_slice %859 {offsets = [1, 0, 0], sizes = [1, 8, 8], strides = [1, 1, 1]} : vector<2x8x8xf32> to vector<1x8x8xf32>
    %864 = vector.shape_cast %863 : vector<1x8x8xf32> to vector<8x8xf32>
    %865 = arith.select %862, %864, %861 : vector<8x8xf32>
    %c0_191 = arith.constant 0 : index
    %c0_192 = arith.constant 0 : index
    %c0_193 = arith.constant 0 : index
    %866 = vector.load %arg13[%c0_191, %c0_192, %c0_193] : memref<2x8x8xf32, #tpu.memory_space<vmem>>, vector<2x8x8xf32>
    %867 = vector.extract_strided_slice %866 {offsets = [0, 0, 0], sizes = [1, 8, 8], strides = [1, 1, 1]} : vector<2x8x8xf32> to vector<1x8x8xf32>
    %868 = vector.shape_cast %867 : vector<1x8x8xf32> to vector<8x8xf32>
    %c1_i32_194 = arith.constant 1 : i32
    %869 = arith.cmpi eq, %arg0, %c1_i32_194 : i32
    %870 = vector.extract_strided_slice %866 {offsets = [1, 0, 0], sizes = [1, 8, 8], strides = [1, 1, 1]} : vector<2x8x8xf32> to vector<1x8x8xf32>
    %871 = vector.shape_cast %870 : vector<1x8x8xf32> to vector<8x8xf32>
    %872 = arith.select %869, %871, %868 : vector<8x8xf32>
    %c0_195 = arith.constant 0 : index
    %c0_196 = arith.constant 0 : index
    %873 = vector.load %arg28[%c0_195, %c0_196] : memref<64x192xf32, #tpu.memory_space<vmem>>, vector<64x192xf32>
    %cst_197 = arith.constant dense<0.000000e+00> : vector<8x192xf32>
    %874 = tpu.matmul %804, %873, %cst_197 {dimension_numbers = #tpu.dot_dimension_numbers<[1], [0], [0], [1], [0, 0, 1, 1], [], []>} : vector<8x64xf32>, vector<64x192xf32>, vector<8x192xf32> -> vector<8x192xf32>
    %c0_198 = arith.constant 0 : index
    %c0_199 = arith.constant 0 : index
    %875 = vector.load %arg29[%c0_198, %c0_199] : memref<1x192xf32, #tpu.memory_space<vmem>>, vector<1x192xf32>
    %876 = vector.broadcast %875 : vector<1x192xf32> to vector<8x192xf32>
    %877 = arith.addf %874, %876 : vector<8x192xf32>
    %878 = vector.extract_strided_slice %877 {offsets = [0, 0], sizes = [8, 64], strides = [1, 1]} : vector<8x192xf32> to vector<8x64xf32>
    %879 = vector.extract_strided_slice %877 {offsets = [0, 64], sizes = [8, 64], strides = [1, 1]} : vector<8x192xf32> to vector<8x64xf32>
    %880 = vector.extract_strided_slice %877 {offsets = [0, 128], sizes = [8, 64], strides = [1, 1]} : vector<8x192xf32> to vector<8x64xf32>
    %881 = tpu.concatenate %853, %858 in 0 : vector<8x64xf32>, vector<8x64xf32> -> vector<16x64xf32>
    %c0_200 = arith.constant 0 : index
    %c0_201 = arith.constant 0 : index
    %882 = vector.load %arg30[%c0_200, %c0_201] : memref<64x64xf32, #tpu.memory_space<vmem>>, vector<64x64xf32>
    %cst_202 = arith.constant dense<0.000000e+00> : vector<16x64xf32>
    %883 = tpu.matmul %881, %882, %cst_202 {dimension_numbers = #tpu.dot_dimension_numbers<[1], [0], [0], [1], [0, 0, 1, 1], [], []>} : vector<16x64xf32>, vector<64x64xf32>, vector<16x64xf32> -> vector<16x64xf32>
    %c0_203 = arith.constant 0 : index
    %c0_204 = arith.constant 0 : index
    %884 = vector.load %arg31[%c0_203, %c0_204] : memref<1x64xf32, #tpu.memory_space<vmem>>, vector<1x64xf32>
    %885 = vector.broadcast %884 : vector<1x64xf32> to vector<16x64xf32>
    %886 = arith.addf %883, %885 : vector<16x64xf32>
    %887 = vector.extract_strided_slice %886 {offsets = [0, 0], sizes = [8, 64], strides = [1, 1]} : vector<16x64xf32> to vector<8x64xf32>
    %888 = vector.extract_strided_slice %886 {offsets = [8, 0], sizes = [8, 64], strides = [1, 1]} : vector<16x64xf32> to vector<8x64xf32>
    %889 = arith.addf %879, %887 : vector<8x64xf32>
    %890 = arith.addf %880, %887 : vector<8x64xf32>
    %891 = arith.addf %879, %888 : vector<8x64xf32>
    %892 = arith.addf %880, %888 : vector<8x64xf32>
    %893 = tpu.transpose %889, [1, 0] : vector<8x64xf32> -> vector<64x8xf32>
    %cst_205 = arith.constant dense<0.000000e+00> : vector<8x8xf32>
    %894 = tpu.matmul %878, %893, %cst_205 {dimension_numbers = #tpu.dot_dimension_numbers<[1], [0], [0], [1], [0, 0, 1, 1], [], []>} : vector<8x64xf32>, vector<64x8xf32>, vector<8x8xf32> -> vector<8x8xf32>
    %cst_206 = arith.constant 0.176776692 : f32
    %895 = vector.broadcast %cst_206 : f32 to vector<8x8xf32>
    %896 = arith.mulf %894, %895 : vector<8x8xf32>
    %897 = arith.mulf %896, %865 : vector<8x8xf32>
    %898 = tpu.transpose %891, [1, 0] : vector<8x64xf32> -> vector<64x8xf32>
    %cst_207 = arith.constant dense<0.000000e+00> : vector<8x8xf32>
    %899 = tpu.matmul %878, %898, %cst_207 {dimension_numbers = #tpu.dot_dimension_numbers<[1], [0], [0], [1], [0, 0, 1, 1], [], []>} : vector<8x64xf32>, vector<64x8xf32>, vector<8x8xf32> -> vector<8x8xf32>
    %cst_208 = arith.constant 0.176776692 : f32
    %900 = vector.broadcast %cst_208 : f32 to vector<8x8xf32>
    %901 = arith.mulf %899, %900 : vector<8x8xf32>
    %902 = arith.mulf %901, %872 : vector<8x8xf32>
    %903 = arith.addf %865, %872 : vector<8x8xf32>
    %cst_209 = arith.constant 0.000000e+00 : f32
    %904 = vector.broadcast %cst_209 : f32 to vector<8x8xf32>
    %905 = arith.cmpf oeq, %903, %904 : vector<8x8xf32>
    %906 = arith.addf %897, %902 : vector<8x8xf32>
    %cst_210 = arith.constant -1.000000e+09 : f32
    %907 = vector.broadcast %cst_210 : f32 to vector<8x8xf32>
    %908 = arith.select %905, %907, %906 : vector<8x8xi1>, vector<8x8xf32>
    %cst_211 = arith.constant dense<0xFF800000> : vector<8xf32>
    %909 = vector.multi_reduction <maximumf>, %908, %cst_211 [1] : vector<8x8xf32> to vector<8xf32>
    %910 = vector.shape_cast %909 : vector<8xf32> to vector<8x1xf32>
    %911 = vector.broadcast %910 : vector<8x1xf32> to vector<8x8xf32>
    %912 = arith.subf %908, %911 : vector<8x8xf32>
    %913 = math.exp %912 : vector<8x8xf32>
    %cst_212 = arith.constant dense<0.000000e+00> : vector<8xf32>
    %914 = vector.multi_reduction <add>, %913, %cst_212 [1] : vector<8x8xf32> to vector<8xf32>
    %915 = vector.shape_cast %914 : vector<8xf32> to vector<8x1xf32>
    %916 = tpu.reciprocal %915 {approx = true} : vector<8x1xf32> -> vector<8x1xf32>
    %917 = vector.broadcast %916 : vector<8x1xf32> to vector<8x8xf32>
    %918 = arith.mulf %913, %917 : vector<8x8xf32>
    %919 = arith.mulf %918, %865 : vector<8x8xf32>
    %920 = arith.mulf %918, %872 : vector<8x8xf32>
    %921 = tpu.concatenate %919, %920 in 1 : vector<8x8xf32>, vector<8x8xf32> -> vector<8x16xf32>
    %922 = tpu.concatenate %890, %892 in 0 : vector<8x64xf32>, vector<8x64xf32> -> vector<16x64xf32>
    %cst_213 = arith.constant dense<0.000000e+00> : vector<8x64xf32>
    %923 = tpu.matmul %921, %922, %cst_213 {dimension_numbers = #tpu.dot_dimension_numbers<[1], [0], [0], [1], [0, 0, 1, 1], [], []>} : vector<8x16xf32>, vector<16x64xf32>, vector<8x64xf32> -> vector<8x64xf32>
    %924 = arith.addf %919, %920 : vector<8x8xf32>
    %cst_214 = arith.constant dense<0.000000e+00> : vector<8x64xf32>
    %925 = tpu.matmul %924, %878, %cst_214 {dimension_numbers = #tpu.dot_dimension_numbers<[1], [0], [0], [1], [0, 0, 1, 1], [], []>} : vector<8x8xf32>, vector<8x64xf32>, vector<8x64xf32> -> vector<8x64xf32>
    %926 = tpu.concatenate %923, %925 in 1 : vector<8x64xf32>, vector<8x64xf32> -> vector<8x128xf32>
    %c0_215 = arith.constant 0 : index
    %c0_216 = arith.constant 0 : index
    %927 = vector.load %arg32[%c0_215, %c0_216] : memref<128x32xf32, #tpu.memory_space<vmem>>, vector<128x32xf32>
    %cst_217 = arith.constant dense<0.000000e+00> : vector<8x32xf32>
    %928 = tpu.matmul %926, %927, %cst_217 {dimension_numbers = #tpu.dot_dimension_numbers<[1], [0], [0], [1], [0, 0, 1, 1], [], []>} : vector<8x128xf32>, vector<128x32xf32>, vector<8x32xf32> -> vector<8x32xf32>
    %c0_218 = arith.constant 0 : index
    %c0_219 = arith.constant 0 : index
    %929 = vector.load %arg33[%c0_218, %c0_219] : memref<1x32xf32, #tpu.memory_space<vmem>>, vector<1x32xf32>
    %930 = vector.broadcast %929 : vector<1x32xf32> to vector<8x32xf32>
    %931 = arith.addf %928, %930 : vector<8x32xf32>
    %cst_220 = arith.constant 0.000000e+00 : f32
    %932 = vector.broadcast %cst_220 : f32 to vector<8x32xf32>
    %933 = arith.maximumf %931, %932 : vector<8x32xf32>
    %c0_221 = arith.constant 0 : index
    %c0_222 = arith.constant 0 : index
    %934 = vector.load %arg34[%c0_221, %c0_222] : memref<32x32xf32, #tpu.memory_space<vmem>>, vector<32x32xf32>
    %cst_223 = arith.constant dense<0.000000e+00> : vector<8x32xf32>
    %935 = tpu.matmul %933, %934, %cst_223 {dimension_numbers = #tpu.dot_dimension_numbers<[1], [0], [0], [1], [0, 0, 1, 1], [], []>} : vector<8x32xf32>, vector<32x32xf32>, vector<8x32xf32> -> vector<8x32xf32>
    %c0_224 = arith.constant 0 : index
    %c0_225 = arith.constant 0 : index
    %936 = vector.load %arg35[%c0_224, %c0_225] : memref<1x32xf32, #tpu.memory_space<vmem>>, vector<1x32xf32>
    %937 = vector.broadcast %936 : vector<1x32xf32> to vector<8x32xf32>
    %938 = arith.addf %935, %937 : vector<8x32xf32>
    %cst_226 = arith.constant 0.000000e+00 : f32
    %939 = vector.broadcast %cst_226 : f32 to vector<8x32xf32>
    %940 = arith.maximumf %938, %939 : vector<8x32xf32>
    %c0_227 = arith.constant 0 : index
    %c0_228 = arith.constant 0 : index
    %941 = vector.load %arg36[%c0_227, %c0_228] : memref<32x7xf32, #tpu.memory_space<vmem>>, vector<32x7xf32>
    %cst_229 = arith.constant dense<0.000000e+00> : vector<8x7xf32>
    %942 = tpu.matmul %940, %941, %cst_229 {dimension_numbers = #tpu.dot_dimension_numbers<[1], [0], [0], [1], [0, 0, 1, 1], [], []>} : vector<8x32xf32>, vector<32x7xf32>, vector<8x7xf32> -> vector<8x7xf32>
    %c0_230 = arith.constant 0 : index
    %c0_231 = arith.constant 0 : index
    %943 = vector.load %arg37[%c0_230, %c0_231] : memref<1x7xf32, #tpu.memory_space<vmem>>, vector<1x7xf32>
    %944 = vector.broadcast %943 : vector<1x7xf32> to vector<8x7xf32>
    %945 = arith.addf %942, %944 : vector<8x7xf32>
    %cst_232 = arith.constant dense<0xFF800000> : vector<8xf32>
    %946 = vector.multi_reduction <maximumf>, %945, %cst_232 [1] : vector<8x7xf32> to vector<8xf32>
    %947 = vector.shape_cast %946 : vector<8xf32> to vector<8x1xf32>
    %948 = vector.broadcast %947 : vector<8x1xf32> to vector<8x7xf32>
    %949 = arith.subf %945, %948 : vector<8x7xf32>
    %950 = math.exp %949 : vector<8x7xf32>
    %cst_233 = arith.constant dense<0.000000e+00> : vector<8xf32>
    %951 = vector.multi_reduction <add>, %950, %cst_233 [1] : vector<8x7xf32> to vector<8xf32>
    %952 = vector.shape_cast %951 : vector<8xf32> to vector<8x1xf32>
    %953 = math.log %952 : vector<8x1xf32>
    %954 = vector.broadcast %953 : vector<8x1xf32> to vector<8x7xf32>
    %955 = arith.subf %949, %954 : vector<8x7xf32>
    %c0_234 = arith.constant 0 : index
    %c0_235 = arith.constant 0 : index
    %c0_236 = arith.constant 0 : index
    %956 = vector.load %arg38[%c0_234, %c0_235, %c0_236] : memref<1x8x7xf32, #tpu.memory_space<vmem>>, vector<1x8x7xf32>
    %957 = vector.shape_cast %956 : vector<1x8x7xf32> to vector<8x7xf32>
    %958 = vector.shape_cast %955 : vector<8x7xf32> to vector<1x8x7xf32>
    tpu.vector_store %arg38[%c0_234, %c0_235, %c0_236], %958 {strides = array<i32>} : memref<1x8x7xf32, #tpu.memory_space<vmem>>, vector<1x8x7xf32>,
    return
  }
  func.func @transform_0(%arg0: i32) -> (i32, i32, i32) {
    %c0_i32 = arith.constant 0 : i32
    %c0_i32_0 = arith.constant 0 : i32
    %c0_i32_1 = arith.constant 0 : i32
    %c0_i32_2 = arith.constant 0 : i32
    return %c0_i32, %c0_i32_0, %c0_i32_1 : i32, i32, i32
  }
  func.func @transform_1(%arg0: i32) -> (i32, i32, i32) {
    %c0_i32 = arith.constant 0 : i32
    %c0_i32_0 = arith.constant 0 : i32
    %c0_i32_1 = arith.constant 0 : i32
    %c0_i32_2 = arith.constant 0 : i32
    return %c0_i32, %c0_i32_0, %c0_i32_1 : i32, i32, i32
  }
  func.func @transform_2(%arg0: i32) -> (i32, i32, i32) {
    %c0_i32 = arith.constant 0 : i32
    %c0_i32_0 = arith.constant 0 : i32
    %c0_i32_1 = arith.constant 0 : i32
    %c0_i32_2 = arith.constant 0 : i32
    return %c0_i32, %c0_i32_0, %c0_i32_1 : i32, i32, i32
  }
  func.func @transform_3(%arg0: i32) -> (i32, i32, i32) {
    %c0_i32 = arith.constant 0 : i32
    %c0_i32_0 = arith.constant 0 : i32
    %c0_i32_1 = arith.constant 0 : i32
    %c0_i32_2 = arith.constant 0 : i32
    return %c0_i32, %c0_i32_0, %c0_i32_1 : i32, i32, i32
  }
  func.func @transform_4(%arg0: i32) -> (i32, i32, i32) {
    %c0_i32 = arith.constant 0 : i32
    %c0_i32_0 = arith.constant 0 : i32
    %c0_i32_1 = arith.constant 0 : i32
    %c0_i32_2 = arith.constant 0 : i32
    return %c0_i32, %c0_i32_0, %c0_i32_1 : i32, i32, i32
  }
  func.func @transform_5(%arg0: i32) -> (i32, i32, i32) {
    %c0_i32 = arith.constant 0 : i32
    %c0_i32_0 = arith.constant 0 : i32
    %c0_i32_1 = arith.constant 0 : i32
    %c0_i32_2 = arith.constant 0 : i32
    return %c0_i32, %c0_i32_0, %c0_i32_1 : i32, i32, i32
  }
  func.func @transform_6(%arg0: i32) -> (i32, i32, i32) {
    %c0_i32 = arith.constant 0 : i32
    %c0_i32_0 = arith.constant 0 : i32
    %c0_i32_1 = arith.constant 0 : i32
    %c0_i32_2 = arith.constant 0 : i32
    return %c0_i32, %c0_i32_0, %c0_i32_1 : i32, i32, i32
  }
  func.func @transform_7(%arg0: i32) -> (i32, i32, i32) {
    %c0_i32 = arith.constant 0 : i32
    %c0_i32_0 = arith.constant 0 : i32
    %c0_i32_1 = arith.constant 0 : i32
    %c0_i32_2 = arith.constant 0 : i32
    return %c0_i32, %c0_i32_0, %c0_i32_1 : i32, i32, i32
  }
  func.func @transform_8(%arg0: i32) -> (i32, i32, i32) {
    %c0_i32 = arith.constant 0 : i32
    %c0_i32_0 = arith.constant 0 : i32
    %c0_i32_1 = arith.constant 0 : i32
    %c0_i32_2 = arith.constant 0 : i32
    return %c0_i32, %c0_i32_0, %c0_i32_1 : i32, i32, i32
  }
  func.func @transform_9(%arg0: i32) -> (i32, i32, i32) {
    %c0_i32 = arith.constant 0 : i32
    %c0_i32_0 = arith.constant 0 : i32
    %c0_i32_1 = arith.constant 0 : i32
    %c0_i32_2 = arith.constant 0 : i32
    return %c0_i32, %c0_i32_0, %c0_i32_1 : i32, i32, i32
  }
  func.func @transform_10(%arg0: i32) -> (i32, i32) {
    %c0_i32 = arith.constant 0 : i32
    %c0_i32_0 = arith.constant 0 : i32
    %c0_i32_1 = arith.constant 0 : i32
    return %c0_i32, %c0_i32_0 : i32, i32
  }
  func.func @transform_11(%arg0: i32) -> (i32, i32, i32) {
    %c0_i32 = arith.constant 0 : i32
    %c0_i32_0 = arith.constant 0 : i32
    %c0_i32_1 = arith.constant 0 : i32
    %c0_i32_2 = arith.constant 0 : i32
    return %c0_i32, %c0_i32_0, %c0_i32_1 : i32, i32, i32
  }
  func.func @transform_12(%arg0: i32) -> (i32, i32, i32) {
    %c0_i32 = arith.constant 0 : i32
    %c0_i32_0 = arith.constant 0 : i32
    %c0_i32_1 = arith.constant 0 : i32
    %c0_i32_2 = arith.constant 0 : i32
    return %c0_i32, %c0_i32_0, %c0_i32_1 : i32, i32, i32
  }
  func.func @transform_13(%arg0: i32) -> (i32, i32) {
    %c0_i32 = arith.constant 0 : i32
    %c0_i32_0 = arith.constant 0 : i32
    %c0_i32_1 = arith.constant 0 : i32
    return %c0_i32, %c0_i32_0 : i32, i32
  }
  func.func @transform_14(%arg0: i32) -> (i32, i32) {
    %c0_i32 = arith.constant 0 : i32
    %c0_i32_0 = arith.constant 0 : i32
    %c0_i32_1 = arith.constant 0 : i32
    return %c0_i32, %c0_i32_0 : i32, i32
  }
  func.func @transform_15(%arg0: i32) -> (i32, i32) {
    %c0_i32 = arith.constant 0 : i32
    %c0_i32_0 = arith.constant 0 : i32
    %c0_i32_1 = arith.constant 0 : i32
    return %c0_i32, %c0_i32_0 : i32, i32
  }
  func.func @transform_16(%arg0: i32) -> (i32, i32) {
    %c0_i32 = arith.constant 0 : i32
    %c0_i32_0 = arith.constant 0 : i32
    %c0_i32_1 = arith.constant 0 : i32
    return %c0_i32, %c0_i32_0 : i32, i32
  }
  func.func @transform_17(%arg0: i32) -> (i32, i32) {
    %c0_i32 = arith.constant 0 : i32
    %c0_i32_0 = arith.constant 0 : i32
    %c0_i32_1 = arith.constant 0 : i32
    return %c0_i32, %c0_i32_0 : i32, i32
  }
  func.func @transform_18(%arg0: i32) -> (i32, i32) {
    %c0_i32 = arith.constant 0 : i32
    %c0_i32_0 = arith.constant 0 : i32
    %c0_i32_1 = arith.constant 0 : i32
    return %c0_i32, %c0_i32_0 : i32, i32
  }
  func.func @transform_19(%arg0: i32) -> (i32, i32) {
    %c0_i32 = arith.constant 0 : i32
    %c0_i32_0 = arith.constant 0 : i32
    %c0_i32_1 = arith.constant 0 : i32
    return %c0_i32, %c0_i32_0 : i32, i32
  }
  func.func @transform_20(%arg0: i32) -> (i32, i32) {
    %c0_i32 = arith.constant 0 : i32
    %c0_i32_0 = arith.constant 0 : i32
    %c0_i32_1 = arith.constant 0 : i32
    return %c0_i32, %c0_i32_0 : i32, i32
  }
  func.func @transform_21(%arg0: i32) -> (i32, i32) {
    %c0_i32 = arith.constant 0 : i32
    %c0_i32_0 = arith.constant 0 : i32
    %c0_i32_1 = arith.constant 0 : i32
    return %c0_i32, %c0_i32_0 : i32, i32
  }
  func.func @transform_22(%arg0: i32) -> (i32, i32) {
    %c0_i32 = arith.constant 0 : i32
    %c0_i32_0 = arith.constant 0 : i32
    %c0_i32_1 = arith.constant 0 : i32
    return %c0_i32, %c0_i32_0 : i32, i32
  }
  func.func @transform_23(%arg0: i32) -> (i32, i32) {
    %c0_i32 = arith.constant 0 : i32
    %c0_i32_0 = arith.constant 0 : i32
    %c0_i32_1 = arith.constant 0 : i32
    return %c0_i32, %c0_i32_0 : i32, i32
  }
  func.func @transform_24(%arg0: i32) -> (i32, i32) {
    %c0_i32 = arith.constant 0 : i32
    %c0_i32_0 = arith.constant 0 : i32
    %c0_i32_1 = arith.constant 0 : i32
    return %c0_i32, %c0_i32_0 : i32, i32
  }
  func.func @transform_25(%arg0: i32) -> (i32, i32) {
    %c0_i32 = arith.constant 0 : i32
    %c0_i32_0 = arith.constant 0 : i32
    %c0_i32_1 = arith.constant 0 : i32
    return %c0_i32, %c0_i32_0 : i32, i32
  }
  func.func @transform_26(%arg0: i32) -> (i32, i32) {
    %c0_i32 = arith.constant 0 : i32
    %c0_i32_0 = arith.constant 0 : i32
    %c0_i32_1 = arith.constant 0 : i32
    return %c0_i32, %c0_i32_0 : i32, i32
  }
  func.func @transform_27(%arg0: i32) -> (i32, i32) {
    %c0_i32 = arith.constant 0 : i32
    %c0_i32_0 = arith.constant 0 : i32
    %c0_i32_1 = arith.constant 0 : i32
    return %c0_i32, %c0_i32_0 : i32, i32
  }
  func.func @transform_28(%arg0: i32) -> (i32, i32) {
    %c0_i32 = arith.constant 0 : i32
    %c0_i32_0 = arith.constant 0 : i32
    %c0_i32_1 = arith.constant 0 : i32
    return %c0_i32, %c0_i32_0 : i32, i32
  }
  func.func @transform_29(%arg0: i32) -> (i32, i32) {
    %c0_i32 = arith.constant 0 : i32
    %c0_i32_0 = arith.constant 0 : i32
    %c0_i32_1 = arith.constant 0 : i32
    return %c0_i32, %c0_i32_0 : i32, i32
  }
  func.func @transform_30(%arg0: i32) -> (i32, i32) {
    %c0_i32 = arith.constant 0 : i32
    %c0_i32_0 = arith.constant 0 : i32
    %c0_i32_1 = arith.constant 0 : i32
    return %c0_i32, %c0_i32_0 : i32, i32
  }
  func.func @transform_31(%arg0: i32) -> (i32, i32) {
    %c0_i32 = arith.constant 0 : i32
    %c0_i32_0 = arith.constant 0 : i32
    %c0_i32_1 = arith.constant 0 : i32
    return %c0_i32, %c0_i32_0 : i32, i32
  }
  func.func @transform_32(%arg0: i32) -> (i32, i32) {
    %c0_i32 = arith.constant 0 : i32
    %c0_i32_0 = arith.constant 0 : i32
    %c0_i32_1 = arith.constant 0 : i32
    return %c0_i32, %c0_i32_0 : i32, i32
  }
  func.func @transform_33(%arg0: i32) -> (i32, i32) {
    %c0_i32 = arith.constant 0 : i32
    %c0_i32_0 = arith.constant 0 : i32
    %c0_i32_1 = arith.constant 0 : i32
    return %c0_i32, %c0_i32_0 : i32, i32
  }
  func.func @transform_34(%arg0: i32) -> (i32, i32) {
    %c0_i32 = arith.constant 0 : i32
    %c0_i32_0 = arith.constant 0 : i32
    %c0_i32_1 = arith.constant 0 : i32
    return %c0_i32, %c0_i32_0 : i32, i32
  }
  func.func @transform_35(%arg0: i32) -> (i32, i32) {
    %c0_i32 = arith.constant 0 : i32
    %c0_i32_0 = arith.constant 0 : i32
    %c0_i32_1 = arith.constant 0 : i32
    return %c0_i32, %c0_i32_0 : i32, i32
  }
  func.func @transform_36(%arg0: i32) -> (i32, i32) {
    %c0_i32 = arith.constant 0 : i32
    %c0_i32_0 = arith.constant 0 : i32
    %c0_i32_1 = arith.constant 0 : i32
    return %c0_i32, %c0_i32_0 : i32, i32
  }
  func.func @transform_37(%arg0: i32) -> (i32, i32, i32) {
    %c0_i32 = arith.constant 0 : i32
    %c0_i32_0 = arith.constant 0 : i32
    %c0_i32_1 = arith.constant 0 : i32
    return %arg0, %c0_i32, %c0_i32_0 : i32, i32, i32
  }
}

</mosaic_0001>

<llo_original>
// kernel: cauain_forward.1
$region0: #{cauain_forward.1}
  #allocation0 [shape = 'u32[]', space=smem, size = 0x4, offset = 0x4, fixed_abs, tag = 'smem constant byte address 0x4 - core index']
  #allocation1 [shape = 'u32[72,128]{1,0:T(1,128)}', space=vmem, size = 0x9000, scoped, tag = 'internal scratch']
  %s0 = inlined_call_operand.smem [shape: u32[38], index: -1, kind: input, shape index: {}]
  %s1 = sld [smem:[%s0]]
  %s2 = scalar_lea.smem %s0, 1
  %s3 = sld [smem:[%s2]]
  %s4 = scalar_lea.smem %s0, 2
  %s5 = sld [smem:[%s4]]
  %s6 = scalar_lea.smem %s0, 3
  %s7 = sld [smem:[%s6]]
  %s8 = scalar_lea.smem %s0, 4
  %s9 = sld [smem:[%s8]]
  %s10 = scalar_lea.smem %s0, 5
  %s11 = sld [smem:[%s10]]
  %s12 = scalar_lea.smem %s0, 6
  %s13 = sld [smem:[%s12]]
  %s14 = scalar_lea.smem %s0, 7
  %s15 = sld [smem:[%s14]]
  %s16 = scalar_lea.smem %s0, 8
  %s17 = sld [smem:[%s16]]
  %s18 = scalar_lea.smem %s0, 9
  %s19 = sld [smem:[%s18]]
  %s20 = scalar_lea.smem %s0, 10
  %s21 = sld [smem:[%s20]]
  %s22 = scalar_lea.smem %s0, 11
  %s23 = sld [smem:[%s22]]
  %s24 = scalar_lea.smem %s0, 12
  %s25 = sld [smem:[%s24]]
  %s26 = scalar_lea.smem %s0, 13
  %s27 = sld [smem:[%s26]]
  %s28 = scalar_lea.smem %s0, 14
  %s29 = sld [smem:[%s28]]
  %s30 = scalar_lea.smem %s0, 15
  %s31 = sld [smem:[%s30]]
  %s32 = scalar_lea.smem %s0, 16
  %s33 = sld [smem:[%s32]]
  %s34 = scalar_lea.smem %s0, 17
  %s35 = sld [smem:[%s34]]
  %s36 = scalar_lea.smem %s0, 18
  %s37 = sld [smem:[%s36]]
  %s38 = scalar_lea.smem %s0, 19
  %s39 = sld [smem:[%s38]]
  %s40 = scalar_lea.smem %s0, 20
  %s41 = sld [smem:[%s40]]
  %s42 = scalar_lea.smem %s0, 21
  %s43 = sld [smem:[%s42]]
  %s44 = scalar_lea.smem %s0, 22
  %s45 = sld [smem:[%s44]]
  %s46 = scalar_lea.smem %s0, 23
  %s47 = sld [smem:[%s46]]
  %s48 = scalar_lea.smem %s0, 24
  %s49 = sld [smem:[%s48]]
  %s50 = scalar_lea.smem %s0, 25
  %s51 = sld [smem:[%s50]]
  %s52 = scalar_lea.smem %s0, 26
  %s53 = sld [smem:[%s52]]
  %s54 = scalar_lea.smem %s0, 27
  %s55 = sld [smem:[%s54]]
  %s56 = scalar_lea.smem %s0, 28
  %s57 = sld [smem:[%s56]]
  %s58 = scalar_lea.smem %s0, 29
  %s59 = sld [smem:[%s58]]
  %s60 = scalar_lea.smem %s0, 30
  %s61 = sld [smem:[%s60]]
  %s62 = scalar_lea.smem %s0, 31
  %s63 = sld [smem:[%s62]]
  %s64 = scalar_lea.smem %s0, 32
  %s65 = sld [smem:[%s64]]
  %s66 = scalar_lea.smem %s0, 33
  %s67 = sld [smem:[%s66]]
  %s68 = scalar_lea.smem %s0, 34
  %s69 = sld [smem:[%s68]]
  %s70 = scalar_lea.smem %s0, 35
  %s71 = sld [smem:[%s70]]
  %s72 = scalar_lea.smem %s0, 36
  %s73 = sld [smem:[%s72]]
  %s74 = scalar_lea.smem %s0, 37
  %s75 = sld [smem:[%s74]]
  %s76 = sld [smem:[#allocation0]]
  $region305: #{cauain_forward.1} parent=0
    _
  %s78 = ssub.s32 1, %s76
  %s79 = scalar_select 0, %s78, %s76
  $region1: #{cauain_forward.1} parent=0
    #allocation2 [shape = 'u8[8192]{0}', space=vmem, size = 0x2000, scoped, tag = 'input window, operand 0, single buffered']
    #allocation3 [shape = 's32[2]{0}', space=sflag, size = 0x8, scoped, tag = 'scoped memory for cauain_forward.1']
    #allocation4 [shape = 'u8[8192]{0}', space=vmem, size = 0x2000, scoped, tag = 'input window, operand 1, single buffered']
    #allocation5 [shape = 's32[1]{0}', space=sflag, size = 0x4, scoped, tag = 'scoped memory for cauain_forward.1']
    #allocation6 [shape = 'u8[8192]{0}', space=vmem, size = 0x2000, scoped, tag = 'input window, operand 2, single buffered']
    #allocation7 [shape = 'u8[8192]{0}', space=vmem, size = 0x2000, scoped, tag = 'input window, operand 3, single buffered']
    #allocation8 [shape = 's32[1]{0}', space=sflag, size = 0x4, scoped, tag = 'scoped memory for cauain_forward.1']
    #allocation9 [shape = 'u8[8192]{0}', space=vmem, size = 0x2000, scoped, tag = 'input window, operand 4, single buffered']
    #allocation10 [shape = 'u8[8192]{0}', space=vmem, size = 0x2000, scoped, tag = 'input window, operand 5, single buffered']
    #allocation11 [shape = 's32[1]{0}', space=sflag, size = 0x4, scoped, tag = 'scoped memory for cauain_forward.1']
    #allocation12 [shape = 'u8[8192]{0}', space=vmem, size = 0x2000, scoped, tag = 'input window, operand 6, single buffered']
    #allocation13 [shape = 'u8[8192]{0}', space=vmem, size = 0x2000, scoped, tag = 'input window, operand 7, single buffered']
    #allocation14 [shape = 's32[1]{0}', space=sflag, size = 0x4, scoped, tag = 'scoped memory for cauain_forward.1']
    #allocation15 [shape = 'u8[8192]{0}', space=vmem, size = 0x2000, scoped, tag = 'input window, operand 8, single buffered']
    #allocation16 [shape = 'u8[8192]{0}', space=vmem, size = 0x2000, scoped, tag = 'input window, operand 9, single buffered']
    #allocation17 [shape = 's32[1]{0}', space=sflag, size = 0x4, scoped, tag = 'scoped memory for cauain_forward.1']
    #allocation18 [shape = 'u8[8192]{0}', space=vmem, size = 0x2000, scoped, tag = 'input window, operand 11, single buffered']
    #allocation19 [shape = 'u8[8192]{0}', space=vmem, size = 0x2000, scoped, tag = 'input window, operand 12, single buffered']
    #allocation20 [shape = 's32[1]{0}', space=sflag, size = 0x4, scoped, tag = 'scoped memory for cauain_forward.1']
    #allocation21 [shape = 'u8[16384]{0}', space=vmem, size = 0x4000, scoped, tag = 'input window, operand 15, single buffered']
    #allocation22 [shape = 'u8[512]{0}', space=vmem, size = 0x400, scoped, tag = 'input window, operand 16, single buffered']
    #allocation23 [shape = 's32[1]{0}', space=sflag, size = 0x4, scoped, tag = 'scoped memory for cauain_forward.1']
    #allocation24 [shape = 'u8[16384]{0}', space=vmem, size = 0x4000, scoped, tag = 'input window, operand 17, single buffered']
    #allocation25 [shape = 'u8[16384]{0}', space=vmem, size = 0x4000, scoped, tag = 'input window, operand 18, single buffered']
    #allocation26 [shape = 's32[1]{0}', space=sflag, size = 0x4, scoped, tag = 'scoped memory for cauain_forward.1']
    #allocation27 [shape = 'u8[512]{0}', space=vmem, size = 0x400, scoped, tag = 'input window, operand 19, single buffered']
    #allocation28 [shape = 'u8[16384]{0}', space=vmem, size = 0x4000, scoped, tag = 'input window, operand 20, single buffered']
    #allocation29 [shape = 's32[1]{0}', space=sflag, size = 0x4, scoped, tag = 'scoped memory for cauain_forward.1']
    #allocation30 [shape = 'u8[16384]{0}', space=vmem, size = 0x4000, scoped, tag = 'input window, operand 21, single buffered']
    #allocation31 [shape = 'u8[512]{0}', space=vmem, size = 0x400, scoped, tag = 'input window, operand 22, single buffered']
    #allocation32 [shape = 's32[1]{0}', space=sflag, size = 0x4, scoped, tag = 'scoped memory for cauain_forward.1']
    #allocation33 [shape = 'u8[24576]{0}', space=vmem, size = 0x6000, scoped, tag = 'input window, operand 23, single buffered']
    #allocation34 [shape = 'u8[512]{0}', space=vmem, size = 0x400, scoped, tag = 'input window, operand 24, single buffered']
    #allocation35 [shape = 's32[1]{0}', space=sflag, size = 0x4, scoped, tag = 'scoped memory for cauain_forward.1']
    #allocation36 [shape = 'u8[24576]{0}', space=vmem, size = 0x6000, scoped, tag = 'input window, operand 25, single buffered']
    #allocation37 [shape = 'u8[512]{0}', space=vmem, size = 0x400, scoped, tag = 'input window, operand 26, single buffered']
    #allocation38 [shape = 's32[1]{0}', space=sflag, size = 0x4, scoped, tag = 'scoped memory for cauain_forward.1']
    #allocation39 [shape = 'u8[65536]{0}', space=vmem, size = 0x10000, scoped, tag = 'input window, operand 27, single buffered']
    #allocation40 [shape = 'u8[32768]{0}', space=vmem, size = 0x8000, scoped, tag = 'input window, operand 29, single buffered']
    #allocation41 [shape = 's32[1]{0}', space=sflag, size = 0x4, scoped, tag = 'scoped memory for cauain_forward.1']
    #allocation42 [shape = 'u8[512]{0}', space=vmem, size = 0x400, scoped, tag = 'input window, operand 30, single buffered']
    #allocation43 [shape = 'u8[65536]{0}', space=vmem, size = 0x10000, scoped, tag = 'input window, operand 31, single buffered']
    #allocation44 [shape = 's32[1]{0}', space=sflag, size = 0x4, scoped, tag = 'scoped memory for cauain_forward.1']
    #allocation45 [shape = 'u8[512]{0}', space=vmem, size = 0x400, scoped, tag = 'input window, operand 32, single buffered']
    #allocation46 [shape = 'u8[16384]{0}', space=vmem, size = 0x4000, scoped, tag = 'input window, operand 33, single buffered']
    #allocation47 [shape = 's32[1]{0}', space=sflag, size = 0x4, scoped, tag = 'scoped memory for cauain_forward.1']
    #allocation48 [shape = 'u8[512]{0}', space=vmem, size = 0x400, scoped, tag = 'input window, operand 34, single buffered']
    %80 = vsyncpa [#allocation3], 0
    %81 = vsyncpa [#allocation5], 0
    %82 = vsyncpa [#allocation8], 0
    %83 = vsyncpa [#allocation11], 0
    %84 = vsyncpa [#allocation14], 0
    %85 = vsyncpa [#allocation17], 0
    %86 = vsyncpa [#allocation20], 0
    %87 = vsyncpa [#allocation23], 0
    %88 = vsyncpa [#allocation26], 0
    %89 = vsyncpa [#allocation29], 0
    %90 = vsyncpa [#allocation32], 0
    %91 = vsyncpa [#allocation35], 0
    %92 = vsyncpa [#allocation38], 0
    %93 = vsyncpa [#allocation41], 0
    %94 = vsyncpa [#allocation44], 0
    %95 = vsyncpa [#allocation47], 0
    loop: start=0, step=1, limit=4
    $region2: #{cauain_forward.1} parent=1 // loop_pre_header
      _
    $region3: #{cauain_forward.1} parent=1 // loop_header
      %s97 = sphi 0, %s101
      %p98 = scmp.ge.s32.totalorder %s97, 4
      %s105 = sphi 0, %s105
      %s107 = sphi 0, %s105
      %s108 = sphi 0, %s107
      %s122 = sphi 0, %s108
      %s126 = sphi 0, %s126
      %s128 = sphi 0, %s126
      %s129 = sphi 0, %s128
      %s143 = sphi 0, %s129
      %s147 = sphi 0, %s147
      %s149 = sphi 0, %s147
      %s150 = sphi 0, %s149
      %s164 = sphi 0, %s150
      %s168 = sphi 0, %s168
      %s170 = sphi 0, %s168
      %s171 = sphi 0, %s170
      %s185 = sphi 0, %s171
      %s189 = sphi 0, %s189
      %s191 = sphi 0, %s189
      %s192 = sphi 0, %s191
      %s206 = sphi 0, %s192
      %s210 = sphi 0, %s210
      %s212 = sphi 0, %s210
      %s213 = sphi 0, %s212
      %s227 = sphi 0, %s213
      %s231 = sphi 0, %s231
      %s233 = sphi 0, %s231
      %s234 = sphi 0, %s233
      %s248 = sphi 0, %s234
      %s252 = sphi 0, %s252
      %s254 = sphi 0, %s252
      %s255 = sphi 0, %s254
      %s269 = sphi 0, %s255
      %s273 = sphi 0, %s273
      %s275 = sphi 0, %s273
      %s276 = sphi 0, %s275
      %s290 = sphi 0, %s276
      %s294 = sphi 0, %s294
      %s296 = sphi 0, %s294
      %s297 = sphi 0, %s296
      %s311 = sphi 0, %s297
      %s315 = sphi 0, %s315
      %s317 = sphi 0, %s315
      %s318 = sphi 0, %s317
      %s332 = sphi 0, %s318
      %s336 = sphi 0, %s336
      %s338 = sphi 0, %s336
      %s339 = sphi 0, %s338
      %s353 = sphi 0, %s339
      %s357 = sphi 0, %s357
      %s359 = sphi 0, %s357
      %s360 = sphi 0, %s359
      %s374 = sphi 0, %s360
      %s378 = sphi 0, %s378
      %s380 = sphi 0, %s378
      %s381 = sphi 0, %s380
      %s395 = sphi 0, %s381
      %s399 = sphi 0, %s399
      %s401 = sphi 0, %s399
      %s402 = sphi 0, %s401
      %s416 = sphi 0, %s402
      %s420 = sphi 0, %s420
      %s422 = sphi 0, %s420
      %s423 = sphi 0, %s422
      %s437 = sphi 0, %s423
      %s441 = sphi 0, %s441
      %s443 = sphi 0, %s441
      %s444 = sphi 0, %s443
      %s458 = sphi 0, %s444
      %s462 = sphi 0, %s462
      %s464 = sphi 0, %s462
      %s465 = sphi 0, %s464
      %s479 = sphi 0, %s465
      %s483 = sphi 0, %s483
      %s485 = sphi 0, %s483
      %s486 = sphi 0, %s485
      %s500 = sphi 0, %s486
      %s504 = sphi 0, %s504
      %s506 = sphi 0, %s504
      %s507 = sphi 0, %s506
      %s521 = sphi 0, %s507
      %s525 = sphi 0, %s525
      %s527 = sphi 0, %s525
      %s528 = sphi 0, %s527
      %s542 = sphi 0, %s528
      %s546 = sphi 0, %s546
      %s548 = sphi 0, %s546
      %s549 = sphi 0, %s548
      %s563 = sphi 0, %s549
      %s567 = sphi 0, %s567
      %s569 = sphi 0, %s567
      %s570 = sphi 0, %s569
      %s584 = sphi 0, %s570
      %s588 = sphi 0, %s588
      %s590 = sphi 0, %s588
      %s591 = sphi 0, %s590
      %s605 = sphi 0, %s591
      %s609 = sphi 0, %s609
      %s611 = sphi 0, %s609
      %s612 = sphi 0, %s611
      %s626 = sphi 0, %s612
      %s630 = sphi 0, %s630
      %s632 = sphi 0, %s630
      %s633 = sphi 0, %s632
      %s647 = sphi 0, %s633
      %s651 = sphi 0, %s651
      %s653 = sphi 0, %s651
      %s654 = sphi 0, %s653
      %s668 = sphi 0, %s654
      %s672 = sphi 0, %s672
      %s674 = sphi 0, %s672
      %s675 = sphi 0, %s674
      %s689 = sphi 0, %s675
      %s693 = sphi 0, %s693
      %s695 = sphi 0, %s693
      %s696 = sphi 0, %s695
      %s710 = sphi 0, %s696
      %s714 = sphi 0, %s714
      %s716 = sphi 0, %s714
      %s717 = sphi 0, %s716
      %s731 = sphi 0, %s717
      %s735 = sphi 0, %s735
      %s737 = sphi 0, %s735
      %s738 = sphi 0, %s737
      %s752 = sphi 0, %s738
      %s756 = sphi 0, %s756
      %s758 = sphi 0, %s756
      %s759 = sphi 0, %s758
      %s773 = sphi 0, %s759
      %s777 = sphi 0, %s777
      %s779 = sphi 0, %s777
      %s780 = sphi 0, %s779
      %s794 = sphi 0, %s780
      %s798 = sphi 0, %s798
      %s800 = sphi 0, %s798
      %s801 = sphi 0, %s800
      %s815 = sphi 0, %s801
      %s819 = sphi 0, %s819
      %s821 = sphi 0, %s819
      %s822 = sphi 0, %s821
      %s836 = sphi 0, %s822
      %s840 = sphi 0, %s840
      %s842 = sphi 0, %s840
      %s843 = sphi 0, %s842
      %s857 = sphi 0, %s843
      %s861 = sphi 0, %s861
      %s863 = sphi 0, %s861
      %s864 = sphi 0, %s863
      %s878 = sphi 0, %s864
      %s884 = sphi 0, %s886
      %s887 = sphi 0, %s884
      %s888 = sphi 0, %s887
      %s904 = sphi 0, %s888
    $region4: #{cauain_forward.1} parent=1 // loop_header_branch
      %100 = sbr.rel (%p98) target = $region8
    $region5: #{cauain_forward.1} parent=1 // loop_body
      %s102 = ssub.s32 %s97, 1
      %s103 = ssub.s32 %s97, 2
      %s104 = sadd.s32 %s97, 1
      %s106 = sadd.s32 %s105, 1
      %p109 = scmp.eq.s32.totalorder %s97, 1
      %p110 = scmp.ne.s32.totalorder %s105, %s107
      %p111 = scmp.eq.s32.totalorder %s97, 0
      %p112 = por %p110, %p111
      %p113 = scmp.ne.s32.totalorder %s105, %s107
      %p114 = scmp.eq.s32.totalorder %s102, 1
      %p115 = por %p113, %p114
      %p116 = scmp.ne.s32.totalorder %s107, %s108
      %p117 = scmp.eq.s32.totalorder %s102, 0
      %p118 = por %p116, %p117
      %p119 = scmp.ne.s32.totalorder %s107, %s108
      %p120 = scmp.eq.s32.totalorder %s103, 1
      %p121 = por %p119, %p120
      %p123 = scmp.ne.s32.totalorder %s108, %s122
      %p124 = scmp.eq.s32.totalorder %s103, 0
      %p125 = por %p123, %p124
      %s127 = sadd.s32 %s126, 1
      %p130 = scmp.eq.s32.totalorder %s97, 1
      %p131 = scmp.ne.s32.totalorder %s126, %s128
      %p132 = scmp.eq.s32.totalorder %s97, 0
      %p133 = por %p131, %p132
      %p134 = scmp.ne.s32.totalorder %s126, %s128
      %p135 = scmp.eq.s32.totalorder %s102, 1
      %p136 = por %p134, %p135
      %p137 = scmp.ne.s32.totalorder %s128, %s129
      %p138 = scmp.eq.s32.totalorder %s102, 0
      %p139 = por %p137, %p138
      %p140 = scmp.ne.s32.totalorder %s128, %s129
      %p141 = scmp.eq.s32.totalorder %s103, 1
      %p142 = por %p140, %p141
      %p144 = scmp.ne.s32.totalorder %s129, %s143
      %p145 = scmp.eq.s32.totalorder %s103, 0
      %p146 = por %p144, %p145
      %s148 = sadd.s32 %s147, 1
      %p151 = scmp.eq.s32.totalorder %s97, 1
      %p152 = scmp.ne.s32.totalorder %s147, %s149
      %p153 = scmp.eq.s32.totalorder %s97, 0
      %p154 = por %p152, %p153
      %p155 = scmp.ne.s32.totalorder %s147, %s149
      %p156 = scmp.eq.s32.totalorder %s102, 1
      %p157 = por %p155, %p156
      %p158 = scmp.ne.s32.totalorder %s149, %s150
      %p159 = scmp.eq.s32.totalorder %s102, 0
      %p160 = por %p158, %p159
      %p161 = scmp.ne.s32.totalorder %s149, %s150
      %p162 = scmp.eq.s32.totalorder %s103, 1
      %p163 = por %p161, %p162
      %p165 = scmp.ne.s32.totalorder %s150, %s164
      %p166 = scmp.eq.s32.totalorder %s103, 0
      %p167 = por %p165, %p166
      %s169 = sadd.s32 %s168, 1
      %p172 = scmp.eq.s32.totalorder %s97, 1
      %p173 = scmp.ne.s32.totalorder %s168, %s170
      %p174 = scmp.eq.s32.totalorder %s97, 0
      %p175 = por %p173, %p174
      %p176 = scmp.ne.s32.totalorder %s168, %s170
      %p177 = scmp.eq.s32.totalorder %s102, 1
      %p178 = por %p176, %p177
      %p179 = scmp.ne.s32.totalorder %s170, %s171
      %p180 = scmp.eq.s32.totalorder %s102, 0
      %p181 = por %p179, %p180
      %p182 = scmp.ne.s32.totalorder %s170, %s171
      %p183 = scmp.eq.s32.totalorder %s103, 1
      %p184 = por %p182, %p183
      %p186 = scmp.ne.s32.totalorder %s171, %s185
      %p187 = scmp.eq.s32.totalorder %s103, 0
      %p188 = por %p186, %p187
      %s190 = sadd.s32 %s189, 1
      %p193 = scmp.eq.s32.totalorder %s97, 1
      %p194 = scmp.ne.s32.totalorder %s189, %s191
      %p195 = scmp.eq.s32.totalorder %s97, 0
      %p196 = por %p194, %p195
      %p197 = scmp.ne.s32.totalorder %s189, %s191
      %p198 = scmp.eq.s32.totalorder %s102, 1
      %p199 = por %p197, %p198
      %p200 = scmp.ne.s32.totalorder %s191, %s192
      %p201 = scmp.eq.s32.totalorder %s102, 0
      %p202 = por %p200, %p201
      %p203 = scmp.ne.s32.totalorder %s191, %s192
      %p204 = scmp.eq.s32.totalorder %s103, 1
      %p205 = por %p203, %p204
      %p207 = scmp.ne.s32.totalorder %s192, %s206
      %p208 = scmp.eq.s32.totalorder %s103, 0
      %p209 = por %p207, %p208
      %s211 = sadd.s32 %s210, 1
      %p214 = scmp.eq.s32.totalorder %s97, 1
      %p215 = scmp.ne.s32.totalorder %s210, %s212
      %p216 = scmp.eq.s32.totalorder %s97, 0
      %p217 = por %p215, %p216
      %p218 = scmp.ne.s32.totalorder %s210, %s212
      %p219 = scmp.eq.s32.totalorder %s102, 1
      %p220 = por %p218, %p219
      %p221 = scmp.ne.s32.totalorder %s212, %s213
      %p222 = scmp.eq.s32.totalorder %s102, 0
      %p223 = por %p221, %p222
      %p224 = scmp.ne.s32.totalorder %s212, %s213
      %p225 = scmp.eq.s32.totalorder %s103, 1
      %p226 = por %p224, %p225
      %p228 = scmp.ne.s32.totalorder %s213, %s227
      %p229 = scmp.eq.s32.totalorder %s103, 0
      %p230 = por %p228, %p229
      %s232 = sadd.s32 %s231, 1
      %p235 = scmp.eq.s32.totalorder %s97, 1
      %p236 = scmp.ne.s32.totalorder %s231, %s233
      %p237 = scmp.eq.s32.totalorder %s97, 0
      %p238 = por %p236, %p237
      %p239 = scmp.ne.s32.totalorder %s231, %s233
      %p240 = scmp.eq.s32.totalorder %s102, 1
      %p241 = por %p239, %p240
      %p242 = scmp.ne.s32.totalorder %s233, %s234
      %p243 = scmp.eq.s32.totalorder %s102, 0
      %p244 = por %p242, %p243
      %p245 = scmp.ne.s32.totalorder %s233, %s234
      %p246 = scmp.eq.s32.totalorder %s103, 1
      %p247 = por %p245, %p246
      %p249 = scmp.ne.s32.totalorder %s234, %s248
      %p250 = scmp.eq.s32.totalorder %s103, 0
      %p251 = por %p249, %p250
      %s253 = sadd.s32 %s252, 1
      %p256 = scmp.eq.s32.totalorder %s97, 1
      %p257 = scmp.ne.s32.totalorder %s252, %s254
      %p258 = scmp.eq.s32.totalorder %s97, 0
      %p259 = por %p257, %p258
      %p260 = scmp.ne.s32.totalorder %s252, %s254
      %p261 = scmp.eq.s32.totalorder %s102, 1
      %p262 = por %p260, %p261
      %p263 = scmp.ne.s32.totalorder %s254, %s255
      %p264 = scmp.eq.s32.totalorder %s102, 0
      %p265 = por %p263, %p264
      %p266 = scmp.ne.s32.totalorder %s254, %s255
      %p267 = scmp.eq.s32.totalorder %s103, 1
      %p268 = por %p266, %p267
      %p270 = scmp.ne.s32.totalorder %s255, %s269
      %p271 = scmp.eq.s32.totalorder %s103, 0
      %p272 = por %p270, %p271
      %s274 = sadd.s32 %s273, 1
      %p277 = scmp.eq.s32.totalorder %s97, 1
      %p278 = scmp.ne.s32.totalorder %s273, %s275
      %p279 = scmp.eq.s32.totalorder %s97, 0
      %p280 = por %p278, %p279
      %p281 = scmp.ne.s32.totalorder %s273, %s275
      %p282 = scmp.eq.s32.totalorder %s102, 1
      %p283 = por %p281, %p282
      %p284 = scmp.ne.s32.totalorder %s275, %s276
      %p285 = scmp.eq.s32.totalorder %s102, 0
      %p286 = por %p284, %p285
      %p287 = scmp.ne.s32.totalorder %s275, %s276
      %p288 = scmp.eq.s32.totalorder %s103, 1
      %p289 = por %p287, %p288
      %p291 = scmp.ne.s32.totalorder %s276, %s290
      %p292 = scmp.eq.s32.totalorder %s103, 0
      %p293 = por %p291, %p292
      %s295 = sadd.s32 %s294, 1
      %p298 = scmp.eq.s32.totalorder %s97, 1
      %p299 = scmp.ne.s32.totalorder %s294, %s296
      %p300 = scmp.eq.s32.totalorder %s97, 0
      %p301 = por %p299, %p300
      %p302 = scmp.ne.s32.totalorder %s294, %s296
      %p303 = scmp.eq.s32.totalorder %s102, 1
      %p304 = por %p302, %p303
      %p305 = scmp.ne.s32.totalorder %s296, %s297
      %p306 = scmp.eq.s32.totalorder %s102, 0
      %p307 = por %p305, %p306
      %p308 = scmp.ne.s32.totalorder %s296, %s297
      %p309 = scmp.eq.s32.totalorder %s103, 1
      %p310 = por %p308, %p309
      %p312 = scmp.ne.s32.totalorder %s297, %s311
      %p313 = scmp.eq.s32.totalorder %s103, 0
      %p314 = por %p312, %p313
      %s316 = sadd.s32 %s315, 1
      %p319 = scmp.eq.s32.totalorder %s97, 1
      %p320 = scmp.ne.s32.totalorder %s315, %s317
      %p321 = scmp.eq.s32.totalorder %s97, 0
      %p322 = por %p320, %p321
      %p323 = scmp.ne.s32.totalorder %s315, %s317
      %p324 = scmp.eq.s32.totalorder %s102, 1
      %p325 = por %p323, %p324
      %p326 = scmp.ne.s32.totalorder %s317, %s318
      %p327 = scmp.eq.s32.totalorder %s102, 0
      %p328 = por %p326, %p327
      %p329 = scmp.ne.s32.totalorder %s317, %s318
      %p330 = scmp.eq.s32.totalorder %s103, 1
      %p331 = por %p329, %p330
      %p333 = scmp.ne.s32.totalorder %s318, %s332
      %p334 = scmp.eq.s32.totalorder %s103, 0
      %p335 = por %p333, %p334
      %s337 = sadd.s32 %s336, 1
      %p340 = scmp.eq.s32.totalorder %s97, 1
      %p341 = scmp.ne.s32.totalorder %s336, %s338
      %p342 = scmp.eq.s32.totalorder %s97, 0
      %p343 = por %p341, %p342
      %p344 = scmp.ne.s32.totalorder %s336, %s338
      %p345 = scmp.eq.s32.totalorder %s102, 1
      %p346 = por %p344, %p345
      %p347 = scmp.ne.s32.totalorder %s338, %s339
      %p348 = scmp.eq.s32.totalorder %s102, 0
      %p349 = por %p347, %p348
      %p350 = scmp.ne.s32.totalorder %s338, %s339
      %p351 = scmp.eq.s32.totalorder %s103, 1
      %p352 = por %p350, %p351
      %p354 = scmp.ne.s32.totalorder %s339, %s353
      %p355 = scmp.eq.s32.totalorder %s103, 0
      %p356 = por %p354, %p355
      %s358 = sadd.s32 %s357, 1
      %p361 = scmp.eq.s32.totalorder %s97, 1
      %p362 = scmp.ne.s32.totalorder %s357, %s359
      %p363 = scmp.eq.s32.totalorder %s97, 0
      %p364 = por %p362, %p363
      %p365 = scmp.ne.s32.totalorder %s357, %s359
      %p366 = scmp.eq.s32.totalorder %s102, 1
      %p367 = por %p365, %p366
      %p368 = scmp.ne.s32.totalorder %s359, %s360
      %p369 = scmp.eq.s32.totalorder %s102, 0
      %p370 = por %p368, %p369
      %p371 = scmp.ne.s32.totalorder %s359, %s360
      %p372 = scmp.eq.s32.totalorder %s103, 1
      %p373 = por %p371, %p372
      %p375 = scmp.ne.s32.totalorder %s360, %s374
      %p376 = scmp.eq.s32.totalorder %s103, 0
      %p377 = por %p375, %p376
      %s379 = sadd.s32 %s378, 1
      %p382 = scmp.eq.s32.totalorder %s97, 1
      %p383 = scmp.ne.s32.totalorder %s378, %s380
      %p384 = scmp.eq.s32.totalorder %s97, 0
      %p385 = por %p383, %p384
      %p386 = scmp.ne.s32.totalorder %s378, %s380
      %p387 = scmp.eq.s32.totalorder %s102, 1
      %p388 = por %p386, %p387
      %p389 = scmp.ne.s32.totalorder %s380, %s381
      %p390 = scmp.eq.s32.totalorder %s102, 0
      %p391 = por %p389, %p390
      %p392 = scmp.ne.s32.totalorder %s380, %s381
      %p393 = scmp.eq.s32.totalorder %s103, 1
      %p394 = por %p392, %p393
      %p396 = scmp.ne.s32.totalorder %s381, %s395
      %p397 = scmp.eq.s32.totalorder %s103, 0
      %p398 = por %p396, %p397
      %s400 = sadd.s32 %s399, 1
      %p403 = scmp.eq.s32.totalorder %s97, 1
      %p404 = scmp.ne.s32.totalorder %s399, %s401
      %p405 = scmp.eq.s32.totalorder %s97, 0
      %p406 = por %p404, %p405
      %p407 = scmp.ne.s32.totalorder %s399, %s401
      %p408 = scmp.eq.s32.totalorder %s102, 1
      %p409 = por %p407, %p408
      %p410 = scmp.ne.s32.totalorder %s401, %s402
      %p411 = scmp.eq.s32.totalorder %s102, 0
      %p412 = por %p410, %p411
      %p413 = scmp.ne.s32.totalorder %s401, %s402
      %p414 = scmp.eq.s32.totalorder %s103, 1
      %p415 = por %p413, %p414
      %p417 = scmp.ne.s32.totalorder %s402, %s416
      %p418 = scmp.eq.s32.totalorder %s103, 0
      %p419 = por %p417, %p418
      %s421 = sadd.s32 %s420, 1
      %p424 = scmp.eq.s32.totalorder %s97, 1
      %p425 = scmp.ne.s32.totalorder %s420, %s422
      %p426 = scmp.eq.s32.totalorder %s97, 0
      %p427 = por %p425, %p426
      %p428 = scmp.ne.s32.totalorder %s420, %s422
      %p429 = scmp.eq.s32.totalorder %s102, 1
      %p430 = por %p428, %p429
      %p431 = scmp.ne.s32.totalorder %s422, %s423
      %p432 = scmp.eq.s32.totalorder %s102, 0
      %p433 = por %p431, %p432
      %p434 = scmp.ne.s32.totalorder %s422, %s423
      %p435 = scmp.eq.s32.totalorder %s103, 1
      %p436 = por %p434, %p435
      %p438 = scmp.ne.s32.totalorder %s423, %s437
      %p439 = scmp.eq.s32.totalorder %s103, 0
      %p440 = por %p438, %p439
      %s442 = sadd.s32 %s441, 1
      %p445 = scmp.eq.s32.totalorder %s97, 1
      %p446 = scmp.ne.s32.totalorder %s441, %s443
      %p447 = scmp.eq.s32.totalorder %s97, 0
      %p448 = por %p446, %p447
      %p449 = scmp.ne.s32.totalorder %s441, %s443
      %p450 = scmp.eq.s32.totalorder %s102, 1
      %p451 = por %p449, %p450
      %p452 = scmp.ne.s32.totalorder %s443, %s444
      %p453 = scmp.eq.s32.totalorder %s102, 0
      %p454 = por %p452, %p453
      %p455 = scmp.ne.s32.totalorder %s443, %s444
      %p456 = scmp.eq.s32.totalorder %s103, 1
      %p457 = por %p455, %p456
      %p459 = scmp.ne.s32.totalorder %s444, %s458
      %p460 = scmp.eq.s32.totalorder %s103, 0
      %p461 = por %p459, %p460
      %s463 = sadd.s32 %s462, 1
      %p466 = scmp.eq.s32.totalorder %s97, 1
      %p467 = scmp.ne.s32.totalorder %s462, %s464
      %p468 = scmp.eq.s32.totalorder %s97, 0
      %p469 = por %p467, %p468
      %p470 = scmp.ne.s32.totalorder %s462, %s464
      %p471 = scmp.eq.s32.totalorder %s102, 1
      %p472 = por %p470, %p471
      %p473 = scmp.ne.s32.totalorder %s464, %s465
      %p474 = scmp.eq.s32.totalorder %s102, 0
      %p475 = por %p473, %p474
      %p476 = scmp.ne.s32.totalorder %s464, %s465
      %p477 = scmp.eq.s32.totalorder %s103, 1
      %p478 = por %p476, %p477
      %p480 = scmp.ne.s32.totalorder %s465, %s479
      %p481 = scmp.eq.s32.totalorder %s103, 0
      %p482 = por %p480, %p481
      %s484 = sadd.s32 %s483, 1
      %p487 = scmp.eq.s32.totalorder %s97, 1
      %p488 = scmp.ne.s32.totalorder %s483, %s485
      %p489 = scmp.eq.s32.totalorder %s97, 0
      %p490 = por %p488, %p489
      %p491 = scmp.ne.s32.totalorder %s483, %s485
      %p492 = scmp.eq.s32.totalorder %s102, 1
      %p493 = por %p491, %p492
      %p494 = scmp.ne.s32.totalorder %s485, %s486
      %p495 = scmp.eq.s32.totalorder %s102, 0
      %p496 = por %p494, %p495
      %p497 = scmp.ne.s32.totalorder %s485, %s486
      %p498 = scmp.eq.s32.totalorder %s103, 1
      %p499 = por %p497, %p498
      %p501 = scmp.ne.s32.totalorder %s486, %s500
      %p502 = scmp.eq.s32.totalorder %s103, 0
      %p503 = por %p501, %p502
      %s505 = sadd.s32 %s504, 1
      %p508 = scmp.eq.s32.totalorder %s97, 1
      %p509 = scmp.ne.s32.totalorder %s504, %s506
      %p510 = scmp.eq.s32.totalorder %s97, 0
      %p511 = por %p509, %p510
      %p512 = scmp.ne.s32.totalorder %s504, %s506
      %p513 = scmp.eq.s32.totalorder %s102, 1
      %p514 = por %p512, %p513
      %p515 = scmp.ne.s32.totalorder %s506, %s507
      %p516 = scmp.eq.s32.totalorder %s102, 0
      %p517 = por %p515, %p516
      %p518 = scmp.ne.s32.totalorder %s506, %s507
      %p519 = scmp.eq.s32.totalorder %s103, 1
      %p520 = por %p518, %p519
      %p522 = scmp.ne.s32.totalorder %s507, %s521
      %p523 = scmp.eq.s32.totalorder %s103, 0
      %p524 = por %p522, %p523
      %s526 = sadd.s32 %s525, 1
      %p529 = scmp.eq.s32.totalorder %s97, 1
      %p530 = scmp.ne.s32.totalorder %s525, %s527
      %p531 = scmp.eq.s32.totalorder %s97, 0
      %p532 = por %p530, %p531
      %p533 = scmp.ne.s32.totalorder %s525, %s527
      %p534 = scmp.eq.s32.totalorder %s102, 1
      %p535 = por %p533, %p534
      %p536 = scmp.ne.s32.totalorder %s527, %s528
      %p537 = scmp.eq.s32.totalorder %s102, 0
      %p538 = por %p536, %p537
      %p539 = scmp.ne.s32.totalorder %s527, %s528
      %p540 = scmp.eq.s32.totalorder %s103, 1
      %p541 = por %p539, %p540
      %p543 = scmp.ne.s32.totalorder %s528, %s542
      %p544 = scmp.eq.s32.totalorder %s103, 0
      %p545 = por %p543, %p544
      %s547 = sadd.s32 %s546, 1
      %p550 = scmp.eq.s32.totalorder %s97, 1
      %p551 = scmp.ne.s32.totalorder %s546, %s548
      %p552 = scmp.eq.s32.totalorder %s97, 0
      %p553 = por %p551, %p552
      %p554 = scmp.ne.s32.totalorder %s546, %s548
      %p555 = scmp.eq.s32.totalorder %s102, 1
      %p556 = por %p554, %p555
      %p557 = scmp.ne.s32.totalorder %s548, %s549
      %p558 = scmp.eq.s32.totalorder %s102, 0
      %p559 = por %p557, %p558
      %p560 = scmp.ne.s32.totalorder %s548, %s549
      %p561 = scmp.eq.s32.totalorder %s103, 1
      %p562 = por %p560, %p561
      %p564 = scmp.ne.s32.totalorder %s549, %s563
      %p565 = scmp.eq.s32.totalorder %s103, 0
      %p566 = por %p564, %p565
      %s568 = sadd.s32 %s567, 1
      %p571 = scmp.eq.s32.totalorder %s97, 1
      %p572 = scmp.ne.s32.totalorder %s567, %s569
      %p573 = scmp.eq.s32.totalorder %s97, 0
      %p574 = por %p572, %p573
      %p575 = scmp.ne.s32.totalorder %s567, %s569
      %p576 = scmp.eq.s32.totalorder %s102, 1
      %p577 = por %p575, %p576
      %p578 = scmp.ne.s32.totalorder %s569, %s570
      %p579 = scmp.eq.s32.totalorder %s102, 0
      %p580 = por %p578, %p579
      %p581 = scmp.ne.s32.totalorder %s569, %s570
      %p582 = scmp.eq.s32.totalorder %s103, 1
      %p583 = por %p581, %p582
      %p585 = scmp.ne.s32.totalorder %s570, %s584
      %p586 = scmp.eq.s32.totalorder %s103, 0
      %p587 = por %p585, %p586
      %s589 = sadd.s32 %s588, 1
      %p592 = scmp.eq.s32.totalorder %s97, 1
      %p593 = scmp.ne.s32.totalorder %s588, %s590
      %p594 = scmp.eq.s32.totalorder %s97, 0
      %p595 = por %p593, %p594
      %p596 = scmp.ne.s32.totalorder %s588, %s590
      %p597 = scmp.eq.s32.totalorder %s102, 1
      %p598 = por %p596, %p597
      %p599 = scmp.ne.s32.totalorder %s590, %s591
      %p600 = scmp.eq.s32.totalorder %s102, 0
      %p601 = por %p599, %p600
      %p602 = scmp.ne.s32.totalorder %s590, %s591
      %p603 = scmp.eq.s32.totalorder %s103, 1
      %p604 = por %p602, %p603
      %p606 = scmp.ne.s32.totalorder %s591, %s605
      %p607 = scmp.eq.s32.totalorder %s103, 0
      %p608 = por %p606, %p607
      %s610 = sadd.s32 %s609, 1
      %p613 = scmp.eq.s32.totalorder %s97, 1
      %p614 = scmp.ne.s32.totalorder %s609, %s611
      %p615 = scmp.eq.s32.totalorder %s97, 0
      %p616 = por %p614, %p615
      %p617 = scmp.ne.s32.totalorder %s609, %s611
      %p618 = scmp.eq.s32.totalorder %s102, 1
      %p619 = por %p617, %p618
      %p620 = scmp.ne.s32.totalorder %s611, %s612
      %p621 = scmp.eq.s32.totalorder %s102, 0
      %p622 = por %p620, %p621
      %p623 = scmp.ne.s32.totalorder %s611, %s612
      %p624 = scmp.eq.s32.totalorder %s103, 1
      %p625 = por %p623, %p624
      %p627 = scmp.ne.s32.totalorder %s612, %s626
      %p628 = scmp.eq.s32.totalorder %s103, 0
      %p629 = por %p627, %p628
      %s631 = sadd.s32 %s630, 1
      %p634 = scmp.eq.s32.totalorder %s97, 1
      %p635 = scmp.ne.s32.totalorder %s630, %s632
      %p636 = scmp.eq.s32.totalorder %s97, 0
      %p637 = por %p635, %p636
      %p638 = scmp.ne.s32.totalorder %s630, %s632
      %p639 = scmp.eq.s32.totalorder %s102, 1
      %p640 = por %p638, %p639
      %p641 = scmp.ne.s32.totalorder %s632, %s633
      %p642 = scmp.eq.s32.totalorder %s102, 0
      %p643 = por %p641, %p642
      %p644 = scmp.ne.s32.totalorder %s632, %s633
      %p645 = scmp.eq.s32.totalorder %s103, 1
      %p646 = por %p644, %p645
      %p648 = scmp.ne.s32.totalorder %s633, %s647
      %p649 = scmp.eq.s32.totalorder %s103, 0
      %p650 = por %p648, %p649
      %s652 = sadd.s32 %s651, 1
      %p655 = scmp.eq.s32.totalorder %s97, 1
      %p656 = scmp.ne.s32.totalorder %s651, %s653
      %p657 = scmp.eq.s32.totalorder %s97, 0
      %p658 = por %p656, %p657
      %p659 = scmp.ne.s32.totalorder %s651, %s653
      %p660 = scmp.eq.s32.totalorder %s102, 1
      %p661 = por %p659, %p660
      %p662 = scmp.ne.s32.totalorder %s653, %s654
      %p663 = scmp.eq.s32.totalorder %s102, 0
      %p664 = por %p662, %p663
      %p665 = scmp.ne.s32.totalorder %s653, %s654
      %p666 = scmp.eq.s32.totalorder %s103, 1
      %p667 = por %p665, %p666
      %p669 = scmp.ne.s32.totalorder %s654, %s668
      %p670 = scmp.eq.s32.totalorder %s103, 0
      %p671 = por %p669, %p670
      %s673 = sadd.s32 %s672, 1
      %p676 = scmp.eq.s32.totalorder %s97, 1
      %p677 = scmp.ne.s32.totalorder %s672, %s674
      %p678 = scmp.eq.s32.totalorder %s97, 0
      %p679 = por %p677, %p678
      %p680 = scmp.ne.s32.totalorder %s672, %s674
      %p681 = scmp.eq.s32.totalorder %s102, 1
      %p682 = por %p680, %p681
      %p683 = scmp.ne.s32.totalorder %s674, %s675
      %p684 = scmp.eq.s32.totalorder %s102, 0
      %p685 = por %p683, %p684
      %p686 = scmp.ne.s32.totalorder %s674, %s675
      %p687 = scmp.eq.s32.totalorder %s103, 1
      %p688 = por %p686, %p687
      %p690 = scmp.ne.s32.totalorder %s675, %s689
      %p691 = scmp.eq.s32.totalorder %s103, 0
      %p692 = por %p690, %p691
      %s694 = sadd.s32 %s693, 1
      %p697 = scmp.eq.s32.totalorder %s97, 1
      %p698 = scmp.ne.s32.totalorder %s693, %s695
      %p699 = scmp.eq.s32.totalorder %s97, 0
      %p700 = por %p698, %p699
      %p701 = scmp.ne.s32.totalorder %s693, %s695
      %p702 = scmp.eq.s32.totalorder %s102, 1
      %p703 = por %p701, %p702
      %p704 = scmp.ne.s32.totalorder %s695, %s696
      %p705 = scmp.eq.s32.totalorder %s102, 0
      %p706 = por %p704, %p705
      %p707 = scmp.ne.s32.totalorder %s695, %s696
      %p708 = scmp.eq.s32.totalorder %s103, 1
      %p709 = por %p707, %p708
      %p711 = scmp.ne.s32.totalorder %s696, %s710
      %p712 = scmp.eq.s32.totalorder %s103, 0
      %p713 = por %p711, %p712
      %s715 = sadd.s32 %s714, 1
      %p718 = scmp.eq.s32.totalorder %s97, 1
      %p719 = scmp.ne.s32.totalorder %s714, %s716
      %p720 = scmp.eq.s32.totalorder %s97, 0
      %p721 = por %p719, %p720
      %p722 = scmp.ne.s32.totalorder %s714, %s716
      %p723 = scmp.eq.s32.totalorder %s102, 1
      %p724 = por %p722, %p723
      %p725 = scmp.ne.s32.totalorder %s716, %s717
      %p726 = scmp.eq.s32.totalorder %s102, 0
      %p727 = por %p725, %p726
      %p728 = scmp.ne.s32.totalorder %s716, %s717
      %p729 = scmp.eq.s32.totalorder %s103, 1
      %p730 = por %p728, %p729
      %p732 = scmp.ne.s32.totalorder %s717, %s731
      %p733 = scmp.eq.s32.totalorder %s103, 0
      %p734 = por %p732, %p733
      %s736 = sadd.s32 %s735, 1
      %p739 = scmp.eq.s32.totalorder %s97, 1
      %p740 = scmp.ne.s32.totalorder %s735, %s737
      %p741 = scmp.eq.s32.totalorder %s97, 0
      %p742 = por %p740, %p741
      %p743 = scmp.ne.s32.totalorder %s735, %s737
      %p744 = scmp.eq.s32.totalorder %s102, 1
      %p745 = por %p743, %p744
      %p746 = scmp.ne.s32.totalorder %s737, %s738
      %p747 = scmp.eq.s32.totalorder %s102, 0
      %p748 = por %p746, %p747
      %p749 = scmp.ne.s32.totalorder %s737, %s738
      %p750 = scmp.eq.s32.totalorder %s103, 1
      %p751 = por %p749, %p750
      %p753 = scmp.ne.s32.totalorder %s738, %s752
      %p754 = scmp.eq.s32.totalorder %s103, 0
      %p755 = por %p753, %p754
      %s757 = sadd.s32 %s756, 1
      %p760 = scmp.eq.s32.totalorder %s97, 1
      %p761 = scmp.ne.s32.totalorder %s756, %s758
      %p762 = scmp.eq.s32.totalorder %s97, 0
      %p763 = por %p761, %p762
      %p764 = scmp.ne.s32.totalorder %s756, %s758
      %p765 = scmp.eq.s32.totalorder %s102, 1
      %p766 = por %p764, %p765
      %p767 = scmp.ne.s32.totalorder %s758, %s759
      %p768 = scmp.eq.s32.totalorder %s102, 0
      %p769 = por %p767, %p768
      %p770 = scmp.ne.s32.totalorder %s758, %s759
      %p771 = scmp.eq.s32.totalorder %s103, 1
      %p772 = por %p770, %p771
      %p774 = scmp.ne.s32.totalorder %s759, %s773
      %p775 = scmp.eq.s32.totalorder %s103, 0
      %p776 = por %p774, %p775
      %s778 = sadd.s32 %s777, 1
      %p781 = scmp.eq.s32.totalorder %s97, 1
      %p782 = scmp.ne.s32.totalorder %s777, %s779
      %p783 = scmp.eq.s32.totalorder %s97, 0
      %p784 = por %p782, %p783
      %p785 = scmp.ne.s32.totalorder %s777, %s779
      %p786 = scmp.eq.s32.totalorder %s102, 1
      %p787 = por %p785, %p786
      %p788 = scmp.ne.s32.totalorder %s779, %s780
      %p789 = scmp.eq.s32.totalorder %s102, 0
      %p790 = por %p788, %p789
      %p791 = scmp.ne.s32.totalorder %s779, %s780
      %p792 = scmp.eq.s32.totalorder %s103, 1
      %p793 = por %p791, %p792
      %p795 = scmp.ne.s32.totalorder %s780, %s794
      %p796 = scmp.eq.s32.totalorder %s103, 0
      %p797 = por %p795, %p796
      %s799 = sadd.s32 %s798, 1
      %p802 = scmp.eq.s32.totalorder %s97, 1
      %p803 = scmp.ne.s32.totalorder %s798, %s800
      %p804 = scmp.eq.s32.totalorder %s97, 0
      %p805 = por %p803, %p804
      %p806 = scmp.ne.s32.totalorder %s798, %s800
      %p807 = scmp.eq.s32.totalorder %s102, 1
      %p808 = por %p806, %p807
      %p809 = scmp.ne.s32.totalorder %s800, %s801
      %p810 = scmp.eq.s32.totalorder %s102, 0
      %p811 = por %p809, %p810
      %p812 = scmp.ne.s32.totalorder %s800, %s801
      %p813 = scmp.eq.s32.totalorder %s103, 1
      %p814 = por %p812, %p813
      %p816 = scmp.ne.s32.totalorder %s801, %s815
      %p817 = scmp.eq.s32.totalorder %s103, 0
      %p818 = por %p816, %p817
      %s820 = sadd.s32 %s819, 1
      %p823 = scmp.eq.s32.totalorder %s97, 1
      %p824 = scmp.ne.s32.totalorder %s819, %s821
      %p825 = scmp.eq.s32.totalorder %s97, 0
      %p826 = por %p824, %p825
      %p827 = scmp.ne.s32.totalorder %s819, %s821
      %p828 = scmp.eq.s32.totalorder %s102, 1
      %p829 = por %p827, %p828
      %p830 = scmp.ne.s32.totalorder %s821, %s822
      %p831 = scmp.eq.s32.totalorder %s102, 0
      %p832 = por %p830, %p831
      %p833 = scmp.ne.s32.totalorder %s821, %s822
      %p834 = scmp.eq.s32.totalorder %s103, 1
      %p835 = por %p833, %p834
      %p837 = scmp.ne.s32.totalorder %s822, %s836
      %p838 = scmp.eq.s32.totalorder %s103, 0
      %p839 = por %p837, %p838
      %s841 = sadd.s32 %s840, 1
      %p844 = scmp.eq.s32.totalorder %s97, 1
      %p845 = scmp.ne.s32.totalorder %s840, %s842
      %p846 = scmp.eq.s32.totalorder %s97, 0
      %p847 = por %p845, %p846
      %p848 = scmp.ne.s32.totalorder %s840, %s842
      %p849 = scmp.eq.s32.totalorder %s102, 1
      %p850 = por %p848, %p849
      %p851 = scmp.ne.s32.totalorder %s842, %s843
      %p852 = scmp.eq.s32.totalorder %s102, 0
      %p853 = por %p851, %p852
      %p854 = scmp.ne.s32.totalorder %s842, %s843
      %p855 = scmp.eq.s32.totalorder %s103, 1
      %p856 = por %p854, %p855
      %p858 = scmp.ne.s32.totalorder %s843, %s857
      %p859 = scmp.eq.s32.totalorder %s103, 0
      %p860 = por %p858, %p859
      %s862 = sadd.s32 %s861, 1
      %p865 = scmp.eq.s32.totalorder %s97, 1
      %p866 = scmp.ne.s32.totalorder %s861, %s863
      %p867 = scmp.eq.s32.totalorder %s97, 0
      %p868 = por %p866, %p867
      %p869 = scmp.ne.s32.totalorder %s861, %s863
      %p870 = scmp.eq.s32.totalorder %s102, 1
      %p871 = por %p869, %p870
      %p872 = scmp.ne.s32.totalorder %s863, %s864
      %p873 = scmp.eq.s32.totalorder %s102, 0
      %p874 = por %p872, %p873
      %p875 = scmp.ne.s32.totalorder %s863, %s864
      %p876 = scmp.eq.s32.totalorder %s103, 1
      %p877 = por %p875, %p876
      %p879 = scmp.ne.s32.totalorder %s864, %s878
      %p880 = scmp.eq.s32.totalorder %s103, 0
      %p881 = por %p879, %p880
      %s882 = ssub.s32 %s97, %s104
      %p883 = scmp.eq.s32.totalorder %s882, 0
      %s885 = sadd.s32 %s884, 1
      %s886 = scalar_select %p883, %s884, %s885
      %p889 = pneg %p883
      %p890 = scmp.eq.s32.totalorder %s97, 1
      %p891 = por %p889, %p890
      %p892 = scmp.ne.s32.totalorder %s884, %s887
      %p893 = scmp.eq.s32.totalorder %s97, 0
      %p894 = por %p892, %p893
      %p895 = scmp.ne.s32.totalorder %s884, %s887
      %p896 = scmp.eq.s32.totalorder %s102, 1
      %p897 = por %p895, %p896
      %p898 = scmp.ne.s32.totalorder %s887, %s888
      %p899 = scmp.eq.s32.totalorder %s102, 0
      %p900 = por %p898, %p899
      %p901 = scmp.ne.s32.totalorder %s887, %s888
      %p902 = scmp.eq.s32.totalorder %s103, 1
      %p903 = por %p901, %p902
      %p905 = scmp.ne.s32.totalorder %s888, %s904
      %p906 = scmp.eq.s32.totalorder %s103, 0
      %p907 = por %p905, %p906
      %p908 = scmp.le.s32.totalorder 1, %s97
      %p909 = scmp.lt.s32.totalorder %s97, 3
      %p910 = pnand %p908, %p909
      %p911 = pneg %p910
      // Predicated region
      $region9: #{cauain_forward.1} parent=5 // pred_check
        _
      $region10: #{cauain_forward.1} parent=5 // pred_check_branch
        %913 = sbr.rel (%p910) target = $region12
      $region11: #{cauain_forward.1} parent=5 // pred_region
        %s914 = ssub.s32 %s97, 1
        // Predicated region
        $region13: #{cauain_forward.1} parent=11 // pred_check
          %p915 = pneg %p118
        $region14: #{cauain_forward.1} parent=11 // pred_check_branch
          %917 = sbr.rel (%p915) target = $region16
        $region15: #{cauain_forward.1} parent=11 // pred_region
          %919 = vsyncadd [#allocation3], 0
          %s920 = sshll.u32 %s1, 4
          %s921 = int_to_ptr.hbm [resolvable:$true] %s920
          %s922 = sshll.u32 [#allocation2], 4
          %s923 = int_to_ptr.vmem [resolvable:$true] %s922
          %928 = dma.hbm_to_vmem [thread:$0]  %s921, 256, %s923, [#allocation3], 32, 32, 2
        $region16: #{cauain_forward.1} parent=11 // pred_fallthru
          _
        // Predicated region
        $region17: #{cauain_forward.1} parent=11 // pred_check
          %p929 = pneg %p139
        $region18: #{cauain_forward.1} parent=11 // pred_check_branch
          %931 = sbr.rel (%p929) target = $region20
        $region19: #{cauain_forward.1} parent=11 // pred_region
          %933 = vsyncadd [#allocation5], 0
          %s934 = sshll.u32 %s3, 4
          %s935 = int_to_ptr.hbm [resolvable:$true] %s934
          %s936 = sshll.u32 [#allocation4], 4
          %s937 = int_to_ptr.vmem [resolvable:$true] %s936
          %942 = dma.hbm_to_vmem [thread:$0]  %s935, 256, %s937, [#allocation5], 32, 32, 2
        $region20: #{cauain_forward.1} parent=11 // pred_fallthru
          _
        // Predicated region
        $region21: #{cauain_forward.1} parent=11 // pred_check
          %p943 = pneg %p160
        $region22: #{cauain_forward.1} parent=11 // pred_check_branch
          %945 = sbr.rel (%p943) target = $region24
        $region23: #{cauain_forward.1} parent=11 // pred_region
          %947 = vsyncadd [#allocation5], 0
          %s948 = sshll.u32 %s5, 4
          %s949 = int_to_ptr.hbm [resolvable:$true] %s948
          %s950 = sshll.u32 [#allocation6], 4
          %s951 = int_to_ptr.vmem [resolvable:$true] %s950
          %956 = dma.hbm_to_vmem [thread:$0]  %s949, 256, %s951, [#allocation5], 32, 32, 2
        $region24: #{cauain_forward.1} parent=11 // pred_fallthru
          _
        // Predicated region
        $region25: #{cauain_forward.1} parent=11 // pred_check
          %p957 = pneg %p181
        $region26: #{cauain_forward.1} parent=11 // pred_check_branch
          %959 = sbr.rel (%p957) target = $region28
        $region27: #{cauain_forward.1} parent=11 // pred_region
          %961 = vsyncadd [#allocation8], 0
          %s962 = sshll.u32 %s7, 4
          %s963 = int_to_ptr.hbm [resolvable:$true] %s962
          %s964 = sshll.u32 [#allocation7], 4
          %s965 = int_to_ptr.vmem [resolvable:$true] %s964
          %970 = dma.hbm_to_vmem [thread:$0]  %s963, 256, %s965, [#allocation8], 32, 32, 2
        $region28: #{cauain_forward.1} parent=11 // pred_fallthru
          _
        // Predicated region
        $region29: #{cauain_forward.1} parent=11 // pred_check
          %p971 = pneg %p202
        $region30: #{cauain_forward.1} parent=11 // pred_check_branch
          %973 = sbr.rel (%p971) target = $region32
        $region31: #{cauain_forward.1} parent=11 // pred_region
          %975 = vsyncadd [#allocation8], 0
          %s976 = sshll.u32 %s9, 4
          %s977 = int_to_ptr.hbm [resolvable:$true] %s976
          %s978 = sshll.u32 [#allocation9], 4
          %s979 = int_to_ptr.vmem [resolvable:$true] %s978
          %984 = dma.hbm_to_vmem [thread:$0]  %s977, 256, %s979, [#allocation8], 32, 32, 2
        $region32: #{cauain_forward.1} parent=11 // pred_fallthru
          _
        // Predicated region
        $region33: #{cauain_forward.1} parent=11 // pred_check
          %p985 = pneg %p223
        $region34: #{cauain_forward.1} parent=11 // pred_check_branch
          %987 = sbr.rel (%p985) target = $region36
        $region35: #{cauain_forward.1} parent=11 // pred_region
          %989 = vsyncadd [#allocation11], 0
          %s990 = sshll.u32 %s11, 4
          %s991 = int_to_ptr.hbm [resolvable:$true] %s990
          %s992 = sshll.u32 [#allocation10], 4
          %s993 = int_to_ptr.vmem [resolvable:$true] %s992
          %998 = dma.hbm_to_vmem [thread:$0]  %s991, 256, %s993, [#allocation11], 32, 32, 2
        $region36: #{cauain_forward.1} parent=11 // pred_fallthru
          _
        // Predicated region
        $region37: #{cauain_forward.1} parent=11 // pred_check
          %p999 = pneg %p244
        $region38: #{cauain_forward.1} parent=11 // pred_check_branch
          %1001 = sbr.rel (%p999) target = $region40
        $region39: #{cauain_forward.1} parent=11 // pred_region
          %1003 = vsyncadd [#allocation11], 0
          %s1004 = sshll.u32 %s13, 4
          %s1005 = int_to_ptr.hbm [resolvable:$true] %s1004
          %s1006 = sshll.u32 [#allocation12], 4
          %s1007 = int_to_ptr.vmem [resolvable:$true] %s1006
          %1012 = dma.hbm_to_vmem [thread:$0]  %s1005, 256, %s1007, [#allocation11], 32, 32, 2
        $region40: #{cauain_forward.1} parent=11 // pred_fallthru
          _
        // Predicated region
        $region41: #{cauain_forward.1} parent=11 // pred_check
          %p1013 = pneg %p265
        $region42: #{cauain_forward.1} parent=11 // pred_check_branch
          %1015 = sbr.rel (%p1013) target = $region44
        $region43: #{cauain_forward.1} parent=11 // pred_region
          %1017 = vsyncadd [#allocation14], 0
          %s1018 = sshll.u32 %s15, 4
          %s1019 = int_to_ptr.hbm [resolvable:$true] %s1018
          %s1020 = sshll.u32 [#allocation13], 4
          %s1021 = int_to_ptr.vmem [resolvable:$true] %s1020
          %1026 = dma.hbm_to_vmem [thread:$0]  %s1019, 256, %s1021, [#allocation14], 32, 32, 2
        $region44: #{cauain_forward.1} parent=11 // pred_fallthru
          _
        // Predicated region
        $region45: #{cauain_forward.1} parent=11 // pred_check
          %p1027 = pneg %p286
        $region46: #{cauain_forward.1} parent=11 // pred_check_branch
          %1029 = sbr.rel (%p1027) target = $region48
        $region47: #{cauain_forward.1} parent=11 // pred_region
          %1031 = vsyncadd [#allocation14], 0
          %s1032 = sshll.u32 %s17, 4
          %s1033 = int_to_ptr.hbm [resolvable:$true] %s1032
          %s1034 = sshll.u32 [#allocation15], 4
          %s1035 = int_to_ptr.vmem [resolvable:$true] %s1034
          %1040 = dma.hbm_to_vmem [thread:$0]  %s1033, 256, %s1035, [#allocation14], 32, 32, 2
        $region48: #{cauain_forward.1} parent=11 // pred_fallthru
          _
        // Predicated region
        $region49: #{cauain_forward.1} parent=11 // pred_check
          %p1041 = pneg %p307
        $region50: #{cauain_forward.1} parent=11 // pred_check_branch
          %1043 = sbr.rel (%p1041) target = $region52
        $region51: #{cauain_forward.1} parent=11 // pred_region
          %1045 = vsyncadd [#allocation17], 0
          %s1046 = sshll.u32 %s19, 4
          %s1047 = int_to_ptr.hbm [resolvable:$true] %s1046
          %s1048 = sshll.u32 [#allocation16], 4
          %s1049 = int_to_ptr.vmem [resolvable:$true] %s1048
          %1054 = dma.hbm_to_vmem [thread:$0]  %s1047, 256, %s1049, [#allocation17], 32, 32, 2
        $region52: #{cauain_forward.1} parent=11 // pred_fallthru
          _
        // Predicated region
        $region53: #{cauain_forward.1} parent=11 // pred_check
          %p1055 = pneg %p328
        $region54: #{cauain_forward.1} parent=11 // pred_check_branch
          %1057 = sbr.rel (%p1055) target = $region56
        $region55: #{cauain_forward.1} parent=11 // pred_region
          _
        $region56: #{cauain_forward.1} parent=11 // pred_fallthru
          _
        // Predicated region
        $region57: #{cauain_forward.1} parent=11 // pred_check
          %p1058 = pneg %p349
        $region58: #{cauain_forward.1} parent=11 // pred_check_branch
          %1060 = sbr.rel (%p1058) target = $region60
        $region59: #{cauain_forward.1} parent=11 // pred_region
          %1062 = vsyncadd [#allocation17], 0
          %s1063 = sshll.u32 %s23, 4
          %s1064 = int_to_ptr.hbm [resolvable:$true] %s1063
          %s1065 = sshll.u32 [#allocation18], 4
          %s1066 = int_to_ptr.vmem [resolvable:$true] %s1065
          %1071 = dma.hbm_to_vmem [thread:$0]  %s1064, 256, %s1066, [#allocation17], 128, 128, 8
        $region60: #{cauain_forward.1} parent=11 // pred_fallthru
          _
        // Predicated region
        $region61: #{cauain_forward.1} parent=11 // pred_check
          %p1072 = pneg %p370
        $region62: #{cauain_forward.1} parent=11 // pred_check_branch
          %1074 = sbr.rel (%p1072) target = $region64
        $region63: #{cauain_forward.1} parent=11 // pred_region
          %1076 = vsyncadd [#allocation20], 0
          %s1077 = sshll.u32 %s25, 4
          %s1078 = int_to_ptr.hbm [resolvable:$true] %s1077
          %s1079 = sshll.u32 [#allocation19], 4
          %s1080 = int_to_ptr.vmem [resolvable:$true] %s1079
          %1085 = dma.hbm_to_vmem [thread:$0]  %s1078, 256, %s1080, [#allocation20], 128, 128, 8
        $region64: #{cauain_forward.1} parent=11 // pred_fallthru
          _
        // Predicated region
        $region65: #{cauain_forward.1} parent=11 // pred_check
          %p1086 = pneg %p391
        $region66: #{cauain_forward.1} parent=11 // pred_check_branch
          %1088 = sbr.rel (%p1086) target = $region68
        $region67: #{cauain_forward.1} parent=11 // pred_region
          _
        $region68: #{cauain_forward.1} parent=11 // pred_fallthru
          _
        // Predicated region
        $region69: #{cauain_forward.1} parent=11 // pred_check
          %p1089 = pneg %p412
        $region70: #{cauain_forward.1} parent=11 // pred_check_branch
          %1091 = sbr.rel (%p1089) target = $region72
        $region71: #{cauain_forward.1} parent=11 // pred_region
          _
        $region72: #{cauain_forward.1} parent=11 // pred_fallthru
          _
        // Predicated region
        $region73: #{cauain_forward.1} parent=11 // pred_check
          %p1092 = pneg %p433
        $region74: #{cauain_forward.1} parent=11 // pred_check_branch
          %1094 = sbr.rel (%p1092) target = $region76
        $region75: #{cauain_forward.1} parent=11 // pred_region
          %1096 = vsyncadd [#allocation20], 0
          %s1097 = sshll.u32 %s31, 4
          %s1098 = int_to_ptr.hbm [resolvable:$true] %s1097
          %s1099 = sshll.u32 [#allocation21], 4
          %s1100 = int_to_ptr.vmem [resolvable:$true] %s1099
          %1105 = dma.hbm_to_vmem [thread:$0]  %s1098, 512, %s1100, [#allocation20], 128, 128, 8
        $region76: #{cauain_forward.1} parent=11 // pred_fallthru
          _
        // Predicated region
        $region77: #{cauain_forward.1} parent=11 // pred_check
          %p1106 = pneg %p454
        $region78: #{cauain_forward.1} parent=11 // pred_check_branch
          %1108 = sbr.rel (%p1106) target = $region80
        $region79: #{cauain_forward.1} parent=11 // pred_region
          %1110 = vsyncadd [#allocation23], 0
          %s1112 = sshll.u32 %s33, 4
          %s1113 = int_to_ptr.hbm [resolvable:$true] %s1112
          %s1114 = sshll.u32 [#allocation22], 4
          %s1115 = int_to_ptr.vmem [resolvable:$true] %s1114
          %1117 = dma.hbm_to_vmem [thread:$0]  %s1113, 16, %s1115, [#allocation23]
        $region80: #{cauain_forward.1} parent=11 // pred_fallthru
          _
        // Predicated region
        $region81: #{cauain_forward.1} parent=11 // pred_check
          %p1118 = pneg %p475
        $region82: #{cauain_forward.1} parent=11 // pred_check_branch
          %1120 = sbr.rel (%p1118) target = $region84
        $region83: #{cauain_forward.1} parent=11 // pred_region
          %1122 = vsyncadd [#allocation23], 0
          %s1123 = sshll.u32 %s35, 4
          %s1124 = int_to_ptr.hbm [resolvable:$true] %s1123
          %s1125 = sshll.u32 [#allocation24], 4
          %s1126 = int_to_ptr.vmem [resolvable:$true] %s1125
          %1131 = dma.hbm_to_vmem [thread:$0]  %s1124, 512, %s1126, [#allocation23], 128, 128, 8
        $region84: #{cauain_forward.1} parent=11 // pred_fallthru
          _
        // Predicated region
        $region85: #{cauain_forward.1} parent=11 // pred_check
          %p1132 = pneg %p496
        $region86: #{cauain_forward.1} parent=11 // pred_check_branch
          %1134 = sbr.rel (%p1132) target = $region88
        $region87: #{cauain_forward.1} parent=11 // pred_region
          %1136 = vsyncadd [#allocation26], 0
          %s1137 = sshll.u32 %s37, 4
          %s1138 = int_to_ptr.hbm [resolvable:$true] %s1137
          %s1139 = sshll.u32 [#allocation25], 4
          %s1140 = int_to_ptr.vmem [resolvable:$true] %s1139
          %1145 = dma.hbm_to_vmem [thread:$0]  %s1138, 512, %s1140, [#allocation26], 128, 128, 8
        $region88: #{cauain_forward.1} parent=11 // pred_fallthru
          _
        // Predicated region
        $region89: #{cauain_forward.1} parent=11 // pred_check
          %p1146 = pneg %p517
        $region90: #{cauain_forward.1} parent=11 // pred_check_branch
          %1148 = sbr.rel (%p1146) target = $region92
        $region91: #{cauain_forward.1} parent=11 // pred_region
          %1150 = vsyncadd [#allocation26], 0
          %s1152 = sshll.u32 %s39, 4
          %s1153 = int_to_ptr.hbm [resolvable:$true] %s1152
          %s1154 = sshll.u32 [#allocation27], 4
          %s1155 = int_to_ptr.vmem [resolvable:$true] %s1154
          %1157 = dma.hbm_to_vmem [thread:$0]  %s1153, 16, %s1155, [#allocation26]
        $region92: #{cauain_forward.1} parent=11 // pred_fallthru
          _
        // Predicated region
        $region93: #{cauain_forward.1} parent=11 // pred_check
          %p1158 = pneg %p538
        $region94: #{cauain_forward.1} parent=11 // pred_check_branch
          %1160 = sbr.rel (%p1158) target = $region96
        $region95: #{cauain_forward.1} parent=11 // pred_region
          %1162 = vsyncadd [#allocation29], 0
          %s1163 = sshll.u32 %s41, 4
          %s1164 = int_to_ptr.hbm [resolvable:$true] %s1163
          %s1165 = sshll.u32 [#allocation28], 4
          %s1166 = int_to_ptr.vmem [resolvable:$true] %s1165
          %1171 = dma.hbm_to_vmem [thread:$0]  %s1164, 512, %s1166, [#allocation29], 128, 128, 8
        $region96: #{cauain_forward.1} parent=11 // pred_fallthru
          _
        // Predicated region
        $region97: #{cauain_forward.1} parent=11 // pred_check
          %p1172 = pneg %p559
        $region98: #{cauain_forward.1} parent=11 // pred_check_branch
          %1174 = sbr.rel (%p1172) target = $region100
        $region99: #{cauain_forward.1} parent=11 // pred_region
          %1176 = vsyncadd [#allocation29], 0
          %s1177 = sshll.u32 %s43, 4
          %s1178 = int_to_ptr.hbm [resolvable:$true] %s1177
          %s1179 = sshll.u32 [#allocation30], 4
          %s1180 = int_to_ptr.vmem [resolvable:$true] %s1179
          %1185 = dma.hbm_to_vmem [thread:$0]  %s1178, 512, %s1180, [#allocation29], 128, 128, 8
        $region100: #{cauain_forward.1} parent=11 // pred_fallthru
          _
        // Predicated region
        $region101: #{cauain_forward.1} parent=11 // pred_check
          %p1186 = pneg %p580
        $region102: #{cauain_forward.1} parent=11 // pred_check_branch
          %1188 = sbr.rel (%p1186) target = $region104
        $region103: #{cauain_forward.1} parent=11 // pred_region
          %1190 = vsyncadd [#allocation32], 0
          %s1192 = sshll.u32 %s45, 4
          %s1193 = int_to_ptr.hbm [resolvable:$true] %s1192
          %s1194 = sshll.u32 [#allocation31], 4
          %s1195 = int_to_ptr.vmem [resolvable:$true] %s1194
          %1197 = dma.hbm_to_vmem [thread:$0]  %s1193, 16, %s1195, [#allocation32]
        $region104: #{cauain_forward.1} parent=11 // pred_fallthru
          _
        // Predicated region
        $region105: #{cauain_forward.1} parent=11 // pred_check
          %p1198 = pneg %p601
        $region106: #{cauain_forward.1} parent=11 // pred_check_branch
          %1200 = sbr.rel (%p1198) target = $region108
        $region107: #{cauain_forward.1} parent=11 // pred_region
          %1202 = vsyncadd [#allocation32], 0
          %s1203 = sshll.u32 %s47, 4
          %s1204 = int_to_ptr.hbm [resolvable:$true] %s1203
          %s1205 = sshll.u32 [#allocation33], 4
          %s1206 = int_to_ptr.vmem [resolvable:$true] %s1205
          %1211 = dma.hbm_to_vmem [thread:$0]  %s1204, 768, %s1206, [#allocation32], 128, 128, 8
        $region108: #{cauain_forward.1} parent=11 // pred_fallthru
          _
        // Predicated region
        $region109: #{cauain_forward.1} parent=11 // pred_check
          %p1212 = pneg %p622
        $region110: #{cauain_forward.1} parent=11 // pred_check_branch
          %1214 = sbr.rel (%p1212) target = $region112
        $region111: #{cauain_forward.1} parent=11 // pred_region
          %1216 = vsyncadd [#allocation35], 0
          %s1218 = sshll.u32 %s49, 4
          %s1219 = int_to_ptr.hbm [resolvable:$true] %s1218
          %s1220 = sshll.u32 [#allocation34], 4
          %s1221 = int_to_ptr.vmem [resolvable:$true] %s1220
          %1223 = dma.hbm_to_vmem [thread:$0]  %s1219, 16, %s1221, [#allocation35]
        $region112: #{cauain_forward.1} parent=11 // pred_fallthru
          _
        // Predicated region
        $region113: #{cauain_forward.1} parent=11 // pred_check
          %p1224 = pneg %p643
        $region114: #{cauain_forward.1} parent=11 // pred_check_branch
          %1226 = sbr.rel (%p1224) target = $region116
        $region115: #{cauain_forward.1} parent=11 // pred_region
          %1228 = vsyncadd [#allocation35], 0
          %s1229 = sshll.u32 %s51, 4
          %s1230 = int_to_ptr.hbm [resolvable:$true] %s1229
          %s1231 = sshll.u32 [#allocation36], 4
          %s1232 = int_to_ptr.vmem [resolvable:$true] %s1231
          %1237 = dma.hbm_to_vmem [thread:$0]  %s1230, 768, %s1232, [#allocation35], 128, 128, 8
        $region116: #{cauain_forward.1} parent=11 // pred_fallthru
          _
        // Predicated region
        $region117: #{cauain_forward.1} parent=11 // pred_check
          %p1238 = pneg %p664
        $region118: #{cauain_forward.1} parent=11 // pred_check_branch
          %1240 = sbr.rel (%p1238) target = $region120
        $region119: #{cauain_forward.1} parent=11 // pred_region
          %1242 = vsyncadd [#allocation38], 0
          %s1244 = sshll.u32 %s53, 4
          %s1245 = int_to_ptr.hbm [resolvable:$true] %s1244
          %s1246 = sshll.u32 [#allocation37], 4
          %s1247 = int_to_ptr.vmem [resolvable:$true] %s1246
          %1249 = dma.hbm_to_vmem [thread:$0]  %s1245, 16, %s1247, [#allocation38]
        $region120: #{cauain_forward.1} parent=11 // pred_fallthru
          _
        // Predicated region
        $region121: #{cauain_forward.1} parent=11 // pred_check
          %p1250 = pneg %p685
        $region122: #{cauain_forward.1} parent=11 // pred_check_branch
          %1252 = sbr.rel (%p1250) target = $region124
        $region123: #{cauain_forward.1} parent=11 // pred_region
          %1254 = vsyncadd [#allocation38], 0
          %s1255 = sshll.u32 %s55, 4
          %s1256 = int_to_ptr.hbm [resolvable:$true] %s1255
          %s1257 = sshll.u32 [#allocation39], 4
          %s1258 = int_to_ptr.vmem [resolvable:$true] %s1257
          %1263 = dma.hbm_to_vmem [thread:$0]  %s1256, 2048, %s1258, [#allocation38], 256, 256, 16
        $region124: #{cauain_forward.1} parent=11 // pred_fallthru
          _
        // Predicated region
        $region125: #{cauain_forward.1} parent=11 // pred_check
          %p1264 = pneg %p706
        $region126: #{cauain_forward.1} parent=11 // pred_check_branch
          %1266 = sbr.rel (%p1264) target = $region128
        $region127: #{cauain_forward.1} parent=11 // pred_region
          _
        $region128: #{cauain_forward.1} parent=11 // pred_fallthru
          _
        // Predicated region
        $region129: #{cauain_forward.1} parent=11 // pred_check
          %p1267 = pneg %p727
        $region130: #{cauain_forward.1} parent=11 // pred_check_branch
          %1269 = sbr.rel (%p1267) target = $region132
        $region131: #{cauain_forward.1} parent=11 // pred_region
          %1271 = vsyncadd [#allocation41], 0
          %s1272 = sshll.u32 %s59, 4
          %s1273 = int_to_ptr.hbm [resolvable:$true] %s1272
          %s1274 = sshll.u32 [#allocation40], 4
          %s1275 = int_to_ptr.vmem [resolvable:$true] %s1274
          %1280 = dma.hbm_to_vmem [thread:$0]  %s1273, 1024, %s1275, [#allocation41], 128, 128, 8
        $region132: #{cauain_forward.1} parent=11 // pred_fallthru
          _
        // Predicated region
        $region133: #{cauain_forward.1} parent=11 // pred_check
          %p1281 = pneg %p748
        $region134: #{cauain_forward.1} parent=11 // pred_check_branch
          %1283 = sbr.rel (%p1281) target = $region136
        $region135: #{cauain_forward.1} parent=11 // pred_region
          %1285 = vsyncadd [#allocation41], 0
          %s1287 = sshll.u32 %s61, 4
          %s1288 = int_to_ptr.hbm [resolvable:$true] %s1287
          %s1289 = sshll.u32 [#allocation42], 4
          %s1290 = int_to_ptr.vmem [resolvable:$true] %s1289
          %1292 = dma.hbm_to_vmem [thread:$0]  %s1288, 16, %s1290, [#allocation41]
        $region136: #{cauain_forward.1} parent=11 // pred_fallthru
          _
        // Predicated region
        $region137: #{cauain_forward.1} parent=11 // pred_check
          %p1293 = pneg %p769
        $region138: #{cauain_forward.1} parent=11 // pred_check_branch
          %1295 = sbr.rel (%p1293) target = $region140
        $region139: #{cauain_forward.1} parent=11 // pred_region
          %1297 = vsyncadd [#allocation44], 0
          %s1298 = sshll.u32 %s63, 4
          %s1299 = int_to_ptr.hbm [resolvable:$true] %s1298
          %s1300 = sshll.u32 [#allocation43], 4
          %s1301 = int_to_ptr.vmem [resolvable:$true] %s1300
          %1306 = dma.hbm_to_vmem [thread:$0]  %s1299, 2048, %s1301, [#allocation44], 128, 128, 8
        $region140: #{cauain_forward.1} parent=11 // pred_fallthru
          _
        // Predicated region
        $region141: #{cauain_forward.1} parent=11 // pred_check
          %p1307 = pneg %p790
        $region142: #{cauain_forward.1} parent=11 // pred_check_branch
          %1309 = sbr.rel (%p1307) target = $region144
        $region143: #{cauain_forward.1} parent=11 // pred_region
          %1311 = vsyncadd [#allocation44], 0
          %s1313 = sshll.u32 %s65, 4
          %s1314 = int_to_ptr.hbm [resolvable:$true] %s1313
          %s1315 = sshll.u32 [#allocation45], 4
          %s1316 = int_to_ptr.vmem [resolvable:$true] %s1315
          %1318 = dma.hbm_to_vmem [thread:$0]  %s1314, 16, %s1316, [#allocation44]
        $region144: #{cauain_forward.1} parent=11 // pred_fallthru
          _
        // Predicated region
        $region145: #{cauain_forward.1} parent=11 // pred_check
          %p1319 = pneg %p811
        $region146: #{cauain_forward.1} parent=11 // pred_check_branch
          %1321 = sbr.rel (%p1319) target = $region148
        $region147: #{cauain_forward.1} parent=11 // pred_region
          %1323 = vsyncadd [#allocation47], 0
          %s1324 = sshll.u32 %s67, 4
          %s1325 = int_to_ptr.hbm [resolvable:$true] %s1324
          %s1326 = sshll.u32 [#allocation46], 4
          %s1327 = int_to_ptr.vmem [resolvable:$true] %s1326
          %1332 = dma.hbm_to_vmem [thread:$0]  %s1325, 512, %s1327, [#allocation47], 128, 128, 8
        $region148: #{cauain_forward.1} parent=11 // pred_fallthru
          _
        // Predicated region
        $region149: #{cauain_forward.1} parent=11 // pred_check
          %p1333 = pneg %p832
        $region150: #{cauain_forward.1} parent=11 // pred_check_branch
          %1335 = sbr.rel (%p1333) target = $region152
        $region151: #{cauain_forward.1} parent=11 // pred_region
          %1337 = vsyncadd [#allocation47], 0
          %s1339 = sshll.u32 %s69, 4
          %s1340 = int_to_ptr.hbm [resolvable:$true] %s1339
          %s1341 = sshll.u32 [#allocation48], 4
          %s1342 = int_to_ptr.vmem [resolvable:$true] %s1341
          %1344 = dma.hbm_to_vmem [thread:$0]  %s1340, 16, %s1342, [#allocation47]
        $region152: #{cauain_forward.1} parent=11 // pred_fallthru
          _
        // Predicated region
        $region153: #{cauain_forward.1} parent=11 // pred_check
          %p1345 = pneg %p853
        $region154: #{cauain_forward.1} parent=11 // pred_check_branch
          %1347 = sbr.rel (%p1345) target = $region156
        $region155: #{cauain_forward.1} parent=11 // pred_region
          _
        $region156: #{cauain_forward.1} parent=11 // pred_fallthru
          _
        // Predicated region
        $region157: #{cauain_forward.1} parent=11 // pred_check
          %p1348 = pneg %p874
        $region158: #{cauain_forward.1} parent=11 // pred_check_branch
          %1350 = sbr.rel (%p1348) target = $region160
        $region159: #{cauain_forward.1} parent=11 // pred_region
          _
        $region160: #{cauain_forward.1} parent=11 // pred_fallthru
          _
      $region12: #{cauain_forward.1} parent=5 // pred_fallthru
        _
      %p1351 = scmp.lt.s32.totalorder %s97, 2
      // Predicated region
      $region161: #{cauain_forward.1} parent=5 // pred_check
        %p1352 = pneg %p1351
      $region162: #{cauain_forward.1} parent=5 // pred_check_branch
        %1354 = sbr.rel (%p1352) target = $region164
      $region163: #{cauain_forward.1} parent=5 // pred_region
        _
      $region164: #{cauain_forward.1} parent=5 // pred_fallthru
        _
      %p1355 = scmp.le.s32.totalorder 1, %s97
      %p1356 = scmp.lt.s32.totalorder %s97, 3
      %p1357 = pnand %p1355, %p1356
      %p1358 = pneg %p1357
      // Predicated region
      $region165: #{cauain_forward.1} parent=5 // pred_check
        _
      $region166: #{cauain_forward.1} parent=5 // pred_check_branch
        %1360 = sbr.rel (%p1357) target = $region168
      $region167: #{cauain_forward.1} parent=5 // pred_region
        %s1361 = ssub.s32 %s97, 1
        // Predicated region
        $region169: #{cauain_forward.1} parent=167 // pred_check
          %p1362 = pneg %p118
        $region170: #{cauain_forward.1} parent=167 // pred_check_branch
          %1364 = sbr.rel (%p1362) target = $region172
        $region171: #{cauain_forward.1} parent=167 // pred_region
          %1366 = dma.done [#allocation3], 256
        $region172: #{cauain_forward.1} parent=167 // pred_fallthru
          _
        // Predicated region
        $region173: #{cauain_forward.1} parent=167 // pred_check
          %p1367 = pneg %p139
        $region174: #{cauain_forward.1} parent=167 // pred_check_branch
          %1369 = sbr.rel (%p1367) target = $region176
        $region175: #{cauain_forward.1} parent=167 // pred_region
          %1371 = dma.done [#allocation5], 256
        $region176: #{cauain_forward.1} parent=167 // pred_fallthru
          _
        // Predicated region
        $region177: #{cauain_forward.1} parent=167 // pred_check
          %p1372 = pneg %p160
        $region178: #{cauain_forward.1} parent=167 // pred_check_branch
          %1374 = sbr.rel (%p1372) target = $region180
        $region179: #{cauain_forward.1} parent=167 // pred_region
          %1376 = dma.done [#allocation5], 256
        $region180: #{cauain_forward.1} parent=167 // pred_fallthru
          _
        // Predicated region
        $region181: #{cauain_forward.1} parent=167 // pred_check
          %p1377 = pneg %p181
        $region182: #{cauain_forward.1} parent=167 // pred_check_branch
          %1379 = sbr.rel (%p1377) target = $region184
        $region183: #{cauain_forward.1} parent=167 // pred_region
          %1381 = dma.done [#allocation8], 256
        $region184: #{cauain_forward.1} parent=167 // pred_fallthru
          _
        // Predicated region
        $region185: #{cauain_forward.1} parent=167 // pred_check
          %p1382 = pneg %p202
        $region186: #{cauain_forward.1} parent=167 // pred_check_branch
          %1384 = sbr.rel (%p1382) target = $region188
        $region187: #{cauain_forward.1} parent=167 // pred_region
          %1386 = dma.done [#allocation8], 256
        $region188: #{cauain_forward.1} parent=167 // pred_fallthru
          _
        // Predicated region
        $region189: #{cauain_forward.1} parent=167 // pred_check
          %p1387 = pneg %p223
        $region190: #{cauain_forward.1} parent=167 // pred_check_branch
          %1389 = sbr.rel (%p1387) target = $region192
        $region191: #{cauain_forward.1} parent=167 // pred_region
          %1391 = dma.done [#allocation11], 256
        $region192: #{cauain_forward.1} parent=167 // pred_fallthru
          _
        // Predicated region
        $region193: #{cauain_forward.1} parent=167 // pred_check
          %p1392 = pneg %p244
        $region194: #{cauain_forward.1} parent=167 // pred_check_branch
          %1394 = sbr.rel (%p1392) target = $region196
        $region195: #{cauain_forward.1} parent=167 // pred_region
          %1396 = dma.done [#allocation11], 256
        $region196: #{cauain_forward.1} parent=167 // pred_fallthru
          _
        // Predicated region
        $region197: #{cauain_forward.1} parent=167 // pred_check
          %p1397 = pneg %p265
        $region198: #{cauain_forward.1} parent=167 // pred_check_branch
          %1399 = sbr.rel (%p1397) target = $region200
        $region199: #{cauain_forward.1} parent=167 // pred_region
          %1401 = dma.done [#allocation14], 256
        $region200: #{cauain_forward.1} parent=167 // pred_fallthru
          _
        // Predicated region
        $region201: #{cauain_forward.1} parent=167 // pred_check
          %p1402 = pneg %p286
        $region202: #{cauain_forward.1} parent=167 // pred_check_branch
          %1404 = sbr.rel (%p1402) target = $region204
        $region203: #{cauain_forward.1} parent=167 // pred_region
          %1406 = dma.done [#allocation14], 256
        $region204: #{cauain_forward.1} parent=167 // pred_fallthru
          _
        // Predicated region
        $region205: #{cauain_forward.1} parent=167 // pred_check
          %p1407 = pneg %p307
        $region206: #{cauain_forward.1} parent=167 // pred_check_branch
          %1409 = sbr.rel (%p1407) target = $region208
        $region207: #{cauain_forward.1} parent=167 // pred_region
          %1411 = dma.done [#allocation17], 256
        $region208: #{cauain_forward.1} parent=167 // pred_fallthru
          _
        // Predicated region
        $region209: #{cauain_forward.1} parent=167 // pred_check
          %p1412 = pneg %p349
        $region210: #{cauain_forward.1} parent=167 // pred_check_branch
          %1414 = sbr.rel (%p1412) target = $region212
        $region211: #{cauain_forward.1} parent=167 // pred_region
          %1416 = dma.done [#allocation17], 256
        $region212: #{cauain_forward.1} parent=167 // pred_fallthru
          _
        // Predicated region
        $region213: #{cauain_forward.1} parent=167 // pred_check
          %p1417 = pneg %p370
        $region214: #{cauain_forward.1} parent=167 // pred_check_branch
          %1419 = sbr.rel (%p1417) target = $region216
        $region215: #{cauain_forward.1} parent=167 // pred_region
          %1421 = dma.done [#allocation20], 256
        $region216: #{cauain_forward.1} parent=167 // pred_fallthru
          _
        // Predicated region
        $region217: #{cauain_forward.1} parent=167 // pred_check
          %p1422 = pneg %p433
        $region218: #{cauain_forward.1} parent=167 // pred_check_branch
          %1424 = sbr.rel (%p1422) target = $region220
        $region219: #{cauain_forward.1} parent=167 // pred_region
          %1426 = dma.done [#allocation20], 512
        $region220: #{cauain_forward.1} parent=167 // pred_fallthru
          _
        // Predicated region
        $region221: #{cauain_forward.1} parent=167 // pred_check
          %p1427 = pneg %p454
        $region222: #{cauain_forward.1} parent=167 // pred_check_branch
          %1429 = sbr.rel (%p1427) target = $region224
        $region223: #{cauain_forward.1} parent=167 // pred_region
          %1431 = dma.done [#allocation23], 16
        $region224: #{cauain_forward.1} parent=167 // pred_fallthru
          _
        // Predicated region
        $region225: #{cauain_forward.1} parent=167 // pred_check
          %p1432 = pneg %p475
        $region226: #{cauain_forward.1} parent=167 // pred_check_branch
          %1434 = sbr.rel (%p1432) target = $region228
        $region227: #{cauain_forward.1} parent=167 // pred_region
          %1436 = dma.done [#allocation23], 512
        $region228: #{cauain_forward.1} parent=167 // pred_fallthru
          _
        // Predicated region
        $region229: #{cauain_forward.1} parent=167 // pred_check
          %p1437 = pneg %p496
        $region230: #{cauain_forward.1} parent=167 // pred_check_branch
          %1439 = sbr.rel (%p1437) target = $region232
        $region231: #{cauain_forward.1} parent=167 // pred_region
          %1441 = dma.done [#allocation26], 512
        $region232: #{cauain_forward.1} parent=167 // pred_fallthru
          _
        // Predicated region
        $region233: #{cauain_forward.1} parent=167 // pred_check
          %p1442 = pneg %p517
        $region234: #{cauain_forward.1} parent=167 // pred_check_branch
          %1444 = sbr.rel (%p1442) target = $region236
        $region235: #{cauain_forward.1} parent=167 // pred_region
          %1446 = dma.done [#allocation26], 16
        $region236: #{cauain_forward.1} parent=167 // pred_fallthru
          _
        // Predicated region
        $region237: #{cauain_forward.1} parent=167 // pred_check
          %p1447 = pneg %p538
        $region238: #{cauain_forward.1} parent=167 // pred_check_branch
          %1449 = sbr.rel (%p1447) target = $region240
        $region239: #{cauain_forward.1} parent=167 // pred_region
          %1451 = dma.done [#allocation29], 512
        $region240: #{cauain_forward.1} parent=167 // pred_fallthru
          _
        // Predicated region
        $region241: #{cauain_forward.1} parent=167 // pred_check
          %p1452 = pneg %p559
        $region242: #{cauain_forward.1} parent=167 // pred_check_branch
          %1454 = sbr.rel (%p1452) target = $region244
        $region243: #{cauain_forward.1} parent=167 // pred_region
          %1456 = dma.done [#allocation29], 512
        $region244: #{cauain_forward.1} parent=167 // pred_fallthru
          _
        // Predicated region
        $region245: #{cauain_forward.1} parent=167 // pred_check
          %p1457 = pneg %p580
        $region246: #{cauain_forward.1} parent=167 // pred_check_branch
          %1459 = sbr.rel (%p1457) target = $region248
        $region247: #{cauain_forward.1} parent=167 // pred_region
          %1461 = dma.done [#allocation32], 16
        $region248: #{cauain_forward.1} parent=167 // pred_fallthru
          _
        // Predicated region
        $region249: #{cauain_forward.1} parent=167 // pred_check
          %p1462 = pneg %p601
        $region250: #{cauain_forward.1} parent=167 // pred_check_branch
          %1464 = sbr.rel (%p1462) target = $region252
        $region251: #{cauain_forward.1} parent=167 // pred_region
          %1466 = dma.done [#allocation32], 768
        $region252: #{cauain_forward.1} parent=167 // pred_fallthru
          _
        // Predicated region
        $region253: #{cauain_forward.1} parent=167 // pred_check
          %p1467 = pneg %p622
        $region254: #{cauain_forward.1} parent=167 // pred_check_branch
          %1469 = sbr.rel (%p1467) target = $region256
        $region255: #{cauain_forward.1} parent=167 // pred_region
          %1471 = dma.done [#allocation35], 16
        $region256: #{cauain_forward.1} parent=167 // pred_fallthru
          _
        // Predicated region
        $region257: #{cauain_forward.1} parent=167 // pred_check
          %p1472 = pneg %p643
        $region258: #{cauain_forward.1} parent=167 // pred_check_branch
          %1474 = sbr.rel (%p1472) target = $region260
        $region259: #{cauain_forward.1} parent=167 // pred_region
          %1476 = dma.done [#allocation35], 768
        $region260: #{cauain_forward.1} parent=167 // pred_fallthru
          _
        // Predicated region
        $region261: #{cauain_forward.1} parent=167 // pred_check
          %p1477 = pneg %p664
        $region262: #{cauain_forward.1} parent=167 // pred_check_branch
          %1479 = sbr.rel (%p1477) target = $region264
        $region263: #{cauain_forward.1} parent=167 // pred_region
          %1481 = dma.done [#allocation38], 16
        $region264: #{cauain_forward.1} parent=167 // pred_fallthru
          _
        // Predicated region
        $region265: #{cauain_forward.1} parent=167 // pred_check
          %p1482 = pneg %p685
        $region266: #{cauain_forward.1} parent=167 // pred_check_branch
          %1484 = sbr.rel (%p1482) target = $region268
        $region267: #{cauain_forward.1} parent=167 // pred_region
          %1486 = dma.done [#allocation38], 2048
        $region268: #{cauain_forward.1} parent=167 // pred_fallthru
          _
        // Predicated region
        $region269: #{cauain_forward.1} parent=167 // pred_check
          %p1487 = pneg %p727
        $region270: #{cauain_forward.1} parent=167 // pred_check_branch
          %1489 = sbr.rel (%p1487) target = $region272
        $region271: #{cauain_forward.1} parent=167 // pred_region
          %1491 = dma.done [#allocation41], 1024
        $region272: #{cauain_forward.1} parent=167 // pred_fallthru
          _
        // Predicated region
        $region273: #{cauain_forward.1} parent=167 // pred_check
          %p1492 = pneg %p748
        $region274: #{cauain_forward.1} parent=167 // pred_check_branch
          %1494 = sbr.rel (%p1492) target = $region276
        $region275: #{cauain_forward.1} parent=167 // pred_region
          %1496 = dma.done [#allocation41], 16
        $region276: #{cauain_forward.1} parent=167 // pred_fallthru
          _
        // Predicated region
        $region277: #{cauain_forward.1} parent=167 // pred_check
          %p1497 = pneg %p769
        $region278: #{cauain_forward.1} parent=167 // pred_check_branch
          %1499 = sbr.rel (%p1497) target = $region280
        $region279: #{cauain_forward.1} parent=167 // pred_region
          %1501 = dma.done [#allocation44], 2048
        $region280: #{cauain_forward.1} parent=167 // pred_fallthru
          _
        // Predicated region
        $region281: #{cauain_forward.1} parent=167 // pred_check
          %p1502 = pneg %p790
        $region282: #{cauain_forward.1} parent=167 // pred_check_branch
          %1504 = sbr.rel (%p1502) target = $region284
        $region283: #{cauain_forward.1} parent=167 // pred_region
          %1506 = dma.done [#allocation44], 16
        $region284: #{cauain_forward.1} parent=167 // pred_fallthru
          _
        // Predicated region
        $region285: #{cauain_forward.1} parent=167 // pred_check
          %p1507 = pneg %p811
        $region286: #{cauain_forward.1} parent=167 // pred_check_branch
          %1509 = sbr.rel (%p1507) target = $region288
        $region287: #{cauain_forward.1} parent=167 // pred_region
          %1511 = dma.done [#allocation47], 512
        $region288: #{cauain_forward.1} parent=167 // pred_fallthru
          _
        // Predicated region
        $region289: #{cauain_forward.1} parent=167 // pred_check
          %p1512 = pneg %p832
        $region290: #{cauain_forward.1} parent=167 // pred_check_branch
          %1514 = sbr.rel (%p1512) target = $region292
        $region291: #{cauain_forward.1} parent=167 // pred_region
          %1516 = dma.done [#allocation47], 16
        $region292: #{cauain_forward.1} parent=167 // pred_fallthru
          _
        %p1517 = pneg %p118
        %p1518 = pneg %p115
        %p1519 = pneg %p139
        %p1520 = pneg %p136
        %p1521 = pneg %p160
        %p1522 = pneg %p157
        %p1523 = pneg %p181
        %p1524 = pneg %p178
        %p1525 = pneg %p202
        %p1526 = pneg %p199
        %p1527 = pneg %p223
        %p1528 = pneg %p220
        %p1529 = pneg %p244
        %p1530 = pneg %p241
        %p1531 = pneg %p265
        %p1532 = pneg %p262
        %p1533 = pneg %p286
        %p1534 = pneg %p283
        %p1535 = pneg %p307
        %p1536 = pneg %p304
        %p1537 = pneg %p328
        %p1538 = pneg %p325
        %p1539 = pneg %p349
        %p1540 = pneg %p346
        %p1541 = pneg %p370
        %p1542 = pneg %p367
        %p1543 = pneg %p391
        %p1544 = pneg %p388
        %p1545 = pneg %p412
        %p1546 = pneg %p409
        %p1547 = pneg %p433
        %p1548 = pneg %p430
        %p1549 = pneg %p454
        %p1550 = pneg %p451
        %p1551 = pneg %p475
        %p1552 = pneg %p472
        %p1553 = pneg %p496
        %p1554 = pneg %p493
        %p1555 = pneg %p517
        %p1556 = pneg %p514
        %p1557 = pneg %p538
        %p1558 = pneg %p535
        %p1559 = pneg %p559
        %p1560 = pneg %p556
        %p1561 = pneg %p580
        %p1562 = pneg %p577
        %p1563 = pneg %p601
        %p1564 = pneg %p598
        %p1565 = pneg %p622
        %p1566 = pneg %p619
        %p1567 = pneg %p643
        %p1568 = pneg %p640
        %p1569 = pneg %p664
        %p1570 = pneg %p661
        %p1571 = pneg %p685
        %p1572 = pneg %p682
        %p1573 = pneg %p706
        %p1574 = pneg %p703
        %p1575 = pneg %p727
        %p1576 = pneg %p724
        %p1577 = pneg %p748
        %p1578 = pneg %p745
        %p1579 = pneg %p769
        %p1580 = pneg %p766
        %p1581 = pneg %p790
        %p1582 = pneg %p787
        %p1583 = pneg %p811
        %p1584 = pneg %p808
        %p1585 = pneg %p832
        %p1586 = pneg %p829
        %p1587 = pneg %p853
        %p1588 = pneg %p850
        %p1589 = pneg %p874
        %p1590 = pneg %p871
        %p1591 = pneg %p900
        %p1592 = pneg %p897
        %p1593 = scmp.lt.s32.totalorder %s102, 1
        %s1594 = scalar_select %p1593, %s102, 1
        %s1595 = smul.addr %s1594, 8
        %s1596 = scalar_lea.vmem %s75, %s1595
        %p1597 = scmp.lt.s32.totalorder %s102, 1
        %s1598 = scalar_select %p1597, %s102, 1
        %s1599 = smul.addr %s1598, 8
        %s1600 = scalar_lea.vmem %s75, %s1599
        %v1601 = vld [vmem:[#allocation2] sm:$0x3]
        %v1602 = vld [vmem:[#allocation2 + $0x2] sm:$0x3]
        %v1603 = vld [vmem:[#allocation2 + $0x4] sm:$0x3]
        %v1604 = vld [vmem:[#allocation2 + $0x6] sm:$0x3]
        %v1605 = vld [vmem:[#allocation2 + $0x8] sm:$0x3]
        %v1606 = vld [vmem:[#allocation2 + $0xa] sm:$0x3]
        %v1607 = vld [vmem:[#allocation2 + $0xc] sm:$0x3]
        %v1608 = vld [vmem:[#allocation2 + $0xe] sm:$0x3]
        %p1609 = scmp.eq.s32.totalorder %s102, 1
        %s1610 = scalar_select %p1609, 1, 0
        %v1611 = vstv %s1610
        %vm1612 = vcmp.eq.s32.totalorder %v1611, 1
        %v1621 = vrot.slane %v1601, 7
        %v1622 = vrot.slane %v1602, 7
        %v1623 = vrot.slane %v1603, 7
        %v1624 = vrot.slane %v1604, 7
        %v1625 = vrot.slane %v1605, 7
        %v1626 = vrot.slane %v1606, 7
        %v1627 = vrot.slane %v1607, 7
        %v1628 = vrot.slane %v1608, 7
        %v1637 = vsel %vm1612, %v1601, %v1621
        %v1638 = vsel %vm1612, %v1602, %v1622
        %v1639 = vsel %vm1612, %v1603, %v1623
        %v1640 = vsel %vm1612, %v1604, %v1624
        %v1641 = vsel %vm1612, %v1605, %v1625
        %v1642 = vsel %vm1612, %v1606, %v1626
        %v1643 = vsel %vm1612, %v1607, %v1627
        %v1644 = vsel %vm1612, %v1608, %v1628
        %v1645 = vld [vmem:[#allocation4] sm:$0x3]
        %v1646 = vld [vmem:[#allocation4 + $0x2] sm:$0x3]
        %v1647 = vld [vmem:[#allocation4 + $0x4] sm:$0x3]
        %v1648 = vld [vmem:[#allocation4 + $0x6] sm:$0x3]
        %v1649 = vld [vmem:[#allocation4 + $0x8] sm:$0x3]
        %v1650 = vld [vmem:[#allocation4 + $0xa] sm:$0x3]
        %v1651 = vld [vmem:[#allocation4 + $0xc] sm:$0x3]
        %v1652 = vld [vmem:[#allocation4 + $0xe] sm:$0x3]
        %v1661 = vrot.slane %v1645, 7
        %v1662 = vrot.slane %v1646, 7
        %v1663 = vrot.slane %v1647, 7
        %v1664 = vrot.slane %v1648, 7
        %v1665 = vrot.slane %v1649, 7
        %v1666 = vrot.slane %v1650, 7
        %v1667 = vrot.slane %v1651, 7
        %v1668 = vrot.slane %v1652, 7
        %v1677 = vsel %vm1612, %v1645, %v1661
        %v1678 = vsel %vm1612, %v1646, %v1662
        %v1679 = vsel %vm1612, %v1647, %v1663
        %v1680 = vsel %vm1612, %v1648, %v1664
        %v1681 = vsel %vm1612, %v1649, %v1665
        %v1682 = vsel %vm1612, %v1650, %v1666
        %v1683 = vsel %vm1612, %v1651, %v1667
        %v1684 = vsel %vm1612, %v1652, %v1668
        %v1685 = vadd.f32 %v1637, %v1677
        %v1686 = vadd.f32 %v1638, %v1678
        %v1687 = vadd.f32 %v1639, %v1679
        %v1688 = vadd.f32 %v1640, %v1680
        %v1689 = vadd.f32 %v1641, %v1681
        %v1690 = vadd.f32 %v1642, %v1682
        %v1691 = vadd.f32 %v1643, %v1683
        %v1692 = vadd.f32 %v1644, %v1684
        %v1693 = vld [vmem:[#allocation6] sm:$0x3]
        %v1694 = vld [vmem:[#allocation6 + $0x2] sm:$0x3]
        %v1695 = vld [vmem:[#allocation6 + $0x4] sm:$0x3]
        %v1696 = vld [vmem:[#allocation6 + $0x6] sm:$0x3]
        %v1697 = vld [vmem:[#allocation6 + $0x8] sm:$0x3]
        %v1698 = vld [vmem:[#allocation6 + $0xa] sm:$0x3]
        %v1699 = vld [vmem:[#allocation6 + $0xc] sm:$0x3]
        %v1700 = vld [vmem:[#allocation6 + $0xe] sm:$0x3]
        %v1709 = vrot.slane %v1693, 7
        %v1710 = vrot.slane %v1694, 7
        %v1711 = vrot.slane %v1695, 7
        %v1712 = vrot.slane %v1696, 7
        %v1713 = vrot.slane %v1697, 7
        %v1714 = vrot.slane %v1698, 7
        %v1715 = vrot.slane %v1699, 7
        %v1716 = vrot.slane %v1700, 7
        %v1725 = vsel %vm1612, %v1693, %v1709
        %v1726 = vsel %vm1612, %v1694, %v1710
        %v1727 = vsel %vm1612, %v1695, %v1711
        %v1728 = vsel %vm1612, %v1696, %v1712
        %v1729 = vsel %vm1612, %v1697, %v1713
        %v1730 = vsel %vm1612, %v1698, %v1714
        %v1731 = vsel %vm1612, %v1699, %v1715
        %v1732 = vsel %vm1612, %v1700, %v1716
        %v1733 = vadd.f32 %v1685, %v1725
        %v1734 = vadd.f32 %v1686, %v1726
        %v1735 = vadd.f32 %v1687, %v1727
        %v1736 = vadd.f32 %v1688, %v1728
        %v1737 = vadd.f32 %v1689, %v1729
        %v1738 = vadd.f32 %v1690, %v1730
        %v1739 = vadd.f32 %v1691, %v1731
        %v1740 = vadd.f32 %v1692, %v1732
        %v1741 = vld [vmem:[#allocation7] sm:$0x3]
        %v1742 = vld [vmem:[#allocation7 + $0x2] sm:$0x3]
        %v1743 = vld [vmem:[#allocation7 + $0x4] sm:$0x3]
        %v1744 = vld [vmem:[#allocation7 + $0x6] sm:$0x3]
        %v1745 = vld [vmem:[#allocation7 + $0x8] sm:$0x3]
        %v1746 = vld [vmem:[#allocation7 + $0xa] sm:$0x3]
        %v1747 = vld [vmem:[#allocation7 + $0xc] sm:$0x3]
        %v1748 = vld [vmem:[#allocation7 + $0xe] sm:$0x3]
        %v1757 = vrot.slane %v1741, 7
        %v1758 = vrot.slane %v1742, 7
        %v1759 = vrot.slane %v1743, 7
        %v1760 = vrot.slane %v1744, 7
        %v1761 = vrot.slane %v1745, 7
        %v1762 = vrot.slane %v1746, 7
        %v1763 = vrot.slane %v1747, 7
        %v1764 = vrot.slane %v1748, 7
        %v1773 = vsel %vm1612, %v1741, %v1757
        %v1774 = vsel %vm1612, %v1742, %v1758
        %v1775 = vsel %vm1612, %v1743, %v1759
        %v1776 = vsel %vm1612, %v1744, %v1760
        %v1777 = vsel %vm1612, %v1745, %v1761
        %v1778 = vsel %vm1612, %v1746, %v1762
        %v1779 = vsel %vm1612, %v1747, %v1763
        %v1780 = vsel %vm1612, %v1748, %v1764
        %v1781 = vadd.f32 %v1733, %v1773
        %v1782 = vadd.f32 %v1734, %v1774
        %v1783 = vadd.f32 %v1735, %v1775
        %v1784 = vadd.f32 %v1736, %v1776
        %v1785 = vadd.f32 %v1737, %v1777
        %v1786 = vadd.f32 %v1738, %v1778
        %v1787 = vadd.f32 %v1739, %v1779
        %v1788 = vadd.f32 %v1740, %v1780
        %v1789 = vmul.f32 %v1781, 0.25
        %v1790 = vmul.f32 %v1782, 0.25
        %v1791 = vmul.f32 %v1783, 0.25
        %v1792 = vmul.f32 %v1784, 0.25
        %v1793 = vmul.f32 %v1785, 0.25
        %v1794 = vmul.f32 %v1786, 0.25
        %v1795 = vmul.f32 %v1787, 0.25
        %v1796 = vmul.f32 %v1788, 0.25
        %v1805 = vrot.slane %v1790, 7
        %vm1806 = vcmask 1042434
        %v1807 = vsel %vm1806, %v1805, %v1789
        %v1808 = vrot.slane %v1791, 6
        %vm1809 = vcmask 1043459
        %v1810 = vsel %vm1809, %v1808, %v1807
        %v1811 = vrot.slane %v1792, 5
        %vm1812 = vcmask 1044484
        %v1813 = vsel %vm1812, %v1811, %v1810
        %v1814 = vrot.slane %v1793, 4
        %vm1815 = vcmask 1045509
        %v1816 = vsel %vm1815, %v1814, %v1813
        %v1817 = vrot.slane %v1794, 3
        %vm1818 = vcmask 1046534
        %v1819 = vsel %vm1818, %v1817, %v1816
        %v1820 = vrot.slane %v1795, 2
        %vm1821 = vcmask 1047559
        %v1822 = vsel %vm1821, %v1820, %v1819
        %v1823 = vrot.slane %v1796, 1
        %vm1826 = vcmask 261121
        %v1827 = vsel %vm1826, %v1822, 0.0
        %1828 = vadd.xlane.f32.xlu0 %v1827
        %v1829 = vpop.xlane.xlu0 %1828
        %vm1830 = vcmask 253952
        %v1831 = vsel %vm1830, %v1823, 0.0
        %1832 = vadd.xlane.f32.xlu0 %v1831
        %v1833 = vpop.xlane.xlu0 %1832
        %v1834 = vrcp.pop 32.0
        %v1835 = vmul.f32 32.0, %v1834
        %v1836 = vsub.f32 1.0, %v1835
        %v1837 = vmul.f32 %v1834, %v1836
        %v1838 = vadd.f32 %v1834, %v1837
        %vm1839 = vweird.f32 %v1834
        %v1840 = vsel %vm1839, %v1834, %v1838
        %v1841 = vmul.f32 %v1829, %v1840
        %v1842 = vmul.f32 %v1833, %v1840
        %v1845 = vrot.slane %v1841, 1
        %v1846 = vrot.slane %v1841, 2
        %v1847 = vrot.slane %v1841, 3
        %v1848 = vrot.slane %v1841, 4
        %v1849 = vrot.slane %v1841, 5
        %v1850 = vrot.slane %v1841, 6
        %v1851 = vrot.slane %v1842, 7
        %v1860 = vsub.f32 %v1789, %v1841
        %v1861 = vsub.f32 %v1790, %v1845
        %v1862 = vsub.f32 %v1791, %v1846
        %v1863 = vsub.f32 %v1792, %v1847
        %v1864 = vsub.f32 %v1793, %v1848
        %v1865 = vsub.f32 %v1794, %v1849
        %v1866 = vsub.f32 %v1795, %v1850
        %v1867 = vsub.f32 %v1796, %v1851
        %v1868 = vmul.f32 %v1860, %v1860
        %v1869 = vmul.f32 %v1861, %v1861
        %v1870 = vmul.f32 %v1862, %v1862
        %v1871 = vmul.f32 %v1863, %v1863
        %v1872 = vmul.f32 %v1864, %v1864
        %v1873 = vmul.f32 %v1865, %v1865
        %v1874 = vmul.f32 %v1866, %v1866
        %v1875 = vmul.f32 %v1867, %v1867
        %v1884 = vrot.slane %v1869, 7
        %v1885 = vsel %vm1806, %v1884, %v1868
        %v1886 = vrot.slane %v1870, 6
        %v1887 = vsel %vm1809, %v1886, %v1885
        %v1888 = vrot.slane %v1871, 5
        %v1889 = vsel %vm1812, %v1888, %v1887
        %v1890 = vrot.slane %v1872, 4
        %v1891 = vsel %vm1815, %v1890, %v1889
        %v1892 = vrot.slane %v1873, 3
        %v1893 = vsel %vm1818, %v1892, %v1891
        %v1894 = vrot.slane %v1874, 2
        %v1895 = vsel %vm1821, %v1894, %v1893
        %v1896 = vrot.slane %v1875, 1
        %v1899 = vsel %vm1826, %v1895, 0.0
        %1900 = vadd.xlane.f32.xlu0 %v1899
        %v1901 = vpop.xlane.xlu0 %1900
        %v1902 = vsel %vm1830, %v1896, 0.0
        %1903 = vadd.xlane.f32.xlu0 %v1902
        %v1904 = vpop.xlane.xlu0 %1903
        %v1905 = vmul.f32 %v1901, %v1840
        %v1906 = vmul.f32 %v1904, %v1840
        %v1907 = vadd.f32 %v1905, 1e-05
        %v1908 = vadd.f32 %v1906, 1e-05
        %v1909 = vrsqrt.pop %v1907
        %v1910 = vmul.f32 %v1909, %v1907
        %v1911 = vmul.f32 %v1910, %v1909
        %v1912 = vmul.f32 0.5, %v1911
        %v1913 = vsub.f32 1.5, %v1912
        %v1914 = vmul.f32 %v1909, %v1913
        %vm1915 = vweird.f32 %v1907
        %vm1916 = vweird.f32 %v1909
        %vm1917 = vmor %vm1915, %vm1916
        %v1918 = vsel %vm1917, %v1909, %v1914
        %v1919 = vrsqrt.pop %v1908
        %v1920 = vmul.f32 %v1919, %v1908
        %v1921 = vmul.f32 %v1920, %v1919
        %v1922 = vmul.f32 0.5, %v1921
        %v1923 = vsub.f32 1.5, %v1922
        %v1924 = vmul.f32 %v1919, %v1923
        %vm1925 = vweird.f32 %v1908
        %vm1926 = vweird.f32 %v1919
        %vm1927 = vmor %vm1925, %vm1926
        %v1928 = vsel %vm1927, %v1919, %v1924
        %v1931 = vrot.slane %v1918, 1
        %v1932 = vrot.slane %v1918, 2
        %v1933 = vrot.slane %v1918, 3
        %v1934 = vrot.slane %v1918, 4
        %v1935 = vrot.slane %v1918, 5
        %v1936 = vrot.slane %v1918, 6
        %v1937 = vrot.slane %v1928, 7
        %v1946 = vmul.f32 %v1860, %v1918
        %v1947 = vmul.f32 %v1861, %v1931
        %v1948 = vmul.f32 %v1862, %v1932
        %v1949 = vmul.f32 %v1863, %v1933
        %v1950 = vmul.f32 %v1864, %v1934
        %v1951 = vmul.f32 %v1865, %v1935
        %v1952 = vmul.f32 %v1866, %v1936
        %v1953 = vmul.f32 %v1867, %v1937
        %v1954 = vld [vmem:[%s27] sm:$0x1]
        %v1956 = vperm.slane %v1954, 0
        %v1958 = vmul.f32 %v1946, %v1956
        %v1959 = vmul.f32 %v1947, %v1956
        %v1960 = vmul.f32 %v1948, %v1956
        %v1961 = vmul.f32 %v1949, %v1956
        %v1962 = vmul.f32 %v1950, %v1956
        %v1963 = vmul.f32 %v1951, %v1956
        %v1964 = vmul.f32 %v1952, %v1956
        %v1965 = vmul.f32 %v1953, %v1956
        %v1966 = vld [vmem:[%s29] sm:$0x1]
        %v1968 = vperm.slane %v1966, 0
        %v1970 = vadd.f32 %v1958, %v1968
        %v1971 = vadd.f32 %v1959, %v1968
        %v1972 = vadd.f32 %v1960, %v1968
        %v1973 = vadd.f32 %v1961, %v1968
        %v1974 = vadd.f32 %v1962, %v1968
        %v1975 = vadd.f32 %v1963, %v1968
        %v1976 = vadd.f32 %v1964, %v1968
        %v1977 = vadd.f32 %v1965, %v1968
        %v1978 = vld [vmem:[#allocation21] sm:$0xff]
        %v1979 = vld [vmem:[#allocation21 + $0x8] sm:$0xff]
        %v1980 = vld [vmem:[#allocation21 + $0x10] sm:$0xff]
        %v1981 = vld [vmem:[#allocation21 + $0x18] sm:$0xff]
        %v1982 = vld [vmem:[#allocation22] sm:$0x1]
        %v1984 = vperm.slane %v1982, 0
        %v1994 = vrot.slane %v1970, 1
        %vm1995 = vcmask 1041409
        %v1996 = vsel %vm1995, %v1971, %v1994
        %v1997 = vrot.slane %v1972, 7
        %v1998 = vsel %vm1806, %v1997, %v1996
        %v1999 = vrot.slane %v1973, 6
        %v2000 = vsel %vm1809, %v1999, %v1998
        %v2001 = vrot.slane %v1974, 5
        %v2002 = vsel %vm1812, %v2001, %v2000
        %v2003 = vrot.slane %v1975, 4
        %v2004 = vsel %vm1815, %v2003, %v2002
        %v2005 = vrot.slane %v1976, 3
        %v2006 = vsel %vm1818, %v2005, %v2004
        %v2007 = vrot.slane %v1977, 2
        %v2008 = vsel %vm1821, %v2007, %v2006
        %vm2009 = vcmask 261120
        %v2010 = vsel %vm2009, %v2008, 0
        %2012 = vmatpush.msra.mxu0 0.0
        %2013 = vmatpush.msra.mxu0 0.0
        %2014 = vmatpush.msra.mxu0 0.0
        %2015 = vmatpush.msra.mxu0 0.0
        %2016 = vmatpush.msra.mxu0 0.0
        %2017 = vmatpush.msra.mxu0 0.0
        %2018 = vmatpush.msra.mxu0 0.0
        %2019 = vmatpush.msra.mxu0 0.0
        %2020 = vmatpush.msra.mxu0 0.0
        %2021 = vmatpush.msra.mxu0 0.0
        %2022 = vmatpush.msra.mxu0 0.0
        %2023 = vmatpush.msra.mxu0 0.0
        %2024 = vmatpush.msra.mxu0 %v1981
        %2025 = vmatpush.msra.mxu0 %v1980
        %2026 = vmatpush.msra.mxu0 %v1979
        %2027 = vmatpush.msra.mxu0 %v1978
        %2028 = vmatmul.f32.gmra.mxu0 %v2010
        %v2029 = vpop.f32.mrf.mxu0
        %v2030 = vadd.f32 %v1984, %v2029
        %2031 = vdwg.mxu0
        %v2032 = vld [vmem:[%s21] sm:$0x3]
        %v2034 = vrot.slane %v2032, 7
        %v2036 = vsel %vm1612, %v2032, %v2034
        %vm2037 = vcmp.ne.f32.partialorder %v2036, 0.0
        %v2038 = vsel %vm2037, 1, 0
        %v2039 = vcvt.s32.f32 %v2038
        %v2040 = vld [vmem:[#allocation24] sm:$0xff]
        %v2041 = vld [vmem:[#allocation24 + $0x8] sm:$0xff]
        %v2042 = vld [vmem:[#allocation24 + $0x10] sm:$0xff]
        %v2043 = vld [vmem:[#allocation24 + $0x18] sm:$0xff]
        %v2044 = vld [vmem:[#allocation25] sm:$0xff]
        %v2045 = vld [vmem:[#allocation25 + $0x8] sm:$0xff]
        %v2046 = vld [vmem:[#allocation25 + $0x10] sm:$0xff]
        %v2047 = vld [vmem:[#allocation25 + $0x18] sm:$0xff]
        %v2048 = vld [vmem:[#allocation27] sm:$0x1]
        %v2049 = vld [vmem:[#allocation28] sm:$0xff]
        %v2050 = vld [vmem:[#allocation28 + $0x8] sm:$0xff]
        %v2051 = vld [vmem:[#allocation28 + $0x10] sm:$0xff]
        %v2052 = vld [vmem:[#allocation28 + $0x18] sm:$0xff]
        %v2053 = vld [vmem:[#allocation30] sm:$0xff]
        %v2054 = vld [vmem:[#allocation30 + $0x8] sm:$0xff]
        %v2055 = vld [vmem:[#allocation30 + $0x10] sm:$0xff]
        %v2056 = vld [vmem:[#allocation30 + $0x18] sm:$0xff]
        %v2057 = vld [vmem:[#allocation31] sm:$0x1]
        %v2059 = vsel %vm2009, 0.0, 0
        %2061 = vmatpush.msra.mxu0 0.0
        %2062 = vmatpush.msra.mxu0 0.0
        %2063 = vmatpush.msra.mxu0 0.0
        %2064 = vmatpush.msra.mxu0 0.0
        %2065 = vmatpush.msra.mxu0 0.0
        %2066 = vmatpush.msra.mxu0 0.0
        %2067 = vmatpush.msra.mxu0 0.0
        %2068 = vmatpush.msra.mxu0 0.0
        %2069 = vmatpush.msra.mxu0 0.0
        %2070 = vmatpush.msra.mxu0 0.0
        %2071 = vmatpush.msra.mxu0 0.0
        %2072 = vmatpush.msra.mxu0 0.0
        %2073 = vmatpush.msra.mxu0 %v2047
        %2074 = vmatpush.msra.mxu0 %v2046
        %2075 = vmatpush.msra.mxu0 %v2045
        %2076 = vmatpush.msra.mxu0 %v2044
        %2077 = vmatmul.f32.gmra.mxu0 %v2059
        %v2078 = vpop.f32.mrf.mxu0
        %v2079 = vadd.f32 0.0, %v2078
        %2080 = vdwg.mxu0
        %v2082 = vsel %vm2009, %v2030, 0
        %2084 = vmatpush.msra.mxu0 0.0
        %2085 = vmatpush.msra.mxu0 0.0
        %2086 = vmatpush.msra.mxu0 0.0
        %2087 = vmatpush.msra.mxu0 0.0
        %2088 = vmatpush.msra.mxu0 0.0
        %2089 = vmatpush.msra.mxu0 0.0
        %2090 = vmatpush.msra.mxu0 0.0
        %2091 = vmatpush.msra.mxu0 0.0
        %2092 = vmatpush.msra.mxu0 0.0
        %2093 = vmatpush.msra.mxu0 0.0
        %2094 = vmatpush.msra.mxu0 0.0
        %2095 = vmatpush.msra.mxu0 0.0
        %2096 = vmatpush.msra.mxu0 %v2043
        %2097 = vmatpush.msra.mxu0 %v2042
        %2098 = vmatpush.msra.mxu0 %v2041
        %2099 = vmatpush.msra.mxu0 %v2040
        %2100 = vmatmul.f32.gmra.mxu0 %v2082
        %v2101 = vpop.f32.mrf.mxu0
        %v2102 = vadd.f32 %v2079, %v2101
        %2103 = vdwg.mxu0
        %v2104 = vadd.f32 %v2102, %v2048
        %v2105 = vxor.u32 %v2104, 2147483648
        %v2106 = vmul.f32 %v2105, 1.442695
        %v2107 = vpow.pop %v2106
        %v2108 = vadd.f32 %v2107, 1.0
        %v2109 = vrcp.pop %v2108
        %v2110 = vmul.f32 %v2108, %v2109
        %v2111 = vsub.f32 1.0, %v2110
        %v2112 = vmul.f32 %v2109, %v2111
        %v2113 = vadd.f32 %v2109, %v2112
        %vm2114 = vweird.f32 %v2108
        %vm2115 = vweird.f32 %v2109
        %vm2116 = vmor %vm2114, %vm2115
        %v2117 = vsel %vm2116, %v2109, %v2113
        %v2118 = vand.u32 2147483647, %v2108
        %vm2119 = vcmp.eq.f32.partialorder %v2118, 8.507059e+37
        %v2120 = vand.u32 %v2108, 2147483648
        %v2121 = vor.u32 1.1754944e-38, %v2120
        %v2122 = vsel %vm2119, %v2121, %v2117
        %v2123 = vmul.f32 1.0, %v2122
        %v2124 = vtanh.pop %v2104
        %v2125 = vmul.f32 %v2123, 0.0
        %2127 = vrot.lane.b32.xlu0 %v2124, 64
        %v2128 = vpop.permute.xlu0 %2127
        %v2130 = vmul.f32 %v2123, %v2128
        %2132 = vrot.lane.b32.xlu0 %v2130, 32
        %v2133 = vpop.permute.xlu0 %2132
        %v2135 = vadd.f32 %v2125, %v2133
        %v2136 = vtanh.pop %v2135
        %2138 = vrot.lane.b32.xlu0 %v2136, 64
        %v2139 = vpop.permute.xlu0 %2138
        %v2141 = vmul.f32 %v2123, %v2139
        %2143 = vset.pattern.permute.xlu0 0
        %2144 = vperm.xlu0 %2143, %v2039
        %v2145 = vpop.permute.xlu0 %2144
        %v2148 = vrot.slane %v2141, 7
        %2149 = vrot.lane.b32.xlu0 %v2148, 32
        %v2150 = vpop.permute.xlu0 %2149
        %v2152 = vmul.f32 %v2145, %v2150
        %v2153 = vsub.f32 1.0, %v2039
        %2155 = vset.pattern.permute.xlu0 0
        %2156 = vperm.xlu0 %2155, %v2153
        %v2157 = vpop.permute.xlu0 %2156
        %v2159 = vmul.f32 %v2157, 0.0
        %v2160 = vadd.f32 %v2152, %v2159
        %v2162 = vrot.slane %v2135, 7
        %2163 = vrot.lane.b32.xlu0 %v2162, 96
        %v2164 = vpop.permute.xlu0 %2163
        %v2166 = vmul.f32 %v2145, %v2164
        %v2167 = vadd.f32 %v2166, %v2159
        %2168 = vmatpush.msra.mxu0 0.0
        %2169 = vmatpush.msra.mxu0 0.0
        %2170 = vmatpush.msra.mxu0 0.0
        %2171 = vmatpush.msra.mxu0 0.0
        %2172 = vmatpush.msra.mxu0 0.0
        %2173 = vmatpush.msra.mxu0 0.0
        %2174 = vmatpush.msra.mxu0 0.0
        %2175 = vmatpush.msra.mxu0 0.0
        %2176 = vmatpush.msra.mxu0 0.0
        %2177 = vmatpush.msra.mxu0 0.0
        %2178 = vmatpush.msra.mxu0 0.0
        %2179 = vmatpush.msra.mxu0 0.0
        %2180 = vmatpush.msra.mxu0 %v2056
        %2181 = vmatpush.msra.mxu0 %v2055
        %2182 = vmatpush.msra.mxu0 %v2054
        %2183 = vmatpush.msra.mxu0 %v2053
        %2184 = vmatmul.f32.gmra.mxu0 %v2059
        %v2185 = vpop.f32.mrf.mxu0
        %v2186 = vadd.f32 0.0, %v2185
        %2187 = vdwg.mxu0
        %v2188 = vrot.slane %v2030, 7
        %v2189 = vsel %vm2009, %v2188, 0
        %2191 = vmatpush.msra.mxu0 0.0
        %2192 = vmatpush.msra.mxu0 0.0
        %2193 = vmatpush.msra.mxu0 0.0
        %2194 = vmatpush.msra.mxu0 0.0
        %2195 = vmatpush.msra.mxu0 0.0
        %2196 = vmatpush.msra.mxu0 0.0
        %2197 = vmatpush.msra.mxu0 0.0
        %2198 = vmatpush.msra.mxu0 0.0
        %2199 = vmatpush.msra.mxu0 0.0
        %2200 = vmatpush.msra.mxu0 0.0
        %2201 = vmatpush.msra.mxu0 0.0
        %2202 = vmatpush.msra.mxu0 0.0
        %2203 = vmatpush.msra.mxu0 %v2052
        %2204 = vmatpush.msra.mxu0 %v2051
        %2205 = vmatpush.msra.mxu0 %v2050
        %2206 = vmatpush.msra.mxu0 %v2049
        %2207 = vmatmul.f32.gmra.mxu0 %v2189
        %v2208 = vpop.f32.mrf.mxu0
        %v2209 = vadd.f32 %v2186, %v2208
        %2210 = vdwg.mxu0
        %v2211 = vadd.f32 %v2209, %v2057
        %v2212 = vxor.u32 %v2211, 2147483648
        %v2213 = vmul.f32 %v2212, 1.442695
        %v2214 = vpow.pop %v2213
        %v2215 = vadd.f32 %v2214, 1.0
        %v2216 = vrcp.pop %v2215
        %v2217 = vmul.f32 %v2215, %v2216
        %v2218 = vsub.f32 1.0, %v2217
        %v2219 = vmul.f32 %v2216, %v2218
        %v2220 = vadd.f32 %v2216, %v2219
        %vm2221 = vweird.f32 %v2215
        %vm2222 = vweird.f32 %v2216
        %vm2223 = vmor %vm2221, %vm2222
        %v2224 = vsel %vm2223, %v2216, %v2220
        %v2225 = vand.u32 2147483647, %v2215
        %vm2226 = vcmp.eq.f32.partialorder %v2225, 8.507059e+37
        %v2227 = vand.u32 %v2215, 2147483648
        %v2228 = vor.u32 1.1754944e-38, %v2227
        %v2229 = vsel %vm2226, %v2228, %v2224
        %v2230 = vmul.f32 1.0, %v2229
        %v2231 = vtanh.pop %v2211
        %v2232 = vmul.f32 %v2230, 0.0
        %2234 = vrot.lane.b32.xlu0 %v2231, 64
        %v2235 = vpop.permute.xlu0 %2234
        %v2237 = vmul.f32 %v2230, %v2235
        %2239 = vrot.lane.b32.xlu0 %v2237, 32
        %v2240 = vpop.permute.xlu0 %2239
        %v2242 = vadd.f32 %v2232, %v2240
        %v2243 = vtanh.pop %v2242
        %2245 = vrot.lane.b32.xlu0 %v2243, 64
        %v2246 = vpop.permute.xlu0 %2245
        %v2248 = vmul.f32 %v2230, %v2246
        %2249 = vset.pattern.permute.xlu0 7
        %2250 = vperm.xlu0 %2249, %v2039
        %v2251 = vpop.permute.xlu0 %2250
        %v2254 = vrot.slane %v2248, 7
        %2255 = vrot.lane.b32.xlu0 %v2254, 32
        %v2256 = vpop.permute.xlu0 %2255
        %v2258 = vmul.f32 %v2251, %v2256
        %2259 = vset.pattern.permute.xlu0 7
        %2260 = vperm.xlu0 %2259, %v2153
        %v2261 = vpop.permute.xlu0 %2260
        %v2263 = vmul.f32 %v2261, 0.0
        %v2264 = vadd.f32 %v2258, %v2263
        %v2266 = vrot.slane %v2242, 7
        %2267 = vrot.lane.b32.xlu0 %v2266, 96
        %v2268 = vpop.permute.xlu0 %2267
        %v2270 = vmul.f32 %v2251, %v2268
        %v2271 = vadd.f32 %v2270, %v2263
        %v2273 = vrot.slane %v2160, 1
        %v2274 = vsel %vm2009, %v2273, 0
        %2276 = vmatpush.msra.mxu0 0.0
        %2277 = vmatpush.msra.mxu0 0.0
        %2278 = vmatpush.msra.mxu0 0.0
        %2279 = vmatpush.msra.mxu0 0.0
        %2280 = vmatpush.msra.mxu0 0.0
        %2281 = vmatpush.msra.mxu0 0.0
        %2282 = vmatpush.msra.mxu0 0.0
        %2283 = vmatpush.msra.mxu0 0.0
        %2284 = vmatpush.msra.mxu0 0.0
        %2285 = vmatpush.msra.mxu0 0.0
        %2286 = vmatpush.msra.mxu0 0.0
        %2287 = vmatpush.msra.mxu0 0.0
        %2288 = vmatpush.msra.mxu0 %v2047
        %2289 = vmatpush.msra.mxu0 %v2046
        %2290 = vmatpush.msra.mxu0 %v2045
        %2291 = vmatpush.msra.mxu0 %v2044
        %2292 = vmatmul.f32.gmra.mxu0 %v2274
        %v2293 = vpop.f32.mrf.mxu0
        %v2294 = vadd.f32 0.0, %v2293
        %2295 = vdwg.mxu0
        %v2296 = vrot.slane %v2030, 1
        %v2297 = vsel %vm2009, %v2296, 0
        %2299 = vmatpush.msra.mxu0 0.0
        %2300 = vmatpush.msra.mxu0 0.0
        %2301 = vmatpush.msra.mxu0 0.0
        %2302 = vmatpush.msra.mxu0 0.0
        %2303 = vmatpush.msra.mxu0 0.0
        %2304 = vmatpush.msra.mxu0 0.0
        %2305 = vmatpush.msra.mxu0 0.0
        %2306 = vmatpush.msra.mxu0 0.0
        %2307 = vmatpush.msra.mxu0 0.0
        %2308 = vmatpush.msra.mxu0 0.0
        %2309 = vmatpush.msra.mxu0 0.0
        %2310 = vmatpush.msra.mxu0 0.0
        %2311 = vmatpush.msra.mxu0 %v2043
        %2312 = vmatpush.msra.mxu0 %v2042
        %2313 = vmatpush.msra.mxu0 %v2041
        %2314 = vmatpush.msra.mxu0 %v2040
        %2315 = vmatmul.f32.gmra.mxu0 %v2297
        %v2316 = vpop.f32.mrf.mxu0
        %v2317 = vadd.f32 %v2294, %v2316
        %2318 = vdwg.mxu0
        %v2319 = vadd.f32 %v2317, %v2048
        %v2320 = vxor.u32 %v2319, 2147483648
        %v2321 = vmul.f32 %v2320, 1.442695
        %v2322 = vpow.pop %v2321
        %v2323 = vadd.f32 %v2322, 1.0
        %v2324 = vrcp.pop %v2323
        %v2325 = vmul.f32 %v2323, %v2324
        %v2326 = vsub.f32 1.0, %v2325
        %v2327 = vmul.f32 %v2324, %v2326
        %v2328 = vadd.f32 %v2324, %v2327
        %vm2329 = vweird.f32 %v2323
        %vm2330 = vweird.f32 %v2324
        %vm2331 = vmor %vm2329, %vm2330
        %v2332 = vsel %vm2331, %v2324, %v2328
        %v2333 = vand.u32 2147483647, %v2323
        %vm2334 = vcmp.eq.f32.partialorder %v2333, 8.507059e+37
        %v2335 = vand.u32 %v2323, 2147483648
        %v2336 = vor.u32 1.1754944e-38, %v2335
        %v2337 = vsel %vm2334, %v2336, %v2332
        %v2338 = vmul.f32 1.0, %v2337
        %v2339 = vtanh.pop %v2319
        %v2341 = vrot.slane %v2167, 1
        %2342 = vrot.lane.b32.xlu0 %v2341, 32
        %v2343 = vpop.permute.xlu0 %2342
        %v2345 = vmul.f32 %v2338, %v2343
        %2347 = vrot.lane.b32.xlu0 %v2339, 64
        %v2348 = vpop.permute.xlu0 %2347
        %v2350 = vmul.f32 %v2338, %v2348
        %2352 = vrot.lane.b32.xlu0 %v2350, 32
        %v2353 = vpop.permute.xlu0 %2352
        %v2355 = vadd.f32 %v2345, %v2353
        %v2356 = vtanh.pop %v2355
        %2358 = vrot.lane.b32.xlu0 %v2356, 64
        %v2359 = vpop.permute.xlu0 %2358
        %v2361 = vmul.f32 %v2338, %v2359
        %2362 = vset.pattern.permute.xlu0 1
        %2363 = vperm.xlu0 %2362, %v2039
        %v2364 = vpop.permute.xlu0 %2363
        %v2367 = vrot.slane %v2361, 7
        %2368 = vrot.lane.b32.xlu0 %v2367, 32
        %v2369 = vpop.permute.xlu0 %2368
        %v2371 = vmul.f32 %v2364, %v2369
        %2372 = vset.pattern.permute.xlu0 1
        %2373 = vperm.xlu0 %2372, %v2153
        %v2374 = vpop.permute.xlu0 %2373
        %v2376 = vmul.f32 %v2374, %v2160
        %v2377 = vadd.f32 %v2371, %v2376
        %v2379 = vrot.slane %v2355, 7
        %2380 = vrot.lane.b32.xlu0 %v2379, 96
        %v2381 = vpop.permute.xlu0 %2380
        %v2383 = vmul.f32 %v2364, %v2381
        %v2384 = vmul.f32 %v2374, %v2167
        %v2385 = vadd.f32 %v2383, %v2384
        %v2387 = vrot.slane %v2264, 1
        %v2388 = vsel %vm2009, %v2387, 0
        %2390 = vmatpush.msra.mxu0 0.0
        %2391 = vmatpush.msra.mxu0 0.0
        %2392 = vmatpush.msra.mxu0 0.0
        %2393 = vmatpush.msra.mxu0 0.0
        %2394 = vmatpush.msra.mxu0 0.0
        %2395 = vmatpush.msra.mxu0 0.0
        %2396 = vmatpush.msra.mxu0 0.0
        %2397 = vmatpush.msra.mxu0 0.0
        %2398 = vmatpush.msra.mxu0 0.0
        %2399 = vmatpush.msra.mxu0 0.0
        %2400 = vmatpush.msra.mxu0 0.0
        %2401 = vmatpush.msra.mxu0 0.0
        %2402 = vmatpush.msra.mxu0 %v2056
        %2403 = vmatpush.msra.mxu0 %v2055
        %2404 = vmatpush.msra.mxu0 %v2054
        %2405 = vmatpush.msra.mxu0 %v2053
        %2406 = vmatmul.f32.gmra.mxu0 %v2388
        %v2407 = vpop.f32.mrf.mxu0
        %v2408 = vadd.f32 0.0, %v2407
        %2409 = vdwg.mxu0
        %v2410 = vrot.slane %v2030, 6
        %v2411 = vsel %vm2009, %v2410, 0
        %2413 = vmatpush.msra.mxu0 0.0
        %2414 = vmatpush.msra.mxu0 0.0
        %2415 = vmatpush.msra.mxu0 0.0
        %2416 = vmatpush.msra.mxu0 0.0
        %2417 = vmatpush.msra.mxu0 0.0
        %2418 = vmatpush.msra.mxu0 0.0
        %2419 = vmatpush.msra.mxu0 0.0
        %2420 = vmatpush.msra.mxu0 0.0
        %2421 = vmatpush.msra.mxu0 0.0
        %2422 = vmatpush.msra.mxu0 0.0
        %2423 = vmatpush.msra.mxu0 0.0
        %2424 = vmatpush.msra.mxu0 0.0
        %2425 = vmatpush.msra.mxu0 %v2052
        %2426 = vmatpush.msra.mxu0 %v2051
        %2427 = vmatpush.msra.mxu0 %v2050
        %2428 = vmatpush.msra.mxu0 %v2049
        %2429 = vmatmul.f32.gmra.mxu0 %v2411
        %v2430 = vpop.f32.mrf.mxu0
        %v2431 = vadd.f32 %v2408, %v2430
        %2432 = vdwg.mxu0
        %v2433 = vadd.f32 %v2431, %v2057
        %v2434 = vxor.u32 %v2433, 2147483648
        %v2435 = vmul.f32 %v2434, 1.442695
        %v2436 = vpow.pop %v2435
        %v2437 = vadd.f32 %v2436, 1.0
        %v2438 = vrcp.pop %v2437
        %v2439 = vmul.f32 %v2437, %v2438
        %v2440 = vsub.f32 1.0, %v2439
        %v2441 = vmul.f32 %v2438, %v2440
        %v2442 = vadd.f32 %v2438, %v2441
        %vm2443 = vweird.f32 %v2437
        %vm2444 = vweird.f32 %v2438
        %vm2445 = vmor %vm2443, %vm2444
        %v2446 = vsel %vm2445, %v2438, %v2442
        %v2447 = vand.u32 2147483647, %v2437
        %vm2448 = vcmp.eq.f32.partialorder %v2447, 8.507059e+37
        %v2449 = vand.u32 %v2437, 2147483648
        %v2450 = vor.u32 1.1754944e-38, %v2449
        %v2451 = vsel %vm2448, %v2450, %v2446
        %v2452 = vmul.f32 1.0, %v2451
        %v2453 = vtanh.pop %v2433
        %v2455 = vrot.slane %v2271, 1
        %2456 = vrot.lane.b32.xlu0 %v2455, 32
        %v2457 = vpop.permute.xlu0 %2456
        %v2459 = vmul.f32 %v2452, %v2457
        %2461 = vrot.lane.b32.xlu0 %v2453, 64
        %v2462 = vpop.permute.xlu0 %2461
        %v2464 = vmul.f32 %v2452, %v2462
        %2466 = vrot.lane.b32.xlu0 %v2464, 32
        %v2467 = vpop.permute.xlu0 %2466
        %v2469 = vadd.f32 %v2459, %v2467
        %v2470 = vtanh.pop %v2469
        %2472 = vrot.lane.b32.xlu0 %v2470, 64
        %v2473 = vpop.permute.xlu0 %2472
        %v2475 = vmul.f32 %v2452, %v2473
        %2476 = vset.pattern.permute.xlu0 6
        %2477 = vperm.xlu0 %2476, %v2039
        %v2478 = vpop.permute.xlu0 %2477
        %v2481 = vrot.slane %v2475, 7
        %2482 = vrot.lane.b32.xlu0 %v2481, 32
        %v2483 = vpop.permute.xlu0 %2482
        %v2485 = vmul.f32 %v2478, %v2483
        %2486 = vset.pattern.permute.xlu0 6
        %2487 = vperm.xlu0 %2486, %v2153
        %v2488 = vpop.permute.xlu0 %2487
        %v2490 = vmul.f32 %v2488, %v2264
        %v2491 = vadd.f32 %v2485, %v2490
        %v2493 = vrot.slane %v2469, 7
        %2494 = vrot.lane.b32.xlu0 %v2493, 96
        %v2495 = vpop.permute.xlu0 %2494
        %v2497 = vmul.f32 %v2478, %v2495
        %v2498 = vmul.f32 %v2488, %v2271
        %v2499 = vadd.f32 %v2497, %v2498
        %v2501 = vrot.slane %v2377, 1
        %v2502 = vsel %vm2009, %v2501, 0
        %2504 = vmatpush.msra.mxu0 0.0
        %2505 = vmatpush.msra.mxu0 0.0
        %2506 = vmatpush.msra.mxu0 0.0
        %2507 = vmatpush.msra.mxu0 0.0
        %2508 = vmatpush.msra.mxu0 0.0
        %2509 = vmatpush.msra.mxu0 0.0
        %2510 = vmatpush.msra.mxu0 0.0
        %2511 = vmatpush.msra.mxu0 0.0
        %2512 = vmatpush.msra.mxu0 0.0
        %2513 = vmatpush.msra.mxu0 0.0
        %2514 = vmatpush.msra.mxu0 0.0
        %2515 = vmatpush.msra.mxu0 0.0
        %2516 = vmatpush.msra.mxu0 %v2047
        %2517 = vmatpush.msra.mxu0 %v2046
        %2518 = vmatpush.msra.mxu0 %v2045
        %2519 = vmatpush.msra.mxu0 %v2044
        %2520 = vmatmul.f32.gmra.mxu0 %v2502
        %v2521 = vpop.f32.mrf.mxu0
        %v2522 = vadd.f32 0.0, %v2521
        %2523 = vdwg.mxu0
        %v2524 = vrot.slane %v2030, 2
        %v2525 = vsel %vm2009, %v2524, 0
        %2527 = vmatpush.msra.mxu0 0.0
        %2528 = vmatpush.msra.mxu0 0.0
        %2529 = vmatpush.msra.mxu0 0.0
        %2530 = vmatpush.msra.mxu0 0.0
        %2531 = vmatpush.msra.mxu0 0.0
        %2532 = vmatpush.msra.mxu0 0.0
        %2533 = vmatpush.msra.mxu0 0.0
        %2534 = vmatpush.msra.mxu0 0.0
        %2535 = vmatpush.msra.mxu0 0.0
        %2536 = vmatpush.msra.mxu0 0.0
        %2537 = vmatpush.msra.mxu0 0.0
        %2538 = vmatpush.msra.mxu0 0.0
        %2539 = vmatpush.msra.mxu0 %v2043
        %2540 = vmatpush.msra.mxu0 %v2042
        %2541 = vmatpush.msra.mxu0 %v2041
        %2542 = vmatpush.msra.mxu0 %v2040
        %2543 = vmatmul.f32.gmra.mxu0 %v2525
        %v2544 = vpop.f32.mrf.mxu0
        %v2545 = vadd.f32 %v2522, %v2544
        %2546 = vdwg.mxu0
        %v2547 = vadd.f32 %v2545, %v2048
        %v2548 = vxor.u32 %v2547, 2147483648
        %v2549 = vmul.f32 %v2548, 1.442695
        %v2550 = vpow.pop %v2549
        %v2551 = vadd.f32 %v2550, 1.0
        %v2552 = vrcp.pop %v2551
        %v2553 = vmul.f32 %v2551, %v2552
        %v2554 = vsub.f32 1.0, %v2553
        %v2555 = vmul.f32 %v2552, %v2554
        %v2556 = vadd.f32 %v2552, %v2555
        %vm2557 = vweird.f32 %v2551
        %vm2558 = vweird.f32 %v2552
        %vm2559 = vmor %vm2557, %vm2558
        %v2560 = vsel %vm2559, %v2552, %v2556
        %v2561 = vand.u32 2147483647, %v2551
        %vm2562 = vcmp.eq.f32.partialorder %v2561, 8.507059e+37
        %v2563 = vand.u32 %v2551, 2147483648
        %v2564 = vor.u32 1.1754944e-38, %v2563
        %v2565 = vsel %vm2562, %v2564, %v2560
        %v2566 = vmul.f32 1.0, %v2565
        %v2567 = vtanh.pop %v2547
        %v2569 = vrot.slane %v2385, 1
        %2570 = vrot.lane.b32.xlu0 %v2569, 32
        %v2571 = vpop.permute.xlu0 %2570
        %v2573 = vmul.f32 %v2566, %v2571
        %2575 = vrot.lane.b32.xlu0 %v2567, 64
        %v2576 = vpop.permute.xlu0 %2575
        %v2578 = vmul.f32 %v2566, %v2576
        %2580 = vrot.lane.b32.xlu0 %v2578, 32
        %v2581 = vpop.permute.xlu0 %2580
        %v2583 = vadd.f32 %v2573, %v2581
        %v2584 = vtanh.pop %v2583
        %2586 = vrot.lane.b32.xlu0 %v2584, 64
        %v2587 = vpop.permute.xlu0 %2586
        %v2589 = vmul.f32 %v2566, %v2587
        %2590 = vset.pattern.permute.xlu0 2
        %2591 = vperm.xlu0 %2590, %v2039
        %v2592 = vpop.permute.xlu0 %2591
        %v2595 = vrot.slane %v2589, 7
        %2596 = vrot.lane.b32.xlu0 %v2595, 32
        %v2597 = vpop.permute.xlu0 %2596
        %v2599 = vmul.f32 %v2592, %v2597
        %2600 = vset.pattern.permute.xlu0 2
        %2601 = vperm.xlu0 %2600, %v2153
        %v2602 = vpop.permute.xlu0 %2601
        %v2604 = vmul.f32 %v2602, %v2377
        %v2605 = vadd.f32 %v2599, %v2604
        %v2607 = vrot.slane %v2583, 7
        %2608 = vrot.lane.b32.xlu0 %v2607, 96
        %v2609 = vpop.permute.xlu0 %2608
        %v2611 = vmul.f32 %v2592, %v2609
        %v2612 = vmul.f32 %v2602, %v2385
        %v2613 = vadd.f32 %v2611, %v2612
        %v2615 = vrot.slane %v2491, 1
        %v2616 = vsel %vm2009, %v2615, 0
        %2618 = vmatpush.msra.mxu0 0.0
        %2619 = vmatpush.msra.mxu0 0.0
        %2620 = vmatpush.msra.mxu0 0.0
        %2621 = vmatpush.msra.mxu0 0.0
        %2622 = vmatpush.msra.mxu0 0.0
        %2623 = vmatpush.msra.mxu0 0.0
        %2624 = vmatpush.msra.mxu0 0.0
        %2625 = vmatpush.msra.mxu0 0.0
        %2626 = vmatpush.msra.mxu0 0.0
        %2627 = vmatpush.msra.mxu0 0.0
        %2628 = vmatpush.msra.mxu0 0.0
        %2629 = vmatpush.msra.mxu0 0.0
        %2630 = vmatpush.msra.mxu0 %v2056
        %2631 = vmatpush.msra.mxu0 %v2055
        %2632 = vmatpush.msra.mxu0 %v2054
        %2633 = vmatpush.msra.mxu0 %v2053
        %2634 = vmatmul.f32.gmra.mxu0 %v2616
        %v2635 = vpop.f32.mrf.mxu0
        %v2636 = vadd.f32 0.0, %v2635
        %2637 = vdwg.mxu0
        %v2638 = vrot.slane %v2030, 5
        %v2639 = vsel %vm2009, %v2638, 0
        %2641 = vmatpush.msra.mxu0 0.0
        %2642 = vmatpush.msra.mxu0 0.0
        %2643 = vmatpush.msra.mxu0 0.0
        %2644 = vmatpush.msra.mxu0 0.0
        %2645 = vmatpush.msra.mxu0 0.0
        %2646 = vmatpush.msra.mxu0 0.0
        %2647 = vmatpush.msra.mxu0 0.0
        %2648 = vmatpush.msra.mxu0 0.0
        %2649 = vmatpush.msra.mxu0 0.0
        %2650 = vmatpush.msra.mxu0 0.0
        %2651 = vmatpush.msra.mxu0 0.0
        %2652 = vmatpush.msra.mxu0 0.0
        %2653 = vmatpush.msra.mxu0 %v2052
        %2654 = vmatpush.msra.mxu0 %v2051
        %2655 = vmatpush.msra.mxu0 %v2050
        %2656 = vmatpush.msra.mxu0 %v2049
        %2657 = vmatmul.f32.gmra.mxu0 %v2639
        %v2658 = vpop.f32.mrf.mxu0
        %v2659 = vadd.f32 %v2636, %v2658
        %2660 = vdwg.mxu0
        %v2661 = vadd.f32 %v2659, %v2057
        %v2662 = vxor.u32 %v2661, 2147483648
        %v2663 = vmul.f32 %v2662, 1.442695
        %v2664 = vpow.pop %v2663
        %v2665 = vadd.f32 %v2664, 1.0
        %v2666 = vrcp.pop %v2665
        %v2667 = vmul.f32 %v2665, %v2666
        %v2668 = vsub.f32 1.0, %v2667
        %v2669 = vmul.f32 %v2666, %v2668
        %v2670 = vadd.f32 %v2666, %v2669
        %vm2671 = vweird.f32 %v2665
        %vm2672 = vweird.f32 %v2666
        %vm2673 = vmor %vm2671, %vm2672
        %v2674 = vsel %vm2673, %v2666, %v2670
        %v2675 = vand.u32 2147483647, %v2665
        %vm2676 = vcmp.eq.f32.partialorder %v2675, 8.507059e+37
        %v2677 = vand.u32 %v2665, 2147483648
        %v2678 = vor.u32 1.1754944e-38, %v2677
        %v2679 = vsel %vm2676, %v2678, %v2674
        %v2680 = vmul.f32 1.0, %v2679
        %v2681 = vtanh.pop %v2661
        %v2683 = vrot.slane %v2499, 1
        %2684 = vrot.lane.b32.xlu0 %v2683, 32
        %v2685 = vpop.permute.xlu0 %2684
        %v2687 = vmul.f32 %v2680, %v2685
        %2689 = vrot.lane.b32.xlu0 %v2681, 64
        %v2690 = vpop.permute.xlu0 %2689
        %v2692 = vmul.f32 %v2680, %v2690
        %2694 = vrot.lane.b32.xlu0 %v2692, 32
        %v2695 = vpop.permute.xlu0 %2694
        %v2697 = vadd.f32 %v2687, %v2695
        %v2698 = vtanh.pop %v2697
        %2700 = vrot.lane.b32.xlu0 %v2698, 64
        %v2701 = vpop.permute.xlu0 %2700
        %v2703 = vmul.f32 %v2680, %v2701
        %2704 = vset.pattern.permute.xlu0 5
        %2705 = vperm.xlu0 %2704, %v2039
        %v2706 = vpop.permute.xlu0 %2705
        %v2709 = vrot.slane %v2703, 7
        %2710 = vrot.lane.b32.xlu0 %v2709, 32
        %v2711 = vpop.permute.xlu0 %2710
        %v2713 = vmul.f32 %v2706, %v2711
        %2714 = vset.pattern.permute.xlu0 5
        %2715 = vperm.xlu0 %2714, %v2153
        %v2716 = vpop.permute.xlu0 %2715
        %v2718 = vmul.f32 %v2716, %v2491
        %v2719 = vadd.f32 %v2713, %v2718
        %v2721 = vrot.slane %v2697, 7
        %2722 = vrot.lane.b32.xlu0 %v2721, 96
        %v2723 = vpop.permute.xlu0 %2722
        %v2725 = vmul.f32 %v2706, %v2723
        %v2726 = vmul.f32 %v2716, %v2499
        %v2727 = vadd.f32 %v2725, %v2726
        %v2729 = vrot.slane %v2605, 1
        %v2730 = vsel %vm2009, %v2729, 0
        %2732 = vmatpush.msra.mxu0 0.0
        %2733 = vmatpush.msra.mxu0 0.0
        %2734 = vmatpush.msra.mxu0 0.0
        %2735 = vmatpush.msra.mxu0 0.0
        %2736 = vmatpush.msra.mxu0 0.0
        %2737 = vmatpush.msra.mxu0 0.0
        %2738 = vmatpush.msra.mxu0 0.0
        %2739 = vmatpush.msra.mxu0 0.0
        %2740 = vmatpush.msra.mxu0 0.0
        %2741 = vmatpush.msra.mxu0 0.0
        %2742 = vmatpush.msra.mxu0 0.0
        %2743 = vmatpush.msra.mxu0 0.0
        %2744 = vmatpush.msra.mxu0 %v2047
        %2745 = vmatpush.msra.mxu0 %v2046
        %2746 = vmatpush.msra.mxu0 %v2045
        %2747 = vmatpush.msra.mxu0 %v2044
        %2748 = vmatmul.f32.gmra.mxu0 %v2730
        %v2749 = vpop.f32.mrf.mxu0
        %v2750 = vadd.f32 0.0, %v2749
        %2751 = vdwg.mxu0
        %v2752 = vrot.slane %v2030, 3
        %v2753 = vsel %vm2009, %v2752, 0
        %2755 = vmatpush.msra.mxu0 0.0
        %2756 = vmatpush.msra.mxu0 0.0
        %2757 = vmatpush.msra.mxu0 0.0
        %2758 = vmatpush.msra.mxu0 0.0
        %2759 = vmatpush.msra.mxu0 0.0
        %2760 = vmatpush.msra.mxu0 0.0
        %2761 = vmatpush.msra.mxu0 0.0
        %2762 = vmatpush.msra.mxu0 0.0
        %2763 = vmatpush.msra.mxu0 0.0
        %2764 = vmatpush.msra.mxu0 0.0
        %2765 = vmatpush.msra.mxu0 0.0
        %2766 = vmatpush.msra.mxu0 0.0
        %2767 = vmatpush.msra.mxu0 %v2043
        %2768 = vmatpush.msra.mxu0 %v2042
        %2769 = vmatpush.msra.mxu0 %v2041
        %2770 = vmatpush.msra.mxu0 %v2040
        %2771 = vmatmul.f32.gmra.mxu0 %v2753
        %v2772 = vpop.f32.mrf.mxu0
        %v2773 = vadd.f32 %v2750, %v2772
        %2774 = vdwg.mxu0
        %v2775 = vadd.f32 %v2773, %v2048
        %v2776 = vxor.u32 %v2775, 2147483648
        %v2777 = vmul.f32 %v2776, 1.442695
        %v2778 = vpow.pop %v2777
        %v2779 = vadd.f32 %v2778, 1.0
        %v2780 = vrcp.pop %v2779
        %v2781 = vmul.f32 %v2779, %v2780
        %v2782 = vsub.f32 1.0, %v2781
        %v2783 = vmul.f32 %v2780, %v2782
        %v2784 = vadd.f32 %v2780, %v2783
        %vm2785 = vweird.f32 %v2779
        %vm2786 = vweird.f32 %v2780
        %vm2787 = vmor %vm2785, %vm2786
        %v2788 = vsel %vm2787, %v2780, %v2784
        %v2789 = vand.u32 2147483647, %v2779
        %vm2790 = vcmp.eq.f32.partialorder %v2789, 8.507059e+37
        %v2791 = vand.u32 %v2779, 2147483648
        %v2792 = vor.u32 1.1754944e-38, %v2791
        %v2793 = vsel %vm2790, %v2792, %v2788
        %v2794 = vmul.f32 1.0, %v2793
        %v2795 = vtanh.pop %v2775
        %v2797 = vrot.slane %v2613, 1
        %2798 = vrot.lane.b32.xlu0 %v2797, 32
        %v2799 = vpop.permute.xlu0 %2798
        %v2801 = vmul.f32 %v2794, %v2799
        %2803 = vrot.lane.b32.xlu0 %v2795, 64
        %v2804 = vpop.permute.xlu0 %2803
        %v2806 = vmul.f32 %v2794, %v2804
        %2808 = vrot.lane.b32.xlu0 %v2806, 32
        %v2809 = vpop.permute.xlu0 %2808
        %v2811 = vadd.f32 %v2801, %v2809
        %v2812 = vtanh.pop %v2811
        %2814 = vrot.lane.b32.xlu0 %v2812, 64
        %v2815 = vpop.permute.xlu0 %2814
        %v2817 = vmul.f32 %v2794, %v2815
        %2818 = vset.pattern.permute.xlu0 3
        %2819 = vperm.xlu0 %2818, %v2039
        %v2820 = vpop.permute.xlu0 %2819
        %v2823 = vrot.slane %v2817, 7
        %2824 = vrot.lane.b32.xlu0 %v2823, 32
        %v2825 = vpop.permute.xlu0 %2824
        %v2827 = vmul.f32 %v2820, %v2825
        %2828 = vset.pattern.permute.xlu0 3
        %2829 = vperm.xlu0 %2828, %v2153
        %v2830 = vpop.permute.xlu0 %2829
        %v2832 = vmul.f32 %v2830, %v2605
        %v2833 = vadd.f32 %v2827, %v2832
        %v2835 = vrot.slane %v2811, 7
        %2836 = vrot.lane.b32.xlu0 %v2835, 96
        %v2837 = vpop.permute.xlu0 %2836
        %v2839 = vmul.f32 %v2820, %v2837
        %v2840 = vmul.f32 %v2830, %v2613
        %v2841 = vadd.f32 %v2839, %v2840
        %v2843 = vrot.slane %v2719, 1
        %v2844 = vsel %vm2009, %v2843, 0
        %2846 = vmatpush.msra.mxu0 0.0
        %2847 = vmatpush.msra.mxu0 0.0
        %2848 = vmatpush.msra.mxu0 0.0
        %2849 = vmatpush.msra.mxu0 0.0
        %2850 = vmatpush.msra.mxu0 0.0
        %2851 = vmatpush.msra.mxu0 0.0
        %2852 = vmatpush.msra.mxu0 0.0
        %2853 = vmatpush.msra.mxu0 0.0
        %2854 = vmatpush.msra.mxu0 0.0
        %2855 = vmatpush.msra.mxu0 0.0
        %2856 = vmatpush.msra.mxu0 0.0
        %2857 = vmatpush.msra.mxu0 0.0
        %2858 = vmatpush.msra.mxu0 %v2056
        %2859 = vmatpush.msra.mxu0 %v2055
        %2860 = vmatpush.msra.mxu0 %v2054
        %2861 = vmatpush.msra.mxu0 %v2053
        %2862 = vmatmul.f32.gmra.mxu0 %v2844
        %v2863 = vpop.f32.mrf.mxu0
        %v2864 = vadd.f32 0.0, %v2863
        %2865 = vdwg.mxu0
        %v2866 = vrot.slane %v2030, 4
        %v2867 = vsel %vm2009, %v2866, 0
        %2869 = vmatpush.msra.mxu0 0.0
        %2870 = vmatpush.msra.mxu0 0.0
        %2871 = vmatpush.msra.mxu0 0.0
        %2872 = vmatpush.msra.mxu0 0.0
        %2873 = vmatpush.msra.mxu0 0.0
        %2874 = vmatpush.msra.mxu0 0.0
        %2875 = vmatpush.msra.mxu0 0.0
        %2876 = vmatpush.msra.mxu0 0.0
        %2877 = vmatpush.msra.mxu0 0.0
        %2878 = vmatpush.msra.mxu0 0.0
        %2879 = vmatpush.msra.mxu0 0.0
        %2880 = vmatpush.msra.mxu0 0.0
        %2881 = vmatpush.msra.mxu0 %v2052
        %2882 = vmatpush.msra.mxu0 %v2051
        %2883 = vmatpush.msra.mxu0 %v2050
        %2884 = vmatpush.msra.mxu0 %v2049
        %2885 = vmatmul.f32.gmra.mxu0 %v2867
        %v2886 = vpop.f32.mrf.mxu0
        %v2887 = vadd.f32 %v2864, %v2886
        %2888 = vdwg.mxu0
        %v2889 = vadd.f32 %v2887, %v2057
        %v2890 = vxor.u32 %v2889, 2147483648
        %v2891 = vmul.f32 %v2890, 1.442695
        %v2892 = vpow.pop %v2891
        %v2893 = vadd.f32 %v2892, 1.0
        %v2894 = vrcp.pop %v2893
        %v2895 = vmul.f32 %v2893, %v2894
        %v2896 = vsub.f32 1.0, %v2895
        %v2897 = vmul.f32 %v2894, %v2896
        %v2898 = vadd.f32 %v2894, %v2897
        %vm2899 = vweird.f32 %v2893
        %vm2900 = vweird.f32 %v2894
        %vm2901 = vmor %vm2899, %vm2900
        %v2902 = vsel %vm2901, %v2894, %v2898
        %v2903 = vand.u32 2147483647, %v2893
        %vm2904 = vcmp.eq.f32.partialorder %v2903, 8.507059e+37
        %v2905 = vand.u32 %v2893, 2147483648
        %v2906 = vor.u32 1.1754944e-38, %v2905
        %v2907 = vsel %vm2904, %v2906, %v2902
        %v2908 = vmul.f32 1.0, %v2907
        %v2909 = vtanh.pop %v2889
        %v2911 = vrot.slane %v2727, 1
        %2912 = vrot.lane.b32.xlu0 %v2911, 32
        %v2913 = vpop.permute.xlu0 %2912
        %v2915 = vmul.f32 %v2908, %v2913
        %2917 = vrot.lane.b32.xlu0 %v2909, 64
        %v2918 = vpop.permute.xlu0 %2917
        %v2920 = vmul.f32 %v2908, %v2918
        %2922 = vrot.lane.b32.xlu0 %v2920, 32
        %v2923 = vpop.permute.xlu0 %2922
        %v2925 = vadd.f32 %v2915, %v2923
        %v2926 = vtanh.pop %v2925
        %2928 = vrot.lane.b32.xlu0 %v2926, 64
        %v2929 = vpop.permute.xlu0 %2928
        %v2931 = vmul.f32 %v2908, %v2929
        %2932 = vset.pattern.permute.xlu0 4
        %2933 = vperm.xlu0 %2932, %v2039
        %v2934 = vpop.permute.xlu0 %2933
        %v2937 = vrot.slane %v2931, 7
        %2938 = vrot.lane.b32.xlu0 %v2937, 32
        %v2939 = vpop.permute.xlu0 %2938
        %v2941 = vmul.f32 %v2934, %v2939
        %2942 = vset.pattern.permute.xlu0 4
        %2943 = vperm.xlu0 %2942, %v2153
        %v2944 = vpop.permute.xlu0 %2943
        %v2946 = vmul.f32 %v2944, %v2719
        %v2947 = vadd.f32 %v2941, %v2946
        %v2949 = vrot.slane %v2925, 7
        %2950 = vrot.lane.b32.xlu0 %v2949, 96
        %v2951 = vpop.permute.xlu0 %2950
        %v2953 = vmul.f32 %v2934, %v2951
        %v2954 = vmul.f32 %v2944, %v2727
        %v2955 = vadd.f32 %v2953, %v2954
        %v2957 = vrot.slane %v2833, 1
        %v2958 = vsel %vm2009, %v2957, 0
        %2960 = vmatpush.msra.mxu0 0.0
        %2961 = vmatpush.msra.mxu0 0.0
        %2962 = vmatpush.msra.mxu0 0.0
        %2963 = vmatpush.msra.mxu0 0.0
        %2964 = vmatpush.msra.mxu0 0.0
        %2965 = vmatpush.msra.mxu0 0.0
        %2966 = vmatpush.msra.mxu0 0.0
        %2967 = vmatpush.msra.mxu0 0.0
        %2968 = vmatpush.msra.mxu0 0.0
        %2969 = vmatpush.msra.mxu0 0.0
        %2970 = vmatpush.msra.mxu0 0.0
        %2971 = vmatpush.msra.mxu0 0.0
        %2972 = vmatpush.msra.mxu0 %v2047
        %2973 = vmatpush.msra.mxu0 %v2046
        %2974 = vmatpush.msra.mxu0 %v2045
        %2975 = vmatpush.msra.mxu0 %v2044
        %2976 = vmatmul.f32.gmra.mxu0 %v2958
        %v2977 = vpop.f32.mrf.mxu0
        %v2978 = vadd.f32 0.0, %v2977
        %2979 = vdwg.mxu0
        %2980 = vmatpush.msra.mxu0 0.0
        %2981 = vmatpush.msra.mxu0 0.0
        %2982 = vmatpush.msra.mxu0 0.0
        %2983 = vmatpush.msra.mxu0 0.0
        %2984 = vmatpush.msra.mxu0 0.0
        %2985 = vmatpush.msra.mxu0 0.0
        %2986 = vmatpush.msra.mxu0 0.0
        %2987 = vmatpush.msra.mxu0 0.0
        %2988 = vmatpush.msra.mxu0 0.0
        %2989 = vmatpush.msra.mxu0 0.0
        %2990 = vmatpush.msra.mxu0 0.0
        %2991 = vmatpush.msra.mxu0 0.0
        %2992 = vmatpush.msra.mxu0 %v2043
        %2993 = vmatpush.msra.mxu0 %v2042
        %2994 = vmatpush.msra.mxu0 %v2041
        %2995 = vmatpush.msra.mxu0 %v2040
        %2996 = vmatmul.f32.gmra.mxu0 %v2867
        %v2997 = vpop.f32.mrf.mxu0
        %v2998 = vadd.f32 %v2978, %v2997
        %2999 = vdwg.mxu0
        %v3000 = vadd.f32 %v2998, %v2048
        %v3001 = vxor.u32 %v3000, 2147483648
        %v3002 = vmul.f32 %v3001, 1.442695
        %v3003 = vpow.pop %v3002
        %v3004 = vadd.f32 %v3003, 1.0
        %v3005 = vrcp.pop %v3004
        %v3006 = vmul.f32 %v3004, %v3005
        %v3007 = vsub.f32 1.0, %v3006
        %v3008 = vmul.f32 %v3005, %v3007
        %v3009 = vadd.f32 %v3005, %v3008
        %vm3010 = vweird.f32 %v3004
        %vm3011 = vweird.f32 %v3005
        %vm3012 = vmor %vm3010, %vm3011
        %v3013 = vsel %vm3012, %v3005, %v3009
        %v3014 = vand.u32 2147483647, %v3004
        %vm3015 = vcmp.eq.f32.partialorder %v3014, 8.507059e+37
        %v3016 = vand.u32 %v3004, 2147483648
        %v3017 = vor.u32 1.1754944e-38, %v3016
        %v3018 = vsel %vm3015, %v3017, %v3013
        %v3019 = vmul.f32 1.0, %v3018
        %v3020 = vtanh.pop %v3000
        %v3022 = vrot.slane %v2841, 1
        %3023 = vrot.lane.b32.xlu0 %v3022, 32
        %v3024 = vpop.permute.xlu0 %3023
        %v3026 = vmul.f32 %v3019, %v3024
        %3028 = vrot.lane.b32.xlu0 %v3020, 64
        %v3029 = vpop.permute.xlu0 %3028
        %v3031 = vmul.f32 %v3019, %v3029
        %3033 = vrot.lane.b32.xlu0 %v3031, 32
        %v3034 = vpop.permute.xlu0 %3033
        %v3036 = vadd.f32 %v3026, %v3034
        %v3037 = vtanh.pop %v3036
        %3039 = vrot.lane.b32.xlu0 %v3037, 64
        %v3040 = vpop.permute.xlu0 %3039
        %v3042 = vmul.f32 %v3019, %v3040
        %v3044 = vrot.slane %v3042, 7
        %3045 = vrot.lane.b32.xlu0 %v3044, 32
        %v3046 = vpop.permute.xlu0 %3045
        %v3048 = vmul.f32 %v2934, %v3046
        %v3049 = vmul.f32 %v2944, %v2833
        %v3050 = vadd.f32 %v3048, %v3049
        %v3052 = vrot.slane %v3036, 7
        %3053 = vrot.lane.b32.xlu0 %v3052, 96
        %v3054 = vpop.permute.xlu0 %3053
        %v3056 = vmul.f32 %v2934, %v3054
        %v3057 = vmul.f32 %v2944, %v2841
        %v3058 = vadd.f32 %v3056, %v3057
        %v3060 = vrot.slane %v2947, 1
        %v3061 = vsel %vm2009, %v3060, 0
        %3063 = vmatpush.msra.mxu0 0.0
        %3064 = vmatpush.msra.mxu0 0.0
        %3065 = vmatpush.msra.mxu0 0.0
        %3066 = vmatpush.msra.mxu0 0.0
        %3067 = vmatpush.msra.mxu0 0.0
        %3068 = vmatpush.msra.mxu0 0.0
        %3069 = vmatpush.msra.mxu0 0.0
        %3070 = vmatpush.msra.mxu0 0.0
        %3071 = vmatpush.msra.mxu0 0.0
        %3072 = vmatpush.msra.mxu0 0.0
        %3073 = vmatpush.msra.mxu0 0.0
        %3074 = vmatpush.msra.mxu0 0.0
        %3075 = vmatpush.msra.mxu0 %v2056
        %3076 = vmatpush.msra.mxu0 %v2055
        %3077 = vmatpush.msra.mxu0 %v2054
        %3078 = vmatpush.msra.mxu0 %v2053
        %3079 = vmatmul.f32.gmra.mxu0 %v3061
        %v3080 = vpop.f32.mrf.mxu0
        %v3081 = vadd.f32 0.0, %v3080
        %3082 = vdwg.mxu0
        %3083 = vmatpush.msra.mxu0 0.0
        %3084 = vmatpush.msra.mxu0 0.0
        %3085 = vmatpush.msra.mxu0 0.0
        %3086 = vmatpush.msra.mxu0 0.0
        %3087 = vmatpush.msra.mxu0 0.0
        %3088 = vmatpush.msra.mxu0 0.0
        %3089 = vmatpush.msra.mxu0 0.0
        %3090 = vmatpush.msra.mxu0 0.0
        %3091 = vmatpush.msra.mxu0 0.0
        %3092 = vmatpush.msra.mxu0 0.0
        %3093 = vmatpush.msra.mxu0 0.0
        %3094 = vmatpush.msra.mxu0 0.0
        %3095 = vmatpush.msra.mxu0 %v2052
        %3096 = vmatpush.msra.mxu0 %v2051
        %3097 = vmatpush.msra.mxu0 %v2050
        %3098 = vmatpush.msra.mxu0 %v2049
        %3099 = vmatmul.f32.gmra.mxu0 %v2753
        %v3100 = vpop.f32.mrf.mxu0
        %v3101 = vadd.f32 %v3081, %v3100
        %3102 = vdwg.mxu0
        %v3103 = vadd.f32 %v3101, %v2057
        %v3104 = vxor.u32 %v3103, 2147483648
        %v3105 = vmul.f32 %v3104, 1.442695
        %v3106 = vpow.pop %v3105
        %v3107 = vadd.f32 %v3106, 1.0
        %v3108 = vrcp.pop %v3107
        %v3109 = vmul.f32 %v3107, %v3108
        %v3110 = vsub.f32 1.0, %v3109
        %v3111 = vmul.f32 %v3108, %v3110
        %v3112 = vadd.f32 %v3108, %v3111
        %vm3113 = vweird.f32 %v3107
        %vm3114 = vweird.f32 %v3108
        %vm3115 = vmor %vm3113, %vm3114
        %v3116 = vsel %vm3115, %v3108, %v3112
        %v3117 = vand.u32 2147483647, %v3107
        %vm3118 = vcmp.eq.f32.partialorder %v3117, 8.507059e+37
        %v3119 = vand.u32 %v3107, 2147483648
        %v3120 = vor.u32 1.1754944e-38, %v3119
        %v3121 = vsel %vm3118, %v3120, %v3116
        %v3122 = vmul.f32 1.0, %v3121
        %v3123 = vtanh.pop %v3103
        %v3125 = vrot.slane %v2955, 1
        %3126 = vrot.lane.b32.xlu0 %v3125, 32
        %v3127 = vpop.permute.xlu0 %3126
        %v3129 = vmul.f32 %v3122, %v3127
        %3131 = vrot.lane.b32.xlu0 %v3123, 64
        %v3132 = vpop.permute.xlu0 %3131
        %v3134 = vmul.f32 %v3122, %v3132
        %3136 = vrot.lane.b32.xlu0 %v3134, 32
        %v3137 = vpop.permute.xlu0 %3136
        %v3139 = vadd.f32 %v3129, %v3137
        %v3140 = vtanh.pop %v3139
        %3142 = vrot.lane.b32.xlu0 %v3140, 64
        %v3143 = vpop.permute.xlu0 %3142
        %v3145 = vmul.f32 %v3122, %v3143
        %v3147 = vrot.slane %v3145, 7
        %3148 = vrot.lane.b32.xlu0 %v3147, 32
        %v3149 = vpop.permute.xlu0 %3148
        %v3151 = vmul.f32 %v2820, %v3149
        %v3152 = vmul.f32 %v2830, %v2947
        %v3153 = vadd.f32 %v3151, %v3152
        %v3155 = vrot.slane %v3139, 7
        %3156 = vrot.lane.b32.xlu0 %v3155, 96
        %v3157 = vpop.permute.xlu0 %3156
        %v3159 = vmul.f32 %v2820, %v3157
        %v3160 = vmul.f32 %v2830, %v2955
        %v3161 = vadd.f32 %v3159, %v3160
        %v3163 = vrot.slane %v3050, 1
        %v3164 = vsel %vm2009, %v3163, 0
        %3166 = vmatpush.msra.mxu0 0.0
        %3167 = vmatpush.msra.mxu0 0.0
        %3168 = vmatpush.msra.mxu0 0.0
        %3169 = vmatpush.msra.mxu0 0.0
        %3170 = vmatpush.msra.mxu0 0.0
        %3171 = vmatpush.msra.mxu0 0.0
        %3172 = vmatpush.msra.mxu0 0.0
        %3173 = vmatpush.msra.mxu0 0.0
        %3174 = vmatpush.msra.mxu0 0.0
        %3175 = vmatpush.msra.mxu0 0.0
        %3176 = vmatpush.msra.mxu0 0.0
        %3177 = vmatpush.msra.mxu0 0.0
        %3178 = vmatpush.msra.mxu0 %v2047
        %3179 = vmatpush.msra.mxu0 %v2046
        %3180 = vmatpush.msra.mxu0 %v2045
        %3181 = vmatpush.msra.mxu0 %v2044
        %3182 = vmatmul.f32.gmra.mxu0 %v3164
        %v3183 = vpop.f32.mrf.mxu0
        %v3184 = vadd.f32 0.0, %v3183
        %3185 = vdwg.mxu0
        %3186 = vmatpush.msra.mxu0 0.0
        %3187 = vmatpush.msra.mxu0 0.0
        %3188 = vmatpush.msra.mxu0 0.0
        %3189 = vmatpush.msra.mxu0 0.0
        %3190 = vmatpush.msra.mxu0 0.0
        %3191 = vmatpush.msra.mxu0 0.0
        %3192 = vmatpush.msra.mxu0 0.0
        %3193 = vmatpush.msra.mxu0 0.0
        %3194 = vmatpush.msra.mxu0 0.0
        %3195 = vmatpush.msra.mxu0 0.0
        %3196 = vmatpush.msra.mxu0 0.0
        %3197 = vmatpush.msra.mxu0 0.0
        %3198 = vmatpush.msra.mxu0 %v2043
        %3199 = vmatpush.msra.mxu0 %v2042
        %3200 = vmatpush.msra.mxu0 %v2041
        %3201 = vmatpush.msra.mxu0 %v2040
        %3202 = vmatmul.f32.gmra.mxu0 %v2639
        %v3203 = vpop.f32.mrf.mxu0
        %v3204 = vadd.f32 %v3184, %v3203
        %3205 = vdwg.mxu0
        %v3206 = vadd.f32 %v3204, %v2048
        %v3207 = vxor.u32 %v3206, 2147483648
        %v3208 = vmul.f32 %v3207, 1.442695
        %v3209 = vpow.pop %v3208
        %v3210 = vadd.f32 %v3209, 1.0
        %v3211 = vrcp.pop %v3210
        %v3212 = vmul.f32 %v3210, %v3211
        %v3213 = vsub.f32 1.0, %v3212
        %v3214 = vmul.f32 %v3211, %v3213
        %v3215 = vadd.f32 %v3211, %v3214
        %vm3216 = vweird.f32 %v3210
        %vm3217 = vweird.f32 %v3211
        %vm3218 = vmor %vm3216, %vm3217
        %v3219 = vsel %vm3218, %v3211, %v3215
        %v3220 = vand.u32 2147483647, %v3210
        %vm3221 = vcmp.eq.f32.partialorder %v3220, 8.507059e+37
        %v3222 = vand.u32 %v3210, 2147483648
        %v3223 = vor.u32 1.1754944e-38, %v3222
        %v3224 = vsel %vm3221, %v3223, %v3219
        %v3225 = vmul.f32 1.0, %v3224
        %v3226 = vtanh.pop %v3206
        %v3228 = vrot.slane %v3058, 1
        %3229 = vrot.lane.b32.xlu0 %v3228, 32
        %v3230 = vpop.permute.xlu0 %3229
        %v3232 = vmul.f32 %v3225, %v3230
        %3234 = vrot.lane.b32.xlu0 %v3226, 64
        %v3235 = vpop.permute.xlu0 %3234
        %v3237 = vmul.f32 %v3225, %v3235
        %3239 = vrot.lane.b32.xlu0 %v3237, 32
        %v3240 = vpop.permute.xlu0 %3239
        %v3242 = vadd.f32 %v3232, %v3240
        %v3243 = vtanh.pop %v3242
        %3245 = vrot.lane.b32.xlu0 %v3243, 64
        %v3246 = vpop.permute.xlu0 %3245
        %v3248 = vmul.f32 %v3225, %v3246
        %v3250 = vrot.slane %v3248, 7
        %3251 = vrot.lane.b32.xlu0 %v3250, 32
        %v3252 = vpop.permute.xlu0 %3251
        %v3254 = vmul.f32 %v2706, %v3252
        %v3255 = vmul.f32 %v2716, %v3050
        %v3256 = vadd.f32 %v3254, %v3255
        %v3258 = vrot.slane %v3242, 7
        %3259 = vrot.lane.b32.xlu0 %v3258, 96
        %v3260 = vpop.permute.xlu0 %3259
        %v3262 = vmul.f32 %v2706, %v3260
        %v3263 = vmul.f32 %v2716, %v3058
        %v3264 = vadd.f32 %v3262, %v3263
        %v3266 = vrot.slane %v3153, 1
        %v3267 = vsel %vm2009, %v3266, 0
        %3269 = vmatpush.msra.mxu0 0.0
        %3270 = vmatpush.msra.mxu0 0.0
        %3271 = vmatpush.msra.mxu0 0.0
        %3272 = vmatpush.msra.mxu0 0.0
        %3273 = vmatpush.msra.mxu0 0.0
        %3274 = vmatpush.msra.mxu0 0.0
        %3275 = vmatpush.msra.mxu0 0.0
        %3276 = vmatpush.msra.mxu0 0.0
        %3277 = vmatpush.msra.mxu0 0.0
        %3278 = vmatpush.msra.mxu0 0.0
        %3279 = vmatpush.msra.mxu0 0.0
        %3280 = vmatpush.msra.mxu0 0.0
        %3281 = vmatpush.msra.mxu0 %v2056
        %3282 = vmatpush.msra.mxu0 %v2055
        %3283 = vmatpush.msra.mxu0 %v2054
        %3284 = vmatpush.msra.mxu0 %v2053
        %3285 = vmatmul.f32.gmra.mxu0 %v3267
        %v3286 = vpop.f32.mrf.mxu0
        %v3287 = vadd.f32 0.0, %v3286
        %3288 = vdwg.mxu0
        %3289 = vmatpush.msra.mxu0 0.0
        %3290 = vmatpush.msra.mxu0 0.0
        %3291 = vmatpush.msra.mxu0 0.0
        %3292 = vmatpush.msra.mxu0 0.0
        %3293 = vmatpush.msra.mxu0 0.0
        %3294 = vmatpush.msra.mxu0 0.0
        %3295 = vmatpush.msra.mxu0 0.0
        %3296 = vmatpush.msra.mxu0 0.0
        %3297 = vmatpush.msra.mxu0 0.0
        %3298 = vmatpush.msra.mxu0 0.0
        %3299 = vmatpush.msra.mxu0 0.0
        %3300 = vmatpush.msra.mxu0 0.0
        %3301 = vmatpush.msra.mxu0 %v2052
        %3302 = vmatpush.msra.mxu0 %v2051
        %3303 = vmatpush.msra.mxu0 %v2050
        %3304 = vmatpush.msra.mxu0 %v2049
        %3305 = vmatmul.f32.gmra.mxu0 %v2525
        %v3306 = vpop.f32.mrf.mxu0
        %v3307 = vadd.f32 %v3287, %v3306
        %3308 = vdwg.mxu0
        %v3309 = vadd.f32 %v3307, %v2057
        %v3310 = vxor.u32 %v3309, 2147483648
        %v3311 = vmul.f32 %v3310, 1.442695
        %v3312 = vpow.pop %v3311
        %v3313 = vadd.f32 %v3312, 1.0
        %v3314 = vrcp.pop %v3313
        %v3315 = vmul.f32 %v3313, %v3314
        %v3316 = vsub.f32 1.0, %v3315
        %v3317 = vmul.f32 %v3314, %v3316
        %v3318 = vadd.f32 %v3314, %v3317
        %vm3319 = vweird.f32 %v3313
        %vm3320 = vweird.f32 %v3314
        %vm3321 = vmor %vm3319, %vm3320
        %v3322 = vsel %vm3321, %v3314, %v3318
        %v3323 = vand.u32 2147483647, %v3313
        %vm3324 = vcmp.eq.f32.partialorder %v3323, 8.507059e+37
        %v3325 = vand.u32 %v3313, 2147483648
        %v3326 = vor.u32 1.1754944e-38, %v3325
        %v3327 = vsel %vm3324, %v3326, %v3322
        %v3328 = vmul.f32 1.0, %v3327
        %v3329 = vtanh.pop %v3309
        %v3331 = vrot.slane %v3161, 1
        %3332 = vrot.lane.b32.xlu0 %v3331, 32
        %v3333 = vpop.permute.xlu0 %3332
        %v3335 = vmul.f32 %v3328, %v3333
        %3337 = vrot.lane.b32.xlu0 %v3329, 64
        %v3338 = vpop.permute.xlu0 %3337
        %v3340 = vmul.f32 %v3328, %v3338
        %3342 = vrot.lane.b32.xlu0 %v3340, 32
        %v3343 = vpop.permute.xlu0 %3342
        %v3345 = vadd.f32 %v3335, %v3343
        %v3346 = vtanh.pop %v3345
        %3348 = vrot.lane.b32.xlu0 %v3346, 64
        %v3349 = vpop.permute.xlu0 %3348
        %v3351 = vmul.f32 %v3328, %v3349
        %v3353 = vrot.slane %v3351, 7
        %3354 = vrot.lane.b32.xlu0 %v3353, 32
        %v3355 = vpop.permute.xlu0 %3354
        %v3357 = vmul.f32 %v2592, %v3355
        %v3358 = vmul.f32 %v2602, %v3153
        %v3359 = vadd.f32 %v3357, %v3358
        %v3361 = vrot.slane %v3345, 7
        %3362 = vrot.lane.b32.xlu0 %v3361, 96
        %v3363 = vpop.permute.xlu0 %3362
        %v3365 = vmul.f32 %v2592, %v3363
        %v3366 = vmul.f32 %v2602, %v3161
        %v3367 = vadd.f32 %v3365, %v3366
        %v3369 = vrot.slane %v3256, 1
        %v3370 = vsel %vm2009, %v3369, 0
        %3372 = vmatpush.msra.mxu0 0.0
        %3373 = vmatpush.msra.mxu0 0.0
        %3374 = vmatpush.msra.mxu0 0.0
        %3375 = vmatpush.msra.mxu0 0.0
        %3376 = vmatpush.msra.mxu0 0.0
        %3377 = vmatpush.msra.mxu0 0.0
        %3378 = vmatpush.msra.mxu0 0.0
        %3379 = vmatpush.msra.mxu0 0.0
        %3380 = vmatpush.msra.mxu0 0.0
        %3381 = vmatpush.msra.mxu0 0.0
        %3382 = vmatpush.msra.mxu0 0.0
        %3383 = vmatpush.msra.mxu0 0.0
        %3384 = vmatpush.msra.mxu0 %v2047
        %3385 = vmatpush.msra.mxu0 %v2046
        %3386 = vmatpush.msra.mxu0 %v2045
        %3387 = vmatpush.msra.mxu0 %v2044
        %3388 = vmatmul.f32.gmra.mxu0 %v3370
        %v3389 = vpop.f32.mrf.mxu0
        %v3390 = vadd.f32 0.0, %v3389
        %3391 = vdwg.mxu0
        %3392 = vmatpush.msra.mxu0 0.0
        %3393 = vmatpush.msra.mxu0 0.0
        %3394 = vmatpush.msra.mxu0 0.0
        %3395 = vmatpush.msra.mxu0 0.0
        %3396 = vmatpush.msra.mxu0 0.0
        %3397 = vmatpush.msra.mxu0 0.0
        %3398 = vmatpush.msra.mxu0 0.0
        %3399 = vmatpush.msra.mxu0 0.0
        %3400 = vmatpush.msra.mxu0 0.0
        %3401 = vmatpush.msra.mxu0 0.0
        %3402 = vmatpush.msra.mxu0 0.0
        %3403 = vmatpush.msra.mxu0 0.0
        %3404 = vmatpush.msra.mxu0 %v2043
        %3405 = vmatpush.msra.mxu0 %v2042
        %3406 = vmatpush.msra.mxu0 %v2041
        %3407 = vmatpush.msra.mxu0 %v2040
        %3408 = vmatmul.f32.gmra.mxu0 %v2411
        %v3409 = vpop.f32.mrf.mxu0
        %v3410 = vadd.f32 %v3390, %v3409
        %3411 = vdwg.mxu0
        %v3412 = vadd.f32 %v3410, %v2048
        %v3413 = vxor.u32 %v3412, 2147483648
        %v3414 = vmul.f32 %v3413, 1.442695
        %v3415 = vpow.pop %v3414
        %v3416 = vadd.f32 %v3415, 1.0
        %v3417 = vrcp.pop %v3416
        %v3418 = vmul.f32 %v3416, %v3417
        %v3419 = vsub.f32 1.0, %v3418
        %v3420 = vmul.f32 %v3417, %v3419
        %v3421 = vadd.f32 %v3417, %v3420
        %vm3422 = vweird.f32 %v3416
        %vm3423 = vweird.f32 %v3417
        %vm3424 = vmor %vm3422, %vm3423
        %v3425 = vsel %vm3424, %v3417, %v3421
        %v3426 = vand.u32 2147483647, %v3416
        %vm3427 = vcmp.eq.f32.partialorder %v3426, 8.507059e+37
        %v3428 = vand.u32 %v3416, 2147483648
        %v3429 = vor.u32 1.1754944e-38, %v3428
        %v3430 = vsel %vm3427, %v3429, %v3425
        %v3431 = vmul.f32 1.0, %v3430
        %v3432 = vtanh.pop %v3412
        %v3434 = vrot.slane %v3264, 1
        %3435 = vrot.lane.b32.xlu0 %v3434, 32
        %v3436 = vpop.permute.xlu0 %3435
        %v3438 = vmul.f32 %v3431, %v3436
        %3440 = vrot.lane.b32.xlu0 %v3432, 64
        %v3441 = vpop.permute.xlu0 %3440
        %v3443 = vmul.f32 %v3431, %v3441
        %3445 = vrot.lane.b32.xlu0 %v3443, 32
        %v3446 = vpop.permute.xlu0 %3445
        %v3448 = vadd.f32 %v3438, %v3446
        %v3449 = vtanh.pop %v3448
        %3451 = vrot.lane.b32.xlu0 %v3449, 64
        %v3452 = vpop.permute.xlu0 %3451
        %v3454 = vmul.f32 %v3431, %v3452
        %v3456 = vrot.slane %v3454, 7
        %3457 = vrot.lane.b32.xlu0 %v3456, 32
        %v3458 = vpop.permute.xlu0 %3457
        %v3460 = vmul.f32 %v2478, %v3458
        %v3461 = vmul.f32 %v2488, %v3256
        %v3462 = vadd.f32 %v3460, %v3461
        %v3464 = vrot.slane %v3448, 7
        %3465 = vrot.lane.b32.xlu0 %v3464, 96
        %v3466 = vpop.permute.xlu0 %3465
        %v3468 = vmul.f32 %v2478, %v3466
        %v3469 = vmul.f32 %v2488, %v3264
        %v3470 = vadd.f32 %v3468, %v3469
        %v3472 = vrot.slane %v3359, 1
        %v3473 = vsel %vm2009, %v3472, 0
        %3475 = vmatpush.msra.mxu0 0.0
        %3476 = vmatpush.msra.mxu0 0.0
        %3477 = vmatpush.msra.mxu0 0.0
        %3478 = vmatpush.msra.mxu0 0.0
        %3479 = vmatpush.msra.mxu0 0.0
        %3480 = vmatpush.msra.mxu0 0.0
        %3481 = vmatpush.msra.mxu0 0.0
        %3482 = vmatpush.msra.mxu0 0.0
        %3483 = vmatpush.msra.mxu0 0.0
        %3484 = vmatpush.msra.mxu0 0.0
        %3485 = vmatpush.msra.mxu0 0.0
        %3486 = vmatpush.msra.mxu0 0.0
        %3487 = vmatpush.msra.mxu0 %v2056
        %3488 = vmatpush.msra.mxu0 %v2055
        %3489 = vmatpush.msra.mxu0 %v2054
        %3490 = vmatpush.msra.mxu0 %v2053
        %3491 = vmatmul.f32.gmra.mxu0 %v3473
        %v3492 = vpop.f32.mrf.mxu0
        %v3493 = vadd.f32 0.0, %v3492
        %3494 = vdwg.mxu0
        %3495 = vmatpush.msra.mxu0 0.0
        %3496 = vmatpush.msra.mxu0 0.0
        %3497 = vmatpush.msra.mxu0 0.0
        %3498 = vmatpush.msra.mxu0 0.0
        %3499 = vmatpush.msra.mxu0 0.0
        %3500 = vmatpush.msra.mxu0 0.0
        %3501 = vmatpush.msra.mxu0 0.0
        %3502 = vmatpush.msra.mxu0 0.0
        %3503 = vmatpush.msra.mxu0 0.0
        %3504 = vmatpush.msra.mxu0 0.0
        %3505 = vmatpush.msra.mxu0 0.0
        %3506 = vmatpush.msra.mxu0 0.0
        %3507 = vmatpush.msra.mxu0 %v2052
        %3508 = vmatpush.msra.mxu0 %v2051
        %3509 = vmatpush.msra.mxu0 %v2050
        %3510 = vmatpush.msra.mxu0 %v2049
        %3511 = vmatmul.f32.gmra.mxu0 %v2297
        %v3512 = vpop.f32.mrf.mxu0
        %v3513 = vadd.f32 %v3493, %v3512
        %3514 = vdwg.mxu0
        %v3515 = vadd.f32 %v3513, %v2057
        %v3516 = vxor.u32 %v3515, 2147483648
        %v3517 = vmul.f32 %v3516, 1.442695
        %v3518 = vpow.pop %v3517
        %v3519 = vadd.f32 %v3518, 1.0
        %v3520 = vrcp.pop %v3519
        %v3521 = vmul.f32 %v3519, %v3520
        %v3522 = vsub.f32 1.0, %v3521
        %v3523 = vmul.f32 %v3520, %v3522
        %v3524 = vadd.f32 %v3520, %v3523
        %vm3525 = vweird.f32 %v3519
        %vm3526 = vweird.f32 %v3520
        %vm3527 = vmor %vm3525, %vm3526
        %v3528 = vsel %vm3527, %v3520, %v3524
        %v3529 = vand.u32 2147483647, %v3519
        %vm3530 = vcmp.eq.f32.partialorder %v3529, 8.507059e+37
        %v3531 = vand.u32 %v3519, 2147483648
        %v3532 = vor.u32 1.1754944e-38, %v3531
        %v3533 = vsel %vm3530, %v3532, %v3528
        %v3534 = vmul.f32 1.0, %v3533
        %v3535 = vtanh.pop %v3515
        %v3537 = vrot.slane %v3367, 1
        %3538 = vrot.lane.b32.xlu0 %v3537, 32
        %v3539 = vpop.permute.xlu0 %3538
        %v3541 = vmul.f32 %v3534, %v3539
        %3543 = vrot.lane.b32.xlu0 %v3535, 64
        %v3544 = vpop.permute.xlu0 %3543
        %v3546 = vmul.f32 %v3534, %v3544
        %3548 = vrot.lane.b32.xlu0 %v3546, 32
        %v3549 = vpop.permute.xlu0 %3548
        %v3551 = vadd.f32 %v3541, %v3549
        %v3552 = vtanh.pop %v3551
        %3554 = vrot.lane.b32.xlu0 %v3552, 64
        %v3555 = vpop.permute.xlu0 %3554
        %v3557 = vmul.f32 %v3534, %v3555
        %v3559 = vrot.slane %v3557, 7
        %3560 = vrot.lane.b32.xlu0 %v3559, 32
        %v3561 = vpop.permute.xlu0 %3560
        %v3563 = vmul.f32 %v2364, %v3561
        %v3564 = vmul.f32 %v2374, %v3359
        %v3565 = vadd.f32 %v3563, %v3564
        %v3567 = vrot.slane %v3551, 7
        %3568 = vrot.lane.b32.xlu0 %v3567, 96
        %v3569 = vpop.permute.xlu0 %3568
        %v3571 = vmul.f32 %v2364, %v3569
        %v3572 = vmul.f32 %v2374, %v3367
        %v3573 = vadd.f32 %v3571, %v3572
        %v3575 = vrot.slane %v3462, 1
        %v3576 = vsel %vm2009, %v3575, 0
        %3578 = vmatpush.msra.mxu0 0.0
        %3579 = vmatpush.msra.mxu0 0.0
        %3580 = vmatpush.msra.mxu0 0.0
        %3581 = vmatpush.msra.mxu0 0.0
        %3582 = vmatpush.msra.mxu0 0.0
        %3583 = vmatpush.msra.mxu0 0.0
        %3584 = vmatpush.msra.mxu0 0.0
        %3585 = vmatpush.msra.mxu0 0.0
        %3586 = vmatpush.msra.mxu0 0.0
        %3587 = vmatpush.msra.mxu0 0.0
        %3588 = vmatpush.msra.mxu0 0.0
        %3589 = vmatpush.msra.mxu0 0.0
        %3590 = vmatpush.msra.mxu0 %v2047
        %3591 = vmatpush.msra.mxu0 %v2046
        %3592 = vmatpush.msra.mxu0 %v2045
        %3593 = vmatpush.msra.mxu0 %v2044
        %3594 = vmatmul.f32.gmra.mxu0 %v3576
        %v3595 = vpop.f32.mrf.mxu0
        %v3596 = vadd.f32 0.0, %v3595
        %3597 = vdwg.mxu0
        %3598 = vmatpush.msra.mxu0 0.0
        %3599 = vmatpush.msra.mxu0 0.0
        %3600 = vmatpush.msra.mxu0 0.0
        %3601 = vmatpush.msra.mxu0 0.0
        %3602 = vmatpush.msra.mxu0 0.0
        %3603 = vmatpush.msra.mxu0 0.0
        %3604 = vmatpush.msra.mxu0 0.0
        %3605 = vmatpush.msra.mxu0 0.0
        %3606 = vmatpush.msra.mxu0 0.0
        %3607 = vmatpush.msra.mxu0 0.0
        %3608 = vmatpush.msra.mxu0 0.0
        %3609 = vmatpush.msra.mxu0 0.0
        %3610 = vmatpush.msra.mxu0 %v2043
        %3611 = vmatpush.msra.mxu0 %v2042
        %3612 = vmatpush.msra.mxu0 %v2041
        %3613 = vmatpush.msra.mxu0 %v2040
        %3614 = vmatmul.f32.gmra.mxu0 %v2189
        %v3615 = vpop.f32.mrf.mxu0
        %v3616 = vadd.f32 %v3596, %v3615
        %3617 = vdwg.mxu0
        %v3618 = vadd.f32 %v3616, %v2048
        %v3619 = vxor.u32 %v3618, 2147483648
        %v3620 = vmul.f32 %v3619, 1.442695
        %v3621 = vpow.pop %v3620
        %v3622 = vadd.f32 %v3621, 1.0
        %v3623 = vrcp.pop %v3622
        %v3624 = vmul.f32 %v3622, %v3623
        %v3625 = vsub.f32 1.0, %v3624
        %v3626 = vmul.f32 %v3623, %v3625
        %v3627 = vadd.f32 %v3623, %v3626
        %vm3628 = vweird.f32 %v3622
        %vm3629 = vweird.f32 %v3623
        %vm3630 = vmor %vm3628, %vm3629
        %v3631 = vsel %vm3630, %v3623, %v3627
        %v3632 = vand.u32 2147483647, %v3622
        %vm3633 = vcmp.eq.f32.partialorder %v3632, 8.507059e+37
        %v3634 = vand.u32 %v3622, 2147483648
        %v3635 = vor.u32 1.1754944e-38, %v3634
        %v3636 = vsel %vm3633, %v3635, %v3631
        %v3637 = vmul.f32 1.0, %v3636
        %v3638 = vtanh.pop %v3618
        %v3640 = vrot.slane %v3470, 1
        %3641 = vrot.lane.b32.xlu0 %v3640, 32
        %v3642 = vpop.permute.xlu0 %3641
        %v3644 = vmul.f32 %v3637, %v3642
        %3646 = vrot.lane.b32.xlu0 %v3638, 64
        %v3647 = vpop.permute.xlu0 %3646
        %v3649 = vmul.f32 %v3637, %v3647
        %3651 = vrot.lane.b32.xlu0 %v3649, 32
        %v3652 = vpop.permute.xlu0 %3651
        %v3654 = vadd.f32 %v3644, %v3652
        %v3655 = vtanh.pop %v3654
        %3657 = vrot.lane.b32.xlu0 %v3655, 64
        %v3658 = vpop.permute.xlu0 %3657
        %v3660 = vmul.f32 %v3637, %v3658
        %v3662 = vrot.slane %v3660, 7
        %3663 = vrot.lane.b32.xlu0 %v3662, 32
        %v3664 = vpop.permute.xlu0 %3663
        %v3666 = vmul.f32 %v2251, %v3664
        %v3668 = vrot.slane %v3565, 1
        %v3669 = vsel %vm2009, %v3668, 0
        %3671 = vmatpush.msra.mxu0 0.0
        %3672 = vmatpush.msra.mxu0 0.0
        %3673 = vmatpush.msra.mxu0 0.0
        %3674 = vmatpush.msra.mxu0 0.0
        %3675 = vmatpush.msra.mxu0 0.0
        %3676 = vmatpush.msra.mxu0 0.0
        %3677 = vmatpush.msra.mxu0 0.0
        %3678 = vmatpush.msra.mxu0 0.0
        %3679 = vmatpush.msra.mxu0 0.0
        %3680 = vmatpush.msra.mxu0 0.0
        %3681 = vmatpush.msra.mxu0 0.0
        %3682 = vmatpush.msra.mxu0 0.0
        %3683 = vmatpush.msra.mxu0 %v2056
        %3684 = vmatpush.msra.mxu0 %v2055
        %3685 = vmatpush.msra.mxu0 %v2054
        %3686 = vmatpush.msra.mxu0 %v2053
        %3687 = vmatmul.f32.gmra.mxu0 %v3669
        %v3688 = vpop.f32.mrf.mxu0
        %v3689 = vadd.f32 0.0, %v3688
        %3690 = vdwg.mxu0
        %3691 = vmatpush.msra.mxu0 0.0
        %3692 = vmatpush.msra.mxu0 0.0
        %3693 = vmatpush.msra.mxu0 0.0
        %3694 = vmatpush.msra.mxu0 0.0
        %3695 = vmatpush.msra.mxu0 0.0
        %3696 = vmatpush.msra.mxu0 0.0
        %3697 = vmatpush.msra.mxu0 0.0
        %3698 = vmatpush.msra.mxu0 0.0
        %3699 = vmatpush.msra.mxu0 0.0
        %3700 = vmatpush.msra.mxu0 0.0
        %3701 = vmatpush.msra.mxu0 0.0
        %3702 = vmatpush.msra.mxu0 0.0
        %3703 = vmatpush.msra.mxu0 %v2052
        %3704 = vmatpush.msra.mxu0 %v2051
        %3705 = vmatpush.msra.mxu0 %v2050
        %3706 = vmatpush.msra.mxu0 %v2049
        %3707 = vmatmul.f32.gmra.mxu0 %v2082
        %v3708 = vpop.f32.mrf.mxu0
        %v3709 = vadd.f32 %v3689, %v3708
        %3710 = vdwg.mxu0
        %v3711 = vadd.f32 %v3709, %v2057
        %v3712 = vxor.u32 %v3711, 2147483648
        %v3713 = vmul.f32 %v3712, 1.442695
        %v3714 = vpow.pop %v3713
        %v3715 = vadd.f32 %v3714, 1.0
        %v3716 = vrcp.pop %v3715
        %v3717 = vmul.f32 %v3715, %v3716
        %v3718 = vsub.f32 1.0, %v3717
        %v3719 = vmul.f32 %v3716, %v3718
        %v3720 = vadd.f32 %v3716, %v3719
        %vm3721 = vweird.f32 %v3715
        %vm3722 = vweird.f32 %v3716
        %vm3723 = vmor %vm3721, %vm3722
        %v3724 = vsel %vm3723, %v3716, %v3720
        %v3725 = vand.u32 2147483647, %v3715
        %vm3726 = vcmp.eq.f32.partialorder %v3725, 8.507059e+37
        %v3727 = vand.u32 %v3715, 2147483648
        %v3728 = vor.u32 1.1754944e-38, %v3727
        %v3729 = vsel %vm3726, %v3728, %v3724
        %v3730 = vmul.f32 1.0, %v3729
        %v3731 = vtanh.pop %v3711
        %v3733 = vrot.slane %v3573, 1
        %3734 = vrot.lane.b32.xlu0 %v3733, 32
        %v3735 = vpop.permute.xlu0 %3734
        %v3737 = vmul.f32 %v3730, %v3735
        %3739 = vrot.lane.b32.xlu0 %v3731, 64
        %v3740 = vpop.permute.xlu0 %3739
        %v3742 = vmul.f32 %v3730, %v3740
        %3744 = vrot.lane.b32.xlu0 %v3742, 32
        %v3745 = vpop.permute.xlu0 %3744
        %v3747 = vadd.f32 %v3737, %v3745
        %v3748 = vtanh.pop %v3747
        %3750 = vrot.lane.b32.xlu0 %v3748, 64
        %v3751 = vpop.permute.xlu0 %3750
        %v3753 = vmul.f32 %v3730, %v3751
        %v3755 = vrot.slane %v3753, 7
        %3756 = vrot.lane.b32.xlu0 %v3755, 32
        %v3757 = vpop.permute.xlu0 %3756
        %v3759 = vmul.f32 %v2145, %v3757
        %v3761 = vrot.slane %v2152, 1
        %v3764 = vrot.slane %v2599, 7
        %v3767 = vrot.slane %v2827, 6
        %v3770 = vrot.slane %v3048, 5
        %v3773 = vrot.slane %v3254, 4
        %v3776 = vrot.slane %v3460, 3
        %v3779 = vrot.slane %v3666, 2
        %vm3781 = vcmask 1040384
        %v3782 = vsel %vm3781, %v3761, %v2371
        %vm3783 = vcmask 1041408
        %v3784 = vsel %vm3783, %v3782, %v3764
        %vm3785 = vcmask 1042432
        %v3786 = vsel %vm3785, %v3784, %v3767
        %vm3787 = vcmask 1043456
        %v3788 = vsel %vm3787, %v3786, %v3770
        %vm3789 = vcmask 1044480
        %v3790 = vsel %vm3789, %v3788, %v3773
        %vm3791 = vcmask 1045504
        %v3792 = vsel %vm3791, %v3790, %v3776
        %vm3793 = vcmask 1046528
        %v3794 = vsel %vm3793, %v3792, %v3779
        %v3796 = vrot.slane %v3759, 1
        %v3799 = vrot.slane %v3357, 7
        %v3802 = vrot.slane %v3151, 6
        %v3805 = vrot.slane %v2941, 5
        %v3808 = vrot.slane %v2713, 4
        %v3811 = vrot.slane %v2485, 3
        %v3814 = vrot.slane %v2258, 2
        %v3816 = vsel %vm3781, %v3796, %v3563
        %v3817 = vsel %vm3783, %v3816, %v3799
        %v3818 = vsel %vm3785, %v3817, %v3802
        %v3819 = vsel %vm3787, %v3818, %v3805
        %v3820 = vsel %vm3789, %v3819, %v3808
        %v3821 = vsel %vm3791, %v3820, %v3811
        %v3822 = vsel %vm3793, %v3821, %v3814
        %3824 = vrot.lane.b32.xlu0 %v3822, 32
        %v3825 = vpop.permute.xlu0 %3824
        %v3827 = vsel %vm2009, %v3794, %v3825
        %v3828 = vld [vmem:[#allocation9] sm:$0x3]
        %v3829 = vld [vmem:[#allocation9 + $0x2] sm:$0x3]
        %v3830 = vld [vmem:[#allocation9 + $0x4] sm:$0x3]
        %v3831 = vld [vmem:[#allocation9 + $0x6] sm:$0x3]
        %v3832 = vld [vmem:[#allocation9 + $0x8] sm:$0x3]
        %v3833 = vld [vmem:[#allocation9 + $0xa] sm:$0x3]
        %v3834 = vld [vmem:[#allocation9 + $0xc] sm:$0x3]
        %v3835 = vld [vmem:[#allocation9 + $0xe] sm:$0x3]
        %v3844 = vrot.slane %v3828, 7
        %v3845 = vrot.slane %v3829, 7
        %v3846 = vrot.slane %v3830, 7
        %v3847 = vrot.slane %v3831, 7
        %v3848 = vrot.slane %v3832, 7
        %v3849 = vrot.slane %v3833, 7
        %v3850 = vrot.slane %v3834, 7
        %v3851 = vrot.slane %v3835, 7
        %v3860 = vsel %vm1612, %v3828, %v3844
        %v3861 = vsel %vm1612, %v3829, %v3845
        %v3862 = vsel %vm1612, %v3830, %v3846
        %v3863 = vsel %vm1612, %v3831, %v3847
        %v3864 = vsel %vm1612, %v3832, %v3848
        %v3865 = vsel %vm1612, %v3833, %v3849
        %v3866 = vsel %vm1612, %v3834, %v3850
        %v3867 = vsel %vm1612, %v3835, %v3851
        %v3868 = vld [vmem:[#allocation10] sm:$0x3]
        %v3869 = vld [vmem:[#allocation10 + $0x2] sm:$0x3]
        %v3870 = vld [vmem:[#allocation10 + $0x4] sm:$0x3]
        %v3871 = vld [vmem:[#allocation10 + $0x6] sm:$0x3]
        %v3872 = vld [vmem:[#allocation10 + $0x8] sm:$0x3]
        %v3873 = vld [vmem:[#allocation10 + $0xa] sm:$0x3]
        %v3874 = vld [vmem:[#allocation10 + $0xc] sm:$0x3]
        %v3875 = vld [vmem:[#allocation10 + $0xe] sm:$0x3]
        %v3884 = vrot.slane %v3868, 7
        %v3885 = vrot.slane %v3869, 7
        %v3886 = vrot.slane %v3870, 7
        %v3887 = vrot.slane %v3871, 7
        %v3888 = vrot.slane %v3872, 7
        %v3889 = vrot.slane %v3873, 7
        %v3890 = vrot.slane %v3874, 7
        %v3891 = vrot.slane %v3875, 7
        %v3900 = vsel %vm1612, %v3868, %v3884
        %v3901 = vsel %vm1612, %v3869, %v3885
        %v3902 = vsel %vm1612, %v3870, %v3886
        %v3903 = vsel %vm1612, %v3871, %v3887
        %v3904 = vsel %vm1612, %v3872, %v3888
        %v3905 = vsel %vm1612, %v3873, %v3889
        %v3906 = vsel %vm1612, %v3874, %v3890
        %v3907 = vsel %vm1612, %v3875, %v3891
        %v3908 = vld [vmem:[#allocation12] sm:$0x3]
        %v3909 = vld [vmem:[#allocation12 + $0x2] sm:$0x3]
        %v3910 = vld [vmem:[#allocation12 + $0x4] sm:$0x3]
        %v3911 = vld [vmem:[#allocation12 + $0x6] sm:$0x3]
        %v3912 = vld [vmem:[#allocation12 + $0x8] sm:$0x3]
        %v3913 = vld [vmem:[#allocation12 + $0xa] sm:$0x3]
        %v3914 = vld [vmem:[#allocation12 + $0xc] sm:$0x3]
        %v3915 = vld [vmem:[#allocation12 + $0xe] sm:$0x3]
        %v3924 = vrot.slane %v3908, 7
        %v3925 = vrot.slane %v3909, 7
        %v3926 = vrot.slane %v3910, 7
        %v3927 = vrot.slane %v3911, 7
        %v3928 = vrot.slane %v3912, 7
        %v3929 = vrot.slane %v3913, 7
        %v3930 = vrot.slane %v3914, 7
        %v3931 = vrot.slane %v3915, 7
        %v3940 = vsel %vm1612, %v3908, %v3924
        %v3941 = vsel %vm1612, %v3909, %v3925
        %v3942 = vsel %vm1612, %v3910, %v3926
        %v3943 = vsel %vm1612, %v3911, %v3927
        %v3944 = vsel %vm1612, %v3912, %v3928
        %v3945 = vsel %vm1612, %v3913, %v3929
        %v3946 = vsel %vm1612, %v3914, %v3930
        %v3947 = vsel %vm1612, %v3915, %v3931
        %v3956 = vrot.slane %v3861, 7
        %v3957 = vsel %vm1806, %v3956, %v3860
        %v3958 = vrot.slane %v3862, 6
        %v3959 = vsel %vm1809, %v3958, %v3957
        %v3960 = vrot.slane %v3863, 5
        %v3961 = vsel %vm1812, %v3960, %v3959
        %v3962 = vrot.slane %v3864, 4
        %v3963 = vsel %vm1815, %v3962, %v3961
        %v3964 = vrot.slane %v3865, 3
        %v3965 = vsel %vm1818, %v3964, %v3963
        %v3966 = vrot.slane %v3866, 2
        %v3967 = vsel %vm1821, %v3966, %v3965
        %v3968 = vrot.slane %v3867, 1
        %v3979 = vrot.slane %v3901, 7
        %v3980 = vsel %vm1806, %v3979, %v3900
        %v3981 = vrot.slane %v3902, 6
        %v3982 = vsel %vm1809, %v3981, %v3980
        %v3983 = vrot.slane %v3903, 5
        %v3984 = vsel %vm1812, %v3983, %v3982
        %v3985 = vrot.slane %v3904, 4
        %v3986 = vsel %vm1815, %v3985, %v3984
        %v3987 = vrot.slane %v3905, 3
        %v3988 = vsel %vm1818, %v3987, %v3986
        %v3989 = vrot.slane %v3906, 2
        %v3990 = vsel %vm1821, %v3989, %v3988
        %v3991 = vrot.slane %v3907, 1
        %3992 = vrot.lane.b32.xlu0 %v3990, 16
        %v3993 = vpop.permute.xlu0 %3992
        %3994 = vrot.lane.b32.xlu0 %v3991, 16
        %v3995 = vpop.permute.xlu0 %3994
        %v4006 = vrot.slane %v3941, 7
        %v4007 = vsel %vm1806, %v4006, %v3940
        %v4008 = vrot.slane %v3942, 6
        %v4009 = vsel %vm1809, %v4008, %v4007
        %v4010 = vrot.slane %v3943, 5
        %v4011 = vsel %vm1812, %v4010, %v4009
        %v4012 = vrot.slane %v3944, 4
        %v4013 = vsel %vm1815, %v4012, %v4011
        %v4014 = vrot.slane %v3945, 3
        %v4015 = vsel %vm1818, %v4014, %v4013
        %v4016 = vrot.slane %v3946, 2
        %v4017 = vsel %vm1821, %v4016, %v4015
        %v4018 = vrot.slane %v3947, 1
        %4019 = vrot.lane.b32.xlu0 %v4017, 32
        %v4020 = vpop.permute.xlu0 %4019
        %4021 = vrot.lane.b32.xlu0 %v4018, 32
        %v4022 = vpop.permute.xlu0 %4021
        %vm4025 = vcmask 130048
        %v4026 = vsel %vm4025, %v3967, %v3993
        %v4027 = vsel %vm4025, %v3968, %v3995
        %v4028 = vsel %vm2009, %v4026, %v4020
        %v4029 = vsel %vm2009, %v4027, %v4022
        %v4030 = vld [vmem:[#allocation13] sm:$0x3]
        %v4031 = vld [vmem:[#allocation13 + $0x2] sm:$0x3]
        %v4032 = vld [vmem:[#allocation13 + $0x4] sm:$0x3]
        %v4033 = vld [vmem:[#allocation13 + $0x6] sm:$0x3]
        %v4034 = vld [vmem:[#allocation13 + $0x8] sm:$0x3]
        %v4035 = vld [vmem:[#allocation13 + $0xa] sm:$0x3]
        %v4036 = vld [vmem:[#allocation13 + $0xc] sm:$0x3]
        %v4037 = vld [vmem:[#allocation13 + $0xe] sm:$0x3]
        %v4046 = vrot.slane %v4030, 7
        %v4047 = vrot.slane %v4031, 7
        %v4048 = vrot.slane %v4032, 7
        %v4049 = vrot.slane %v4033, 7
        %v4050 = vrot.slane %v4034, 7
        %v4051 = vrot.slane %v4035, 7
        %v4052 = vrot.slane %v4036, 7
        %v4053 = vrot.slane %v4037, 7
        %v4062 = vsel %vm1612, %v4030, %v4046
        %v4063 = vsel %vm1612, %v4031, %v4047
        %v4064 = vsel %vm1612, %v4032, %v4048
        %v4065 = vsel %vm1612, %v4033, %v4049
        %v4066 = vsel %vm1612, %v4034, %v4050
        %v4067 = vsel %vm1612, %v4035, %v4051
        %v4068 = vsel %vm1612, %v4036, %v4052
        %v4069 = vsel %vm1612, %v4037, %v4053
        %v4070 = vld [vmem:[#allocation15] sm:$0x3]
        %v4071 = vld [vmem:[#allocation15 + $0x2] sm:$0x3]
        %v4072 = vld [vmem:[#allocation15 + $0x4] sm:$0x3]
        %v4073 = vld [vmem:[#allocation15 + $0x6] sm:$0x3]
        %v4074 = vld [vmem:[#allocation15 + $0x8] sm:$0x3]
        %v4075 = vld [vmem:[#allocation15 + $0xa] sm:$0x3]
        %v4076 = vld [vmem:[#allocation15 + $0xc] sm:$0x3]
        %v4077 = vld [vmem:[#allocation15 + $0xe] sm:$0x3]
        %v4086 = vrot.slane %v4070, 7
        %v4087 = vrot.slane %v4071, 7
        %v4088 = vrot.slane %v4072, 7
        %v4089 = vrot.slane %v4073, 7
        %v4090 = vrot.slane %v4074, 7
        %v4091 = vrot.slane %v4075, 7
        %v4092 = vrot.slane %v4076, 7
        %v4093 = vrot.slane %v4077, 7
        %v4102 = vsel %vm1612, %v4070, %v4086
        %v4103 = vsel %vm1612, %v4071, %v4087
        %v4104 = vsel %vm1612, %v4072, %v4088
        %v4105 = vsel %vm1612, %v4073, %v4089
        %v4106 = vsel %vm1612, %v4074, %v4090
        %v4107 = vsel %vm1612, %v4075, %v4091
        %v4108 = vsel %vm1612, %v4076, %v4092
        %v4109 = vsel %vm1612, %v4077, %v4093
        %v4110 = vld [vmem:[#allocation16] sm:$0x3]
        %v4111 = vld [vmem:[#allocation16 + $0x2] sm:$0x3]
        %v4112 = vld [vmem:[#allocation16 + $0x4] sm:$0x3]
        %v4113 = vld [vmem:[#allocation16 + $0x6] sm:$0x3]
        %v4114 = vld [vmem:[#allocation16 + $0x8] sm:$0x3]
        %v4115 = vld [vmem:[#allocation16 + $0xa] sm:$0x3]
        %v4116 = vld [vmem:[#allocation16 + $0xc] sm:$0x3]
        %v4117 = vld [vmem:[#allocation16 + $0xe] sm:$0x3]
        %v4126 = vrot.slane %v4110, 7
        %v4127 = vrot.slane %v4111, 7
        %v4128 = vrot.slane %v4112, 7
        %v4129 = vrot.slane %v4113, 7
        %v4130 = vrot.slane %v4114, 7
        %v4131 = vrot.slane %v4115, 7
        %v4132 = vrot.slane %v4116, 7
        %v4133 = vrot.slane %v4117, 7
        %v4142 = vsel %vm1612, %v4110, %v4126
        %v4143 = vsel %vm1612, %v4111, %v4127
        %v4144 = vsel %vm1612, %v4112, %v4128
        %v4145 = vsel %vm1612, %v4113, %v4129
        %v4146 = vsel %vm1612, %v4114, %v4130
        %v4147 = vsel %vm1612, %v4115, %v4131
        %v4148 = vsel %vm1612, %v4116, %v4132
        %v4149 = vsel %vm1612, %v4117, %v4133
        %v4158 = vrot.slane %v4063, 7
        %v4159 = vsel %vm1806, %v4158, %v4062
        %v4160 = vrot.slane %v4064, 6
        %v4161 = vsel %vm1809, %v4160, %v4159
        %v4162 = vrot.slane %v4065, 5
        %v4163 = vsel %vm1812, %v4162, %v4161
        %v4164 = vrot.slane %v4066, 4
        %v4165 = vsel %vm1815, %v4164, %v4163
        %v4166 = vrot.slane %v4067, 3
        %v4167 = vsel %vm1818, %v4166, %v4165
        %v4168 = vrot.slane %v4068, 2
        %v4169 = vsel %vm1821, %v4168, %v4167
        %v4170 = vrot.slane %v4069, 1
        %v4181 = vrot.slane %v4103, 7
        %v4182 = vsel %vm1806, %v4181, %v4102
        %v4183 = vrot.slane %v4104, 6
        %v4184 = vsel %vm1809, %v4183, %v4182
        %v4185 = vrot.slane %v4105, 5
        %v4186 = vsel %vm1812, %v4185, %v4184
        %v4187 = vrot.slane %v4106, 4
        %v4188 = vsel %vm1815, %v4187, %v4186
        %v4189 = vrot.slane %v4107, 3
        %v4190 = vsel %vm1818, %v4189, %v4188
        %v4191 = vrot.slane %v4108, 2
        %v4192 = vsel %vm1821, %v4191, %v4190
        %v4193 = vrot.slane %v4109, 1
        %4194 = vrot.lane.b32.xlu0 %v4192, 16
        %v4195 = vpop.permute.xlu0 %4194
        %4196 = vrot.lane.b32.xlu0 %v4193, 16
        %v4197 = vpop.permute.xlu0 %4196
        %v4208 = vrot.slane %v4143, 7
        %v4209 = vsel %vm1806, %v4208, %v4142
        %v4210 = vrot.slane %v4144, 6
        %v4211 = vsel %vm1809, %v4210, %v4209
        %v4212 = vrot.slane %v4145, 5
        %v4213 = vsel %vm1812, %v4212, %v4211
        %v4214 = vrot.slane %v4146, 4
        %v4215 = vsel %vm1815, %v4214, %v4213
        %v4216 = vrot.slane %v4147, 3
        %v4217 = vsel %vm1818, %v4216, %v4215
        %v4218 = vrot.slane %v4148, 2
        %v4219 = vsel %vm1821, %v4218, %v4217
        %v4220 = vrot.slane %v4149, 1
        %4221 = vrot.lane.b32.xlu0 %v4219, 32
        %v4222 = vpop.permute.xlu0 %4221
        %4223 = vrot.lane.b32.xlu0 %v4220, 32
        %v4224 = vpop.permute.xlu0 %4223
        %v4227 = vsel %vm4025, %v4169, %v4195
        %v4228 = vsel %vm4025, %v4170, %v4197
        %v4229 = vsel %vm2009, %v4227, %v4222
        %v4230 = vsel %vm2009, %v4228, %v4224
        %v4231 = vld [vmem:[#allocation33] sm:$0xff]
        %v4232 = vld [vmem:[#allocation33 + $0x8] sm:$0xff]
        %v4233 = vld [vmem:[#allocation33 + $0x10] sm:$0xff]
        %v4234 = vld [vmem:[#allocation33 + $0x18] sm:$0xff]
        %v4235 = vld [vmem:[#allocation33 + $0x20] sm:$0xff]
        %v4236 = vld [vmem:[#allocation33 + $0x28] sm:$0xff]
        %v4237 = vld [vmem:[#allocation34] sm:$0x1]
        %v4239 = vperm.slane %v4237, 0
        %v4243 = vrot.slane %v4028, 1
        %v4244 = vrot.slane %v4029, 1
        %v4245 = vsel %vm3793, %v4243, %v4244
        %vm4246 = vcmask 392192
        %v4247 = vsel %vm4246, %v4245, 0
        %4249 = vmatpush.msra.mxu0 0.0
        %4250 = vmatpush.msra.mxu0 0.0
        %4251 = vmatpush.msra.mxu0 0.0
        %4252 = vmatpush.msra.mxu0 0.0
        %4253 = vmatpush.msra.mxu0 0.0
        %4254 = vmatpush.msra.mxu0 0.0
        %4255 = vmatpush.msra.mxu0 0.0
        %4256 = vmatpush.msra.mxu0 0.0
        %4257 = vmatpush.msra.mxu0 0.0
        %4258 = vmatpush.msra.mxu0 0.0
        %4259 = vmatpush.msra.mxu0 %v4236
        %4260 = vmatpush.msra.mxu0 %v4235
        %4261 = vmatpush.msra.mxu0 %v4234
        %4262 = vmatpush.msra.mxu0 %v4233
        %4263 = vmatpush.msra.mxu0 %v4232
        %4264 = vmatpush.msra.mxu0 %v4231
        %4265 = vmatmul.f32.gmra.mxu0 %v4247
        %v4266 = vpop.f32.mrf.mxu0
        %v4267 = vadd.f32 %v4239, %v4266
        %4268 = vdwg.mxu0
        %v4269 = vld [vmem:[#allocation36] sm:$0xff]
        %v4270 = vld [vmem:[#allocation36 + $0x8] sm:$0xff]
        %v4271 = vld [vmem:[#allocation36 + $0x10] sm:$0xff]
        %v4272 = vld [vmem:[#allocation36 + $0x18] sm:$0xff]
        %v4273 = vld [vmem:[#allocation36 + $0x20] sm:$0xff]
        %v4274 = vld [vmem:[#allocation36 + $0x28] sm:$0xff]
        %v4275 = vld [vmem:[#allocation37] sm:$0x1]
        %v4277 = vperm.slane %v4275, 0
        %v4281 = vrot.slane %v4229, 1
        %v4282 = vrot.slane %v4230, 1
        %v4283 = vsel %vm3793, %v4281, %v4282
        %v4284 = vsel %vm4246, %v4283, 0
        %4286 = vmatpush.msra.mxu0 0.0
        %4287 = vmatpush.msra.mxu0 0.0
        %4288 = vmatpush.msra.mxu0 0.0
        %4289 = vmatpush.msra.mxu0 0.0
        %4290 = vmatpush.msra.mxu0 0.0
        %4291 = vmatpush.msra.mxu0 0.0
        %4292 = vmatpush.msra.mxu0 0.0
        %4293 = vmatpush.msra.mxu0 0.0
        %4294 = vmatpush.msra.mxu0 0.0
        %4295 = vmatpush.msra.mxu0 0.0
        %4296 = vmatpush.msra.mxu0 %v4274
        %4297 = vmatpush.msra.mxu0 %v4273
        %4298 = vmatpush.msra.mxu0 %v4272
        %4299 = vmatpush.msra.mxu0 %v4271
        %4300 = vmatpush.msra.mxu0 %v4270
        %4301 = vmatpush.msra.mxu0 %v4269
        %4302 = vmatmul.f32.gmra.mxu0 %v4284
        %v4303 = vpop.f32.mrf.mxu0
        %v4304 = vadd.f32 %v4277, %v4303
        %4305 = vdwg.mxu0
        %v4306 = vld [vmem:[#allocation18] sm:$0xff]
        %v4307 = vld [vmem:[#allocation18 + $0x8] sm:$0xff]
        %v4308 = vsel %vm1612, %v4307, %v4306
        %v4309 = vld [vmem:[#allocation19] sm:$0xff]
        %v4310 = vld [vmem:[#allocation19 + $0x8] sm:$0xff]
        %v4311 = vsel %vm1612, %v4310, %v4309
        %v4312 = vld [vmem:[#allocation39] sm:$0xff]
        %v4313 = vld [vmem:[#allocation39 + $0x8] sm:$0xff]
        %v4314 = vld [vmem:[#allocation39 + $0x10] sm:$0xff]
        %v4315 = vld [vmem:[#allocation39 + $0x18] sm:$0xff]
        %v4316 = vld [vmem:[#allocation39 + $0x20] sm:$0xff]
        %v4317 = vld [vmem:[#allocation39 + $0x28] sm:$0xff]
        %v4318 = vld [vmem:[#allocation39 + $0x30] sm:$0xff]
        %v4319 = vld [vmem:[#allocation39 + $0x38] sm:$0xff]
        %v4320 = vld [vmem:[#allocation39 + $0x40] sm:$0xff]
        %v4321 = vld [vmem:[#allocation39 + $0x48] sm:$0xff]
        %v4322 = vld [vmem:[#allocation39 + $0x50] sm:$0xff]
        %v4323 = vld [vmem:[#allocation39 + $0x58] sm:$0xff]
        %v4324 = vld [vmem:[#allocation39 + $0x60] sm:$0xff]
        %v4325 = vld [vmem:[#allocation39 + $0x68] sm:$0xff]
        %v4326 = vld [vmem:[#allocation39 + $0x70] sm:$0xff]
        %v4327 = vld [vmem:[#allocation39 + $0x78] sm:$0xff]
        %v4328 = vld [vmem:[%s57] sm:$0x3]
        %v4330 = vperm.slane %v4328, 0
        %v4331 = vperm.slane %v4328, 1
        %vm4334 = vcmask 523264
        %v4336 = vsel %vm4334, %v3827, 0
        %4338 = vmatpush.msra.mxu0 0.0
        %4339 = vmatpush.msra.mxu0 0.0
        %4340 = vmatpush.msra.mxu0 0.0
        %4341 = vmatpush.msra.mxu0 0.0
        %4342 = vmatpush.msra.mxu0 0.0
        %4343 = vmatpush.msra.mxu0 0.0
        %4344 = vmatpush.msra.mxu0 0.0
        %4345 = vmatpush.msra.mxu0 0.0
        %4346 = vmatpush.msra.mxu0 %v4326
        %4347 = vmatpush.msra.mxu0 %v4324
        %4348 = vmatpush.msra.mxu0 %v4322
        %4349 = vmatpush.msra.mxu0 %v4320
        %4350 = vmatpush.msra.mxu0 %v4318
        %4351 = vmatpush.msra.mxu0 %v4316
        %4352 = vmatpush.msra.mxu0 %v4314
        %4353 = vmatpush.msra.mxu0 %v4312
        %4354 = vmatmul.f32.gmra.mxu0 %v4336
        %v4355 = vpop.f32.mrf.mxu0
        %v4356 = vadd.f32 %v4330, %v4355
        %4357 = vdwg.mxu0
        %4358 = vmatpush.msra.mxu0 0.0
        %4359 = vmatpush.msra.mxu0 0.0
        %4360 = vmatpush.msra.mxu0 0.0
        %4361 = vmatpush.msra.mxu0 0.0
        %4362 = vmatpush.msra.mxu0 0.0
        %4363 = vmatpush.msra.mxu0 0.0
        %4364 = vmatpush.msra.mxu0 0.0
        %4365 = vmatpush.msra.mxu0 0.0
        %4366 = vmatpush.msra.mxu0 %v4327
        %4367 = vmatpush.msra.mxu0 %v4325
        %4368 = vmatpush.msra.mxu0 %v4323
        %4369 = vmatpush.msra.mxu0 %v4321
        %4370 = vmatpush.msra.mxu0 %v4319
        %4371 = vmatpush.msra.mxu0 %v4317
        %4372 = vmatpush.msra.mxu0 %v4315
        %4373 = vmatpush.msra.mxu0 %v4313
        %4374 = vmatmul.f32.gmra.mxu0 %v4336
        %v4375 = vpop.f32.mrf.mxu0
        %v4376 = vadd.f32 %v4331, %v4375
        %4377 = vdwg.mxu0
        %v4378 = vld [vmem:[#allocation40] sm:$0xff]
        %v4379 = vld [vmem:[#allocation40 + $0x8] sm:$0xff]
        %v4380 = vld [vmem:[#allocation40 + $0x10] sm:$0xff]
        %v4381 = vld [vmem:[#allocation40 + $0x18] sm:$0xff]
        %v4382 = vld [vmem:[#allocation40 + $0x20] sm:$0xff]
        %v4383 = vld [vmem:[#allocation40 + $0x28] sm:$0xff]
        %v4384 = vld [vmem:[#allocation40 + $0x30] sm:$0xff]
        %v4385 = vld [vmem:[#allocation40 + $0x38] sm:$0xff]
        %v4386 = vld [vmem:[#allocation42] sm:$0x1]
        %v4388 = vperm.slane %v4386, 0
        %v4391 = vsel %vm4334, %v4267, 0
        %v4394 = vsel %vm4334, %v4304, 0
        %4396 = vmatpush.msra.mxu0 0.0
        %4397 = vmatpush.msra.mxu0 0.0
        %4398 = vmatpush.msra.mxu0 0.0
        %4399 = vmatpush.msra.mxu0 0.0
        %4400 = vmatpush.msra.mxu0 0.0
        %4401 = vmatpush.msra.mxu0 0.0
        %4402 = vmatpush.msra.mxu0 0.0
        %4403 = vmatpush.msra.mxu0 0.0
        %4404 = vmatpush.msra.mxu0 %v4385
        %4405 = vmatpush.msra.mxu0 %v4384
        %4406 = vmatpush.msra.mxu0 %v4383
        %4407 = vmatpush.msra.mxu0 %v4382
        %4408 = vmatpush.msra.mxu0 %v4381
        %4409 = vmatpush.msra.mxu0 %v4380
        %4410 = vmatpush.msra.mxu0 %v4379
        %4411 = vmatpush.msra.mxu0 %v4378
        %4412 = vmatmul.f32.gmra.mxu0 %v4391
        %v4413 = vpop.f32.mrf.mxu0
        %v4414 = vadd.f32 %v4388, %v4413
        %4415 = vmatmul.f32.gmra.mxu0 %v4394
        %v4416 = vpop.f32.mrf.mxu0
        %v4417 = vadd.f32 %v4388, %v4416
        %4418 = vdwg.mxu0
        %4420 = vrot.lane.b32.xlu0 %v4414, 64
        %v4421 = vpop.permute.xlu0 %4420
        %v4423 = vadd.f32 %v4356, %v4421
        %v4424 = vadd.f32 %v4376, %v4414
        %4426 = vrot.lane.b32.xlu0 %v4417, 64
        %v4427 = vpop.permute.xlu0 %4426
        %v4429 = vadd.f32 %v4356, %v4427
        %v4430 = vadd.f32 %v4376, %v4417
        %4432 = vrot.lane.b32.xlu0 %v4423, 64
        %v4433 = vpop.permute.xlu0 %4432
        %v4435 = vsel %vm4334, %v4356, 0
        %v4437 = vsel %vm4334, %v4433, 0
        %4439 = vmatpush.xpose.msra.mxu0 0.0
        %4440 = vmatpush.xpose.msra.mxu0 0.0
        %4441 = vmatpush.xpose.msra.mxu0 0.0
        %4442 = vmatpush.xpose.msra.mxu0 0.0
        %4443 = vmatpush.xpose.msra.mxu0 0.0
        %4444 = vmatpush.xpose.msra.mxu0 0.0
        %4445 = vmatpush.xpose.msra.mxu0 0.0
        %4446 = vmatpush.xpose.msra.mxu0 0.0
        %4447 = vmatpush.xpose.msra.mxu0 0.0
        %4448 = vmatpush.xpose.msra.mxu0 0.0
        %4449 = vmatpush.xpose.msra.mxu0 0.0
        %4450 = vmatpush.xpose.msra.mxu0 0.0
        %4451 = vmatpush.xpose.msra.mxu0 0.0
        %4452 = vmatpush.xpose.msra.mxu0 0.0
        %4453 = vmatpush.xpose.msra.mxu0 0.0
        %4454 = vmatpush.xpose.msra.mxu0 %v4437
        %4455 = vmatmul.f32.gmra.mxu0 %v4435
        %v4456 = vpop.f32.mrf.mxu0
        %v4457 = vadd.f32 0.0, %v4456
        %4458 = vdwg.mxu0
        %v4459 = vmul.f32 %v4457, 0.17677669
        %v4460 = vmul.f32 %v4459, %v4308
        %4462 = vrot.lane.b32.xlu0 %v4429, 64
        %v4463 = vpop.permute.xlu0 %4462
        %v4464 = vsel %vm4334, %v4463, 0
        %4466 = vmatpush.xpose.msra.mxu0 0.0
        %4467 = vmatpush.xpose.msra.mxu0 0.0
        %4468 = vmatpush.xpose.msra.mxu0 0.0
        %4469 = vmatpush.xpose.msra.mxu0 0.0
        %4470 = vmatpush.xpose.msra.mxu0 0.0
        %4471 = vmatpush.xpose.msra.mxu0 0.0
        %4472 = vmatpush.xpose.msra.mxu0 0.0
        %4473 = vmatpush.xpose.msra.mxu0 0.0
        %4474 = vmatpush.xpose.msra.mxu0 0.0
        %4475 = vmatpush.xpose.msra.mxu0 0.0
        %4476 = vmatpush.xpose.msra.mxu0 0.0
        %4477 = vmatpush.xpose.msra.mxu0 0.0
        %4478 = vmatpush.xpose.msra.mxu0 0.0
        %4479 = vmatpush.xpose.msra.mxu0 0.0
        %4480 = vmatpush.xpose.msra.mxu0 0.0
        %4481 = vmatpush.xpose.msra.mxu0 %v4464
        %4482 = vmatmul.f32.gmra.mxu0 %v4435
        %v4483 = vpop.f32.mrf.mxu0
        %v4484 = vadd.f32 0.0, %v4483
        %4485 = vdwg.mxu0
        %v4486 = vmul.f32 %v4484, 0.17677669
        %v4487 = vmul.f32 %v4486, %v4311
        %v4488 = vadd.f32 %v4308, %v4311
        %vm4489 = vcmp.eq.f32.partialorder %v4488, 0.0
        %v4490 = vadd.f32 %v4460, %v4487
        %v4491 = vsel %vm4489, -1e+09, %v4490
        %vm4492 = vcmask 64512
        %v4493 = vsel %vm4492, %v4491, -inf
        %4494 = vmax.xlane.f32.xlu0 %v4493
        %v4495 = vpop.xlane.xlu0 %4494
        %v4496 = vsub.f32 %v4491, %v4495
        %v4497 = vmul.f32 %v4496, 1.442695
        %v4498 = vpow.pop %v4497
        %v4499 = vsel %vm4492, %v4498, 0.0
        %4500 = vadd.xlane.f32.xlu0 %v4499
        %v4501 = vpop.xlane.xlu0 %4500
        %v4502 = vrcp.pop %v4501
        %v4503 = vmul.f32 %v4498, %v4502
        %v4504 = vmul.f32 %v4503, %v4308
        %v4505 = vmul.f32 %v4503, %v4311
        %4507 = vrot.lane.b32.xlu0 %v4505, 8
        %v4508 = vpop.permute.xlu0 %4507
        %v4510 = vsel %vm4492, %v4504, %v4508
        %v4512 = vsel %vm4025, %v4510, 0
        %4514 = vmatpush.msra.mxu0 0.0
        %4515 = vmatpush.msra.mxu0 0.0
        %4516 = vmatpush.msra.mxu0 0.0
        %4517 = vmatpush.msra.mxu0 0.0
        %4518 = vmatpush.msra.mxu0 0.0
        %4519 = vmatpush.msra.mxu0 0.0
        %4520 = vmatpush.msra.mxu0 0.0
        %4521 = vmatpush.msra.mxu0 0.0
        %4522 = vmatpush.msra.mxu0 0.0
        %4523 = vmatpush.msra.mxu0 0.0
        %4524 = vmatpush.msra.mxu0 0.0
        %4525 = vmatpush.msra.mxu0 0.0
        %4526 = vmatpush.msra.mxu0 0.0
        %4527 = vmatpush.msra.mxu0 0.0
        %4528 = vmatpush.msra.mxu0 %v4430
        %4529 = vmatpush.msra.mxu0 %v4424
        %4530 = vmatmul.f32.gmra.mxu0 %v4512
        %v4531 = vpop.f32.mrf.mxu0
        %v4532 = vadd.f32 0.0, %v4531
        %4533 = vdwg.mxu0
        %v4534 = vadd.f32 %v4504, %v4505
        %v4536 = vsel %vm4492, %v4534, 0
        %4538 = vmatpush.msra.mxu0 0.0
        %4539 = vmatpush.msra.mxu0 0.0
        %4540 = vmatpush.msra.mxu0 0.0
        %4541 = vmatpush.msra.mxu0 0.0
        %4542 = vmatpush.msra.mxu0 0.0
        %4543 = vmatpush.msra.mxu0 0.0
        %4544 = vmatpush.msra.mxu0 0.0
        %4545 = vmatpush.msra.mxu0 0.0
        %4546 = vmatpush.msra.mxu0 0.0
        %4547 = vmatpush.msra.mxu0 0.0
        %4548 = vmatpush.msra.mxu0 0.0
        %4549 = vmatpush.msra.mxu0 0.0
        %4550 = vmatpush.msra.mxu0 0.0
        %4551 = vmatpush.msra.mxu0 0.0
        %4552 = vmatpush.msra.mxu0 0.0
        %4553 = vmatpush.msra.mxu0 %v4356
        %4554 = vmatmul.f32.gmra.mxu0 %v4536
        %v4555 = vpop.f32.mrf.mxu0
        %v4556 = vadd.f32 0.0, %v4555
        %4557 = vdwg.mxu0
        %4559 = vrot.lane.b32.xlu0 %v4556, 64
        %v4560 = vpop.permute.xlu0 %4559
        %v4562 = vsel %vm4334, %v4532, %v4560
        %v4563 = vld [vmem:[#allocation43] sm:$0xff]
        %v4564 = vld [vmem:[#allocation43 + $0x8] sm:$0xff]
        %v4565 = vld [vmem:[#allocation43 + $0x10] sm:$0xff]
        %v4566 = vld [vmem:[#allocation43 + $0x18] sm:$0xff]
        %v4567 = vld [vmem:[#allocation43 + $0x20] sm:$0xff]
        %v4568 = vld [vmem:[#allocation43 + $0x28] sm:$0xff]
        %v4569 = vld [vmem:[#allocation43 + $0x30] sm:$0xff]
        %v4570 = vld [vmem:[#allocation43 + $0x38] sm:$0xff]
        %v4571 = vld [vmem:[#allocation43 + $0x40] sm:$0xff]
        %v4572 = vld [vmem:[#allocation43 + $0x48] sm:$0xff]
        %v4573 = vld [vmem:[#allocation43 + $0x50] sm:$0xff]
        %v4574 = vld [vmem:[#allocation43 + $0x58] sm:$0xff]
        %v4575 = vld [vmem:[#allocation43 + $0x60] sm:$0xff]
        %v4576 = vld [vmem:[#allocation43 + $0x68] sm:$0xff]
        %v4577 = vld [vmem:[#allocation43 + $0x70] sm:$0xff]
        %v4578 = vld [vmem:[#allocation43 + $0x78] sm:$0xff]
        %v4579 = vld [vmem:[#allocation45] sm:$0x1]
        %v4581 = vperm.slane %v4579, 0
        %4583 = vmatpush.msra.mxu0 %v4578
        %4584 = vmatpush.msra.mxu0 %v4577
        %4585 = vmatpush.msra.mxu0 %v4576
        %4586 = vmatpush.msra.mxu0 %v4575
        %4587 = vmatpush.msra.mxu0 %v4574
        %4588 = vmatpush.msra.mxu0 %v4573
        %4589 = vmatpush.msra.mxu0 %v4572
        %4590 = vmatpush.msra.mxu0 %v4571
        %4591 = vmatpush.msra.mxu0 %v4570
        %4592 = vmatpush.msra.mxu0 %v4569
        %4593 = vmatpush.msra.mxu0 %v4568
        %4594 = vmatpush.msra.mxu0 %v4567
        %4595 = vmatpush.msra.mxu0 %v4566
        %4596 = vmatpush.msra.mxu0 %v4565
        %4597 = vmatpush.msra.mxu0 %v4564
        %4598 = vmatpush.msra.mxu0 %v4563
        %4599 = vmatmul.f32.gmra.mxu0 %v4562
        %v4600 = vpop.f32.mrf.mxu0
        %v4601 = vadd.f32 %v4581, %v4600
        %4602 = vdwg.mxu0
        %v4603 = vmax.f32 %v4601, 0.0
        %v4604 = vld [vmem:[#allocation46] sm:$0xff]
        %v4605 = vld [vmem:[#allocation46 + $0x8] sm:$0xff]
        %v4606 = vld [vmem:[#allocation46 + $0x10] sm:$0xff]
        %v4607 = vld [vmem:[#allocation46 + $0x18] sm:$0xff]
        %v4608 = vld [vmem:[#allocation48] sm:$0x1]
        %v4610 = vperm.slane %v4608, 0
        %v4613 = vsel %vm2009, %v4603, 0
        %4615 = vmatpush.msra.mxu0 0.0
        %4616 = vmatpush.msra.mxu0 0.0
        %4617 = vmatpush.msra.mxu0 0.0
        %4618 = vmatpush.msra.mxu0 0.0
        %4619 = vmatpush.msra.mxu0 0.0
        %4620 = vmatpush.msra.mxu0 0.0
        %4621 = vmatpush.msra.mxu0 0.0
        %4622 = vmatpush.msra.mxu0 0.0
        %4623 = vmatpush.msra.mxu0 0.0
        %4624 = vmatpush.msra.mxu0 0.0
        %4625 = vmatpush.msra.mxu0 0.0
        %4626 = vmatpush.msra.mxu0 0.0
        %4627 = vmatpush.msra.mxu0 %v4607
        %4628 = vmatpush.msra.mxu0 %v4606
        %4629 = vmatpush.msra.mxu0 %v4605
        %4630 = vmatpush.msra.mxu0 %v4604
        %4631 = vmatmul.f32.gmra.mxu0 %v4613
        %v4632 = vpop.f32.mrf.mxu0
        %v4633 = vadd.f32 %v4610, %v4632
        %4634 = vdwg.mxu0
        %v4635 = vmax.f32 %v4633, 0.0
        %v4636 = vld [vmem:[%s71] sm:$0xff]
        %v4637 = vld [vmem:[%s71 + $0x8] sm:$0xff]
        %v4638 = vld [vmem:[%s71 + $0x10] sm:$0xff]
        %v4639 = vld [vmem:[%s71 + $0x18] sm:$0xff]
        %v4640 = vld [vmem:[%s73] sm:$0x1]
        %v4642 = vperm.slane %v4640, 0
        %v4645 = vsel %vm2009, %v4635, 0
        %4647 = vmatpush.msra.mxu0 0.0
        %4648 = vmatpush.msra.mxu0 0.0
        %4649 = vmatpush.msra.mxu0 0.0
        %4650 = vmatpush.msra.mxu0 0.0
        %4651 = vmatpush.msra.mxu0 0.0
        %4652 = vmatpush.msra.mxu0 0.0
        %4653 = vmatpush.msra.mxu0 0.0
        %4654 = vmatpush.msra.mxu0 0.0
        %4655 = vmatpush.msra.mxu0 0.0
        %4656 = vmatpush.msra.mxu0 0.0
        %4657 = vmatpush.msra.mxu0 0.0
        %4658 = vmatpush.msra.mxu0 0.0
        %4659 = vmatpush.msra.mxu0 %v4639
        %4660 = vmatpush.msra.mxu0 %v4638
        %4661 = vmatpush.msra.mxu0 %v4637
        %4662 = vmatpush.msra.mxu0 %v4636
        %4663 = vmatmul.f32.gmra.mxu0 %v4645
        %v4664 = vpop.f32.mrf.mxu0
        %v4665 = vadd.f32 %v4642, %v4664
        %4666 = vdwg.mxu0
        %vm4667 = vcmask 56320
        %v4668 = vsel %vm4667, %v4665, -inf
        %4669 = vmax.xlane.f32.xlu0 %v4668
        %v4670 = vpop.xlane.xlu0 %4669
        %v4671 = vsub.f32 %v4665, %v4670
        %v4672 = vmul.f32 %v4671, 1.442695
        %v4673 = vpow.pop %v4672
        %v4674 = vsel %vm4667, %v4673, 0.0
        %4675 = vadd.xlane.f32.xlu0 %v4674
        %v4676 = vpop.xlane.xlu0 %4675
        %v4677 = vlog2.pop %v4676
        %v4678 = vmul.f32 %v4677, 0.6931472
        %v4679 = vsub.f32 %v4671, %v4678
        %4680 = vst.msk [vmem:[%s1600] sm:$0xff] %vm4667, %v4679
        %p4681 = scmp.lt.s32.totalorder %s102, 1
        %s4682 = scalar_select %p4681, %s102, 1
        %s4683 = smul.addr %s4682, 8
        %s4684 = scalar_lea.vmem %s75, %s4683
        // Predicated region
        $region293: #{cauain_forward.1} parent=167 // pred_check
          %p4685 = pneg %p897
        $region294: #{cauain_forward.1} parent=167 // pred_check_branch
          %4687 = sbr.rel (%p4685) target = $region296
        $region295: #{cauain_forward.1} parent=167 // pred_region
          _
        $region296: #{cauain_forward.1} parent=167 // pred_fallthru
          _
      $region168: #{cauain_forward.1} parent=5 // pred_fallthru
        _
      %p4688 = scmp.le.s32.totalorder 2, %s97
      // Predicated region
      $region297: #{cauain_forward.1} parent=5 // pred_check
        %p4689 = pneg %p4688
      $region298: #{cauain_forward.1} parent=5 // pred_check_branch
        %4691 = sbr.rel (%p4689) target = $region300
      $region299: #{cauain_forward.1} parent=5 // pred_region
        %s4692 = ssub.s32 %s97, 2
        // Predicated region
        $region301: #{cauain_forward.1} parent=299 // pred_check
          %p4693 = pneg %p903
        $region302: #{cauain_forward.1} parent=299 // pred_check_branch
          %4695 = sbr.rel (%p4693) target = $region304
        $region303: #{cauain_forward.1} parent=299 // pred_region
          %p4696 = scmp.lt.s32.totalorder %s103, 1
          %s4697 = scalar_select %p4696, %s103, 1
          %s4698 = smul.addr %s4697, 8
          %s4699 = scalar_lea.vmem %s75, %s4698
        $region304: #{cauain_forward.1} parent=299 // pred_fallthru
          _
      $region300: #{cauain_forward.1} parent=5 // pred_fallthru
        _
    $region6: #{cauain_forward.1} parent=1 // loop_footer
      %s101 = sadd.s32 1, %s97
    $region7: #{cauain_forward.1} parent=1 // loop_footer_branch
      %96 = sbr.rel target = $region3
    $region8: #{cauain_forward.1} parent=1 // loop_exit
      _
    %4700 = vsyncpa [#allocation3], 1
    %s4701 = scalar_lea.sflag [#allocation3], 1
    %4702 = vsyncpa %s4701, 1
    %4703 = vsyncpa [#allocation5], 1
    %4704 = vsyncpa [#allocation8], 1
    %4705 = vsyncpa [#allocation11], 1
    %4706 = vsyncpa [#allocation14], 1
    %4707 = vsyncpa [#allocation17], 1
    %4708 = vsyncpa [#allocation20], 1
    %4709 = vsyncpa [#allocation23], 1
    %4710 = vsyncpa [#allocation26], 1
    %4711 = vsyncpa [#allocation29], 1
    %4712 = vsyncpa [#allocation32], 1
    %4713 = vsyncpa [#allocation35], 1
    %4714 = vsyncpa [#allocation38], 1
    %4715 = vsyncpa [#allocation41], 1
    %4716 = vsyncpa [#allocation44], 1
    %4717 = vsyncpa [#allocation47], 1

</llo_original>
